<compile_context>
chip_gen: v6e
topology: v6e:2x2x1
jax: 0.10.0
libtpu: 0.0.40
codegen_flags: <defaults>
</compile_context>

<pallas_src>
import jax
import jax.numpy as jnp
from jax import lax
from jax.experimental import pallas as pl
from jax.experimental.pallas import tpu as pltpu

LANE = 128           # internal channel padding -> every lane access is tile aligned
STRIDES = (4, 2, 1)  # conv strides of the ConvPolicyNet architecture


def _conv_out(size, k, s):
    return (size - k) // s + 1


def compute_dims(x_shape, params, act_dim):
    n, c, h, w = x_shape
    k1 = params["w1"].shape[2]
    kh2, kw2 = params["w2"].shape[2], params["w2"].shape[3]
    kh3, kw3 = params["w3"].shape[2], params["w3"].shape[3]
    s1, s2, s3 = STRIDES
    oh1, ow1 = _conv_out(h, k1, s1), _conv_out(w, k1, s1)
    oh2, ow2 = _conv_out(oh1, kh2, s2), _conv_out(ow1, kw2, s2)
    oh3, ow3 = _conv_out(oh2, kh3, s3), _conv_out(ow2, kw3, s3)
    # layout assumptions of the fused kernel
    assert h % s1 == 0 and w % s1 == 0 and k1 % s1 == 0
    assert oh1 % 2 == 0 and s2 == 2
    assert (kh2 - 1) // 2 + oh2 <= oh1 // 2      # contiguous parity-split row windows
    # TODO(synk): generalize conv3 to spatial outputs > 1x1 (e.g. 84x84 inputs) by
    # reusing the conv2-style window loop instead of a full contraction.
    assert oh3 == 1 and ow3 == 1 and kh3 == oh2 and kw3 == ow2
    return dict(N=n, C=c, H=h, W=w, K1=k1, S1=s1, OH1=oh1, OW1=ow1,
                KH2=kh2, KW2=kw2, OH2=oh2, OW2=ow2, A=act_dim)


# ----------------------------- fused Pallas kernel ---------------------------


def _make_fused_kernel(dims):
    n, oh1, ow1 = dims["N"], dims["OH1"], dims["OW1"]
    kh2, kw2, oh2, ow2 = dims["KH2"], dims["KW2"], dims["OH2"], dims["OW2"]
    half1 = oh1 // 2
    rows_blk = oh1 * n            # conv1 rows per output-column block of the fused matmul
    m2 = oh2 * n                  # M of the per-column conv2 matmul
    k1 = dims["C"] * dims["K1"] * dims["K1"]
    k2 = kh2 * kw2 * LANE
    k3 = oh2 * ow2 * LANE         # conv3 kernel covers the whole conv2 output (1x1 out)
    o1, o2 = 0, k1
    o3, of = o2 + k2, o2 + k2 + k3   # static row offsets in the packed weight matrix

    def kernel(cols1_ref, wpack_ref, bias_ref, mean_ref, h1s, h2s):
        f32, bf16 = jnp.float32, jnp.bfloat16

        # ---- conv1 + ReLU: ONE (ow1*oh1*n, k1) x (k1, 128) MXU matmul ----
        h1 = jnp.dot(cols1_ref[...], wpack_ref[o1:o1 + k1, :],
                     preferred_element_type=f32)                       # (128, 128) f32
        h1 = jnp.maximum(h1 + bias_ref[0:1, :], 0.0)
        for w in range(ow1):       # ow1 aligned (rows_blk,128) stores, channels-last h1s
            h1s[:, w * LANE:(w + 1) * LANE] = h1[w * rows_blk:(w + 1) * rows_blk, :]

        # ---- conv2 + ReLU: one (n*oh2, kh2*kw2*128) x (k2, 128) matmul per output col ----
        # TODO(synk): pack 4 conv1 spatial columns' 32 real channels per 128-lane group
        # to cut conv2's zero-padded K (2048 -> 512) when batch/resolution grow.
        b2 = bias_ref[1:2, :]
        w2 = wpack_ref[o2:o2 + k2, :]
        for j in range(ow2):
            parts = []
            for dh in range(kh2):
                # parity-split, batch-minor h1s rows: all (i, nb) rows with h = 2*i + dh
                # form one contiguous window of m2 rows.
                start = (dh % 2) * half1 * n + (dh // 2) * n
                parts.append(h1s[start:start + m2,
                                 2 * j * LANE:(2 * j + kw2) * LANE])   # (m2, kw2*128)
            slab = jnp.concatenate(parts, axis=1).astype(bf16)         # (m2, k2)
            acc2 = jnp.dot(slab, w2, preferred_element_type=f32)       # (m2, 128)
            h2s[:, j * LANE:(j + 1) * LANE] = jnp.maximum(acc2 + b2, 0.0)

        # ---- conv3 + ReLU (3x3, stride 1, 1x1 output == full contraction), M = batch ----
        acc3 = jnp.zeros((n, LANE), f32)
        for i in range(oh2):
            acc3 = acc3 + jnp.dot(
                h2s[i * n:(i + 1) * n, :].astype(bf16),
                wpack_ref[o3 + i * ow2 * LANE:o3 + (i + 1) * ow2 * LANE, :],
                preferred_element_type=f32)
        h3 = jnp.maximum(acc3 + bias_ref[2:3, :], 0.0)                 # (n, 128) f32

        # ---- fc_mean: one (n,128)x(128,128) matmul, single lane-dense store ----
        mean = jnp.dot(h3.astype(bf16), wpack_ref[of:of + LANE, :],
                       preferred_element_type=f32) + bias_ref[3:4, :]
        mean_ref[...] = mean.astype(mean_ref.dtype)

    return kernel


# ------------------------------- JAX wrappers ---------------------------------


def _build_conv1_patches(x, dims):
    """Rearrange x (N,C,H,W) into the conv1 im2col matrix expected by the kernel.

    Row index = ow*(OH1*N) + (oh%2)*(OH1//2*N) + (oh//2)*N + n   (parity-split, batch-minor)
    Col index = c*KH1*KW1 + kh*KW1 + kw                          (torch OIHW flatten order)
    Only 4 static slices + stack + transpose (kernel 8 == 2 stride-4 blocks).
    TODO(synk): fold this rearrangement into the kernel (pass x through a VMEM BlockSpec)
    if xprof shows the standalone XLA op costing a visible fraction of the fused kernel.
    """
    n, c, h, w = x.shape
    s1, k1, oh1, ow1 = dims["S1"], dims["K1"], dims["OH1"], dims["OW1"]
    blocks = k1 // s1                                            # 2
    xb = x.reshape(n, c, h // s1, s1, w // s1, s1)               # n c hb r wb s
    slabs = [xb[:, :, a:a + oh1, :, b:b + ow1, :]                # (n, c, oh1, s1, ow1, s1)
             for a in range(blocks) for b in range(blocks)]
    st = jnp.stack(slabs, axis=0).reshape(
        blocks, blocks, n, c, oh1 // 2, 2, s1, ow1, s1)          # a b n c hb p r ow s
    cols = st.transpose(7, 5, 4, 2, 3, 0, 6, 1, 8)               # ow p hb n | c a r b s
    return cols.reshape(ow1 * oh1 * n, c * k1 * k1).astype(jnp.bfloat16)


def prepare_params(p):
    """One-time weight massaging into ONE packed bf16 weight matrix + ONE bias matrix."""
    bf16, f32 = jnp.bfloat16, jnp.float32

    oc1 = p["w1"].shape[0]
    k1 = p["w1"].shape[1] * p["w1"].shape[2] * p["w1"].shape[3]
    w1m = jnp.zeros((k1, LANE), f32).at[:, :oc1].set(p["w1"].reshape(oc1, k1).T)
    b1 = jnp.zeros((LANE,), f32).at[:oc1].set(p["b1"])

    oc2, ic2, kh2, kw2 = p["w2"].shape
    w2t = p["w2"].transpose(2, 3, 1, 0)                          # (kh, kw, ic, oc)
    w2m = jnp.zeros((kh2, kw2, LANE, LANE), f32).at[:, :, :ic2, :oc2].set(w2t)
    w2m = w2m.reshape(kh2 * kw2 * LANE, LANE)
    b2 = jnp.zeros((LANE,), f32).at[:oc2].set(p["b2"])

    oc3, ic3, kh3, kw3 = p["w3"].shape
    w3t = p["w3"].transpose(2, 3, 1, 0)
    w3m = jnp.zeros((kh3, kw3, LANE, LANE), f32).at[:, :, :ic3, :oc3].set(w3t)
    w3m = w3m.reshape(kh3 * kw3 * LANE, LANE)
    b3 = jnp.zeros((LANE,), f32).at[:oc3].set(p["b3"])

    act_dim = p["fc_w"].shape[0]
    fcw = jnp.zeros((LANE, LANE), f32).at[:oc3, :act_dim].set(p["fc_w"].T)
    fcb = jnp.zeros((LANE,), f32).at[:act_dim].set(p["fc_b"])

    wpack = jnp.concatenate([w1m, w2m, w3m, fcw], axis=0).astype(bf16)  # (3584, 128)
    bias_pack = jnp.stack([b1, b2, b3, fcb], axis=0)                    # (4, 128) f32
    std = jnp.exp(p["log_std"]).astype(f32)                             # input-independent
    return {"wpack": wpack, "bias_pack": bias_pack, "std": std}


def make_forward_fn(dims):
    n, a = dims["N"], dims["A"]
    kernel = _make_fused_kernel(dims)

    @jax.jit
    def forward(prepped, x):
        cols1 = _build_conv1_patches(x, dims)
        wpack, bias_pack = prepped["wpack"], prepped["bias_pack"]
        mean_pad = pl.pallas_call(
            kernel,
            out_shape=jax.ShapeDtypeStruct((n, LANE), jnp.float32),
            # TODO(synk): for v7x (2 TensorCores) make batch a "parallel" grid axis with
            # per-batch cols1 / mean blocks instead of grid=(1,).
            grid=(1,),
            in_specs=[
                pl.BlockSpec(cols1.shape, lambda i: (0, 0)),
                pl.BlockSpec(wpack.shape, lambda i: (0, 0)),
                pl.BlockSpec(bias_pack.shape, lambda i: (0, 0)),
            ],
            out_specs=pl.BlockSpec((n, LANE), lambda i: (0, 0)),
            scratch_shapes=[
                pltpu.VMEM((dims["OH1"] * n, dims["OW1"] * LANE), jnp.float32),  # h1
                pltpu.VMEM((dims["OH2"] * n, dims["OW2"] * LANE), jnp.float32),  # h2
            ],
            compiler_params=pltpu.CompilerParams(
                dimension_semantics=("arbitrary",),
                vmem_limit_bytes=32 * 1024 * 1024,
            ),
        )(cols1, wpack, bias_pack)
        return mean_pad[:, :a], prepped["std"]

    return forward


# ------------------------------ params / reference ----------------------------


def init_params(key, channels, act_dim, conv_output_dim):
    ks = jax.random.split(key, 8)
    p = {}
    p["w1"] = 0.05 * jax.random.normal(ks[0], (32, channels, 8, 8), jnp.float32)
    p["b1"] = 0.05 * jax.random.normal(ks[1], (32,), jnp.float32)
    p["w2"] = 0.05 * jax.random.normal(ks[2], (64, 32, 4, 4), jnp.float32)
    p["b2"] = 0.05 * jax.random.normal(ks[3], (64,), jnp.float32)
    p["w3"] = 0.05 * jax.random.normal(ks[4], (64, 64, 3, 3), jnp.float32)
    p["b3"] = 0.05 * jax.random.normal(ks[5], (64,), jnp.float32)
    p["fc_w"] = 0.05 * jax.random.normal(ks[6], (act_dim, conv_output_dim), jnp.float32)
    p["fc_b"] = 0.05 * jax.random.normal(ks[7], (act_dim,), jnp.float32)
    p["log_std"] = -0.5 * jnp.ones((act_dim,), jnp.float32)
    return p


def _reference_forward(params, x):
    dn = lax.conv_dimension_numbers(x.shape, params["w1"].shape, ("NCHW", "OIHW", "NCHW"))

    def conv(xx, w, b, s):
        y = lax.conv_general_dilated(xx, w, (s, s), "VALID", dimension_numbers=dn)
        return jnp.maximum(y + b[None, :, None, None], 0.0)

    h = conv(x, params["w1"], params["b1"], 4)
    h = conv(h, params["w2"], params["b2"], 2)
    h = conv(h, params["w3"], params["b3"], 1)
    flat = h.reshape(h.shape[0], -1)
    mean = flat @ params["fc_w"].T + params["fc_b"]
    return mean, jnp.exp(params["log_std"])


# ---------------------------------- main ---------------------------------------

if __name__ == "__main__":
    # obs_dim = (4, 36, 36): conv spatial 36 -> 8 -> 3 -> 1, conv_output_dim = 64
    batch, channels, height, width = 2, 4, 36, 36
    act_dim = 6
    o = _conv_out(_conv_out(_conv_out(height, 8, 4), 4, 2), 3, 1)
    conv_output_dim = 64 * o * o

    key = jax.random.PRNGKey(0)
    k_params, k_x = jax.random.split(key)
    params = init_params(k_params, channels, act_dim, conv_output_dim)
    x = jax.random.normal(k_x, (batch, channels, height, width), jnp.float32)

    dims = compute_dims(x.shape, params, act_dim)
    prepped = prepare_params(params)                   # one-time, outside the hot path
    forward = make_forward_fn(dims)

    mean, std = forward(prepped, x)
    mean = jax.block_until_ready(mean)
    std = jax.block_until_ready(std)

    assert mean.shape == (batch, act_dim) and std.shape == (act_dim,)

    ref_mean, ref_std = _reference_forward(params, x)
    assert jnp.allclose(mean, ref_mean, atol=2e-2, rtol=2e-2)
    assert jnp.allclose(std, ref_std, atol=1e-5, rtol=1e-5)

    print("KERNEL_OK")
</pallas_src>

<mosaic_0001>
module attributes {stable_mosaic.version = 11 : i64} {
  func.func @kernel(%arg0: i32, %arg1: memref<128x256xbf16, #tpu.memory_space<vmem>>, %arg2: memref<3584x128xbf16, #tpu.memory_space<vmem>>, %arg3: memref<4x128xf32, #tpu.memory_space<vmem>>, %arg4: memref<2x128xf32, #tpu.memory_space<vmem>>, %arg5: memref<16x1024xf32, #tpu.memory_space<vmem>>, %arg6: memref<6x384xf32, #tpu.memory_space<vmem>>) attributes {dimension_semantics = [#tpu.dimension_semantics<arbitrary>], iteration_bounds = array<i64: 1>, scalar_prefetch = 0 : i64, scratch_operands = 2 : i64, tpu.core_type = #tpu.core_type<tc>, window_params = [{pipeline_mode = #tpu.pipeline_mode<synchronous>, transform_indices = @transform_0, window_bounds = array<i64: 128, 256>}, {pipeline_mode = #tpu.pipeline_mode<synchronous>, transform_indices = @transform_1, window_bounds = array<i64: 3584, 128>}, {pipeline_mode = #tpu.pipeline_mode<synchronous>, transform_indices = @transform_2, window_bounds = array<i64: 4, 128>}, {pipeline_mode = #tpu.pipeline_mode<synchronous>, transform_indices = @transform_3, window_bounds = array<i64: 2, 128>}]} {
    %c0 = arith.constant 0 : index
    %c0_0 = arith.constant 0 : index
    %0 = vector.load %arg1[%c0, %c0_0] : memref<128x256xbf16, #tpu.memory_space<vmem>>, vector<128x256xbf16>
    %c0_1 = arith.constant 0 : index
    %c0_2 = arith.constant 0 : index
    %1 = vector.load %arg2[%c0_1, %c0_2] : memref<3584x128xbf16, #tpu.memory_space<vmem>>, vector<256x128xbf16>
    %cst = arith.constant dense<0.000000e+00> : vector<128x128xf32>
    %2 = tpu.matmul %0, %1, %cst {dimension_numbers = #tpu.dot_dimension_numbers<[1], [0], [0], [1], [0, 0, 1, 1], [], []>} : vector<128x256xbf16>, vector<256x128xbf16>, vector<128x128xf32> -> vector<128x128xf32>
    %c0_3 = arith.constant 0 : index
    %c0_4 = arith.constant 0 : index
    %3 = vector.load %arg3[%c0_3, %c0_4] : memref<4x128xf32, #tpu.memory_space<vmem>>, vector<1x128xf32>
    %4 = vector.broadcast %3 : vector<1x128xf32> to vector<128x128xf32>
    %5 = arith.addf %2, %4 : vector<128x128xf32>
    %cst_5 = arith.constant 0.000000e+00 : f32
    %6 = vector.broadcast %cst_5 : f32 to vector<128x128xf32>
    %7 = arith.maximumf %5, %6 : vector<128x128xf32>
    %8 = vector.extract_strided_slice %7 {offsets = [0, 0], sizes = [16, 128], strides = [1, 1]} : vector<128x128xf32> to vector<16x128xf32>
    %c0_6 = arith.constant 0 : index
    %c0_7 = arith.constant 0 : index
    %9 = vector.load %arg5[%c0_6, %c0_7] : memref<16x1024xf32, #tpu.memory_space<vmem>>, vector<16x128xf32>
    tpu.vector_store %arg5[%c0_6, %c0_7], %8 {strides = array<i32>} : memref<16x1024xf32, #tpu.memory_space<vmem>>, vector<16x128xf32>,
    %10 = vector.extract_strided_slice %7 {offsets = [16, 0], sizes = [16, 128], strides = [1, 1]} : vector<128x128xf32> to vector<16x128xf32>
    %c0_8 = arith.constant 0 : index
    %c128 = arith.constant 128 : index
    %11 = vector.load %arg5[%c0_8, %c128] : memref<16x1024xf32, #tpu.memory_space<vmem>>, vector<16x128xf32>
    tpu.vector_store %arg5[%c0_8, %c128], %10 {strides = array<i32>} : memref<16x1024xf32, #tpu.memory_space<vmem>>, vector<16x128xf32>,
    %12 = vector.extract_strided_slice %7 {offsets = [32, 0], sizes = [16, 128], strides = [1, 1]} : vector<128x128xf32> to vector<16x128xf32>
    %c0_9 = arith.constant 0 : index
    %c256 = arith.constant 256 : index
    %13 = vector.load %arg5[%c0_9, %c256] : memref<16x1024xf32, #tpu.memory_space<vmem>>, vector<16x128xf32>
    tpu.vector_store %arg5[%c0_9, %c256], %12 {strides = array<i32>} : memref<16x1024xf32, #tpu.memory_space<vmem>>, vector<16x128xf32>,
    %14 = vector.extract_strided_slice %7 {offsets = [48, 0], sizes = [16, 128], strides = [1, 1]} : vector<128x128xf32> to vector<16x128xf32>
    %c0_10 = arith.constant 0 : index
    %c384 = arith.constant 384 : index
    %15 = vector.load %arg5[%c0_10, %c384] : memref<16x1024xf32, #tpu.memory_space<vmem>>, vector<16x128xf32>
    tpu.vector_store %arg5[%c0_10, %c384], %14 {strides = array<i32>} : memref<16x1024xf32, #tpu.memory_space<vmem>>, vector<16x128xf32>,
    %16 = vector.extract_strided_slice %7 {offsets = [64, 0], sizes = [16, 128], strides = [1, 1]} : vector<128x128xf32> to vector<16x128xf32>
    %c0_11 = arith.constant 0 : index
    %c512 = arith.constant 512 : index
    %17 = vector.load %arg5[%c0_11, %c512] : memref<16x1024xf32, #tpu.memory_space<vmem>>, vector<16x128xf32>
    tpu.vector_store %arg5[%c0_11, %c512], %16 {strides = array<i32>} : memref<16x1024xf32, #tpu.memory_space<vmem>>, vector<16x128xf32>,
    %18 = vector.extract_strided_slice %7 {offsets = [80, 0], sizes = [16, 128], strides = [1, 1]} : vector<128x128xf32> to vector<16x128xf32>
    %c0_12 = arith.constant 0 : index
    %c640 = arith.constant 640 : index
    %19 = vector.load %arg5[%c0_12, %c640] : memref<16x1024xf32, #tpu.memory_space<vmem>>, vector<16x128xf32>
    tpu.vector_store %arg5[%c0_12, %c640], %18 {strides = array<i32>} : memref<16x1024xf32, #tpu.memory_space<vmem>>, vector<16x128xf32>,
    %20 = vector.extract_strided_slice %7 {offsets = [96, 0], sizes = [16, 128], strides = [1, 1]} : vector<128x128xf32> to vector<16x128xf32>
    %c0_13 = arith.constant 0 : index
    %c768 = arith.constant 768 : index
    %21 = vector.load %arg5[%c0_13, %c768] : memref<16x1024xf32, #tpu.memory_space<vmem>>, vector<16x128xf32>
    tpu.vector_store %arg5[%c0_13, %c768], %20 {strides = array<i32>} : memref<16x1024xf32, #tpu.memory_space<vmem>>, vector<16x128xf32>,
    %22 = vector.extract_strided_slice %7 {offsets = [112, 0], sizes = [16, 128], strides = [1, 1]} : vector<128x128xf32> to vector<16x128xf32>
    %c0_14 = arith.constant 0 : index
    %c896 = arith.constant 896 : index
    %23 = vector.load %arg5[%c0_14, %c896] : memref<16x1024xf32, #tpu.memory_space<vmem>>, vector<16x128xf32>
    tpu.vector_store %arg5[%c0_14, %c896], %22 {strides = array<i32>} : memref<16x1024xf32, #tpu.memory_space<vmem>>, vector<16x128xf32>,
    %c1 = arith.constant 1 : index
    %c0_15 = arith.constant 0 : index
    %24 = vector.load %arg3[%c1, %c0_15] : memref<4x128xf32, #tpu.memory_space<vmem>>, vector<1x128xf32>
    %c256_16 = arith.constant 256 : index
    %c0_17 = arith.constant 0 : index
    %25 = vector.load %arg2[%c256_16, %c0_17] : memref<3584x128xbf16, #tpu.memory_space<vmem>>, vector<2048x128xbf16>
    %c0_18 = arith.constant 0 : index
    %c0_19 = arith.constant 0 : index
    %26 = vector.load %arg5[%c0_18, %c0_19] : memref<16x1024xf32, #tpu.memory_space<vmem>>, vector<6x512xf32>
    %c8 = arith.constant 8 : index
    %c0_20 = arith.constant 0 : index
    %27 = vector.load %arg5[%c8, %c0_20] : memref<16x1024xf32, #tpu.memory_space<vmem>>, vector<6x512xf32>
    %c2 = arith.constant 2 : index
    %c0_21 = arith.constant 0 : index
    %28 = vector.load %arg5[%c2, %c0_21] : memref<16x1024xf32, #tpu.memory_space<vmem>>, vector<6x512xf32>
    %c10 = arith.constant 10 : index
    %c0_22 = arith.constant 0 : index
    %29 = vector.load %arg5[%c10, %c0_22] : memref<16x1024xf32, #tpu.memory_space<vmem>>, vector<6x512xf32>
    %30 = tpu.concatenate %26, %27, %28, %29 in 1 : vector<6x512xf32>, vector<6x512xf32>, vector<6x512xf32>, vector<6x512xf32> -> vector<6x2048xf32>
    %31 = arith.truncf %30 : vector<6x2048xf32> to vector<6x2048xbf16>
    %cst_23 = arith.constant dense<0.000000e+00> : vector<6x128xf32>
    %32 = tpu.matmul %31, %25, %cst_23 {dimension_numbers = #tpu.dot_dimension_numbers<[1], [0], [0], [1], [0, 0, 1, 1], [], []>} : vector<6x2048xbf16>, vector<2048x128xbf16>, vector<6x128xf32> -> vector<6x128xf32>
    %33 = vector.broadcast %24 : vector<1x128xf32> to vector<6x128xf32>
    %34 = arith.addf %32, %33 : vector<6x128xf32>
    %cst_24 = arith.constant 0.000000e+00 : f32
    %35 = vector.broadcast %cst_24 : f32 to vector<6x128xf32>
    %36 = arith.maximumf %34, %35 : vector<6x128xf32>
    %c0_25 = arith.constant 0 : index
    %c0_26 = arith.constant 0 : index
    %37 = vector.load %arg6[%c0_25, %c0_26] : memref<6x384xf32, #tpu.memory_space<vmem>>, vector<6x128xf32>
    tpu.vector_store %arg6[%c0_25, %c0_26], %36 {strides = array<i32>} : memref<6x384xf32, #tpu.memory_space<vmem>>, vector<6x128xf32>,
    %c0_27 = arith.constant 0 : index
    %c256_28 = arith.constant 256 : index
    %38 = vector.load %arg5[%c0_27, %c256_28] : memref<16x1024xf32, #tpu.memory_space<vmem>>, vector<6x512xf32>
    %c8_29 = arith.constant 8 : index
    %c256_30 = arith.constant 256 : index
    %39 = vector.load %arg5[%c8_29, %c256_30] : memref<16x1024xf32, #tpu.memory_space<vmem>>, vector<6x512xf32>
    %c2_31 = arith.constant 2 : index
    %c256_32 = arith.constant 256 : index
    %40 = vector.load %arg5[%c2_31, %c256_32] : memref<16x1024xf32, #tpu.memory_space<vmem>>, vector<6x512xf32>
    %c10_33 = arith.constant 10 : index
    %c256_34 = arith.constant 256 : index
    %41 = vector.load %arg5[%c10_33, %c256_34] : memref<16x1024xf32, #tpu.memory_space<vmem>>, vector<6x512xf32>
    %42 = tpu.concatenate %38, %39, %40, %41 in 1 : vector<6x512xf32>, vector<6x512xf32>, vector<6x512xf32>, vector<6x512xf32> -> vector<6x2048xf32>
    %43 = arith.truncf %42 : vector<6x2048xf32> to vector<6x2048xbf16>
    %cst_35 = arith.constant dense<0.000000e+00> : vector<6x128xf32>
    %44 = tpu.matmul %43, %25, %cst_35 {dimension_numbers = #tpu.dot_dimension_numbers<[1], [0], [0], [1], [0, 0, 1, 1], [], []>} : vector<6x2048xbf16>, vector<2048x128xbf16>, vector<6x128xf32> -> vector<6x128xf32>
    %45 = vector.broadcast %24 : vector<1x128xf32> to vector<6x128xf32>
    %46 = arith.addf %44, %45 : vector<6x128xf32>
    %cst_36 = arith.constant 0.000000e+00 : f32
    %47 = vector.broadcast %cst_36 : f32 to vector<6x128xf32>
    %48 = arith.maximumf %46, %47 : vector<6x128xf32>
    %c0_37 = arith.constant 0 : index
    %c128_38 = arith.constant 128 : index
    %49 = vector.load %arg6[%c0_37, %c128_38] : memref<6x384xf32, #tpu.memory_space<vmem>>, vector<6x128xf32>
    tpu.vector_store %arg6[%c0_37, %c128_38], %48 {strides = array<i32>} : memref<6x384xf32, #tpu.memory_space<vmem>>, vector<6x128xf32>,
    %c0_39 = arith.constant 0 : index
    %c512_40 = arith.constant 512 : index
    %50 = vector.load %arg5[%c0_39, %c512_40] : memref<16x1024xf32, #tpu.memory_space<vmem>>, vector<6x512xf32>
    %c8_41 = arith.constant 8 : index
    %c512_42 = arith.constant 512 : index
    %51 = vector.load %arg5[%c8_41, %c512_42] : memref<16x1024xf32, #tpu.memory_space<vmem>>, vector<6x512xf32>
    %c2_43 = arith.constant 2 : index
    %c512_44 = arith.constant 512 : index
    %52 = vector.load %arg5[%c2_43, %c512_44] : memref<16x1024xf32, #tpu.memory_space<vmem>>, vector<6x512xf32>
    %c10_45 = arith.constant 10 : index
    %c512_46 = arith.constant 512 : index
    %53 = vector.load %arg5[%c10_45, %c512_46] : memref<16x1024xf32, #tpu.memory_space<vmem>>, vector<6x512xf32>
    %54 = tpu.concatenate %50, %51, %52, %53 in 1 : vector<6x512xf32>, vector<6x512xf32>, vector<6x512xf32>, vector<6x512xf32> -> vector<6x2048xf32>
    %55 = arith.truncf %54 : vector<6x2048xf32> to vector<6x2048xbf16>
    %cst_47 = arith.constant dense<0.000000e+00> : vector<6x128xf32>
    %56 = tpu.matmul %55, %25, %cst_47 {dimension_numbers = #tpu.dot_dimension_numbers<[1], [0], [0], [1], [0, 0, 1, 1], [], []>} : vector<6x2048xbf16>, vector<2048x128xbf16>, vector<6x128xf32> -> vector<6x128xf32>
    %57 = vector.broadcast %24 : vector<1x128xf32> to vector<6x128xf32>
    %58 = arith.addf %56, %57 : vector<6x128xf32>
    %cst_48 = arith.constant 0.000000e+00 : f32
    %59 = vector.broadcast %cst_48 : f32 to vector<6x128xf32>
    %60 = arith.maximumf %58, %59 : vector<6x128xf32>
    %c0_49 = arith.constant 0 : index
    %c256_50 = arith.constant 256 : index
    %61 = vector.load %arg6[%c0_49, %c256_50] : memref<6x384xf32, #tpu.memory_space<vmem>>, vector<6x128xf32>
    tpu.vector_store %arg6[%c0_49, %c256_50], %60 {strides = array<i32>} : memref<6x384xf32, #tpu.memory_space<vmem>>, vector<6x128xf32>,
    %cst_51 = arith.constant 0.000000e+00 : f32
    %62 = vector.broadcast %cst_51 : f32 to vector<2x128xf32>
    %c0_52 = arith.constant 0 : index
    %c0_53 = arith.constant 0 : index
    %63 = vector.load %arg6[%c0_52, %c0_53] : memref<6x384xf32, #tpu.memory_space<vmem>>, vector<2x384xf32>
    %64 = arith.truncf %63 : vector<2x384xf32> to vector<2x384xbf16>
    %c2304 = arith.constant 2304 : index
    %c0_54 = arith.constant 0 : index
    %65 = vector.load %arg2[%c2304, %c0_54] : memref<3584x128xbf16, #tpu.memory_space<vmem>>, vector<384x128xbf16>
    %cst_55 = arith.constant dense<0.000000e+00> : vector<2x128xf32>
    %66 = tpu.matmul %64, %65, %cst_55 {dimension_numbers = #tpu.dot_dimension_numbers<[1], [0], [0], [1], [0, 0, 1, 1], [], []>} : vector<2x384xbf16>, vector<384x128xbf16>, vector<2x128xf32> -> vector<2x128xf32>
    %67 = arith.addf %62, %66 : vector<2x128xf32>
    %c2_56 = arith.constant 2 : index
    %c0_57 = arith.constant 0 : index
    %68 = vector.load %arg6[%c2_56, %c0_57] : memref<6x384xf32, #tpu.memory_space<vmem>>, vector<2x384xf32>
    %69 = arith.truncf %68 : vector<2x384xf32> to vector<2x384xbf16>
    %c2688 = arith.constant 2688 : index
    %c0_58 = arith.constant 0 : index
    %70 = vector.load %arg2[%c2688, %c0_58] : memref<3584x128xbf16, #tpu.memory_space<vmem>>, vector<384x128xbf16>
    %cst_59 = arith.constant dense<0.000000e+00> : vector<2x128xf32>
    %71 = tpu.matmul %69, %70, %cst_59 {dimension_numbers = #tpu.dot_dimension_numbers<[1], [0], [0], [1], [0, 0, 1, 1], [], []>} : vector<2x384xbf16>, vector<384x128xbf16>, vector<2x128xf32> -> vector<2x128xf32>
    %72 = arith.addf %67, %71 : vector<2x128xf32>
    %c4 = arith.constant 4 : index
    %c0_60 = arith.constant 0 : index
    %73 = vector.load %arg6[%c4, %c0_60] : memref<6x384xf32, #tpu.memory_space<vmem>>, vector<2x384xf32>
    %74 = arith.truncf %73 : vector<2x384xf32> to vector<2x384xbf16>
    %c3072 = arith.constant 3072 : index
    %c0_61 = arith.constant 0 : index
    %75 = vector.load %arg2[%c3072, %c0_61] : memref<3584x128xbf16, #tpu.memory_space<vmem>>, vector<384x128xbf16>
    %cst_62 = arith.constant dense<0.000000e+00> : vector<2x128xf32>
    %76 = tpu.matmul %74, %75, %cst_62 {dimension_numbers = #tpu.dot_dimension_numbers<[1], [0], [0], [1], [0, 0, 1, 1], [], []>} : vector<2x384xbf16>, vector<384x128xbf16>, vector<2x128xf32> -> vector<2x128xf32>
    %77 = arith.addf %72, %76 : vector<2x128xf32>
    %c2_63 = arith.constant 2 : index
    %c0_64 = arith.constant 0 : index
    %78 = vector.load %arg3[%c2_63, %c0_64] : memref<4x128xf32, #tpu.memory_space<vmem>>, vector<1x128xf32>
    %79 = vector.broadcast %78 : vector<1x128xf32> to vector<2x128xf32>
    %80 = arith.addf %77, %79 : vector<2x128xf32>
    %cst_65 = arith.constant 0.000000e+00 : f32
    %81 = vector.broadcast %cst_65 : f32 to vector<2x128xf32>
    %82 = arith.maximumf %80, %81 : vector<2x128xf32>
    %83 = arith.truncf %82 : vector<2x128xf32> to vector<2x128xbf16>
    %c3456 = arith.constant 3456 : index
    %c0_66 = arith.constant 0 : index
    %84 = vector.load %arg2[%c3456, %c0_66] : memref<3584x128xbf16, #tpu.memory_space<vmem>>, vector<128x128xbf16>
    %cst_67 = arith.constant dense<0.000000e+00> : vector<2x128xf32>
    %85 = tpu.matmul %83, %84, %cst_67 {dimension_numbers = #tpu.dot_dimension_numbers<[1], [0], [0], [1], [0, 0, 1, 1], [], []>} : vector<2x128xbf16>, vector<128x128xbf16>, vector<2x128xf32> -> vector<2x128xf32>
    %c3 = arith.constant 3 : index
    %c0_68 = arith.constant 0 : index
    %86 = vector.load %arg3[%c3, %c0_68] : memref<4x128xf32, #tpu.memory_space<vmem>>, vector<1x128xf32>
    %87 = vector.broadcast %86 : vector<1x128xf32> to vector<2x128xf32>
    %88 = arith.addf %85, %87 : vector<2x128xf32>
    %c0_69 = arith.constant 0 : index
    %c0_70 = arith.constant 0 : index
    %89 = vector.load %arg4[%c0_69, %c0_70] : memref<2x128xf32, #tpu.memory_space<vmem>>, vector<2x128xf32>
    tpu.vector_store %arg4[%c0_69, %c0_70], %88 {strides = array<i32>} : memref<2x128xf32, #tpu.memory_space<vmem>>, vector<2x128xf32>,
    return
  }
  func.func @transform_0(%arg0: i32) -> (i32, i32) {
    %c0_i32 = arith.constant 0 : i32
    %c0_i32_0 = arith.constant 0 : i32
    %c0_i32_1 = arith.constant 0 : i32
    return %c0_i32, %c0_i32_0 : i32, i32
  }
  func.func @transform_1(%arg0: i32) -> (i32, i32) {
    %c0_i32 = arith.constant 0 : i32
    %c0_i32_0 = arith.constant 0 : i32
    %c0_i32_1 = arith.constant 0 : i32
    return %c0_i32, %c0_i32_0 : i32, i32
  }
  func.func @transform_2(%arg0: i32) -> (i32, i32) {
    %c0_i32 = arith.constant 0 : i32
    %c0_i32_0 = arith.constant 0 : i32
    %c0_i32_1 = arith.constant 0 : i32
    return %c0_i32, %c0_i32_0 : i32, i32
  }
  func.func @transform_3(%arg0: i32) -> (i32, i32) {
    %c0_i32 = arith.constant 0 : i32
    %c0_i32_0 = arith.constant 0 : i32
    %c0_i32_1 = arith.constant 0 : i32
    return %c0_i32, %c0_i32_0 : i32, i32
  }
}

</mosaic_0001>

<llo_original>
// kernel: forward.1
$region0: #{forward.1}
  #allocation0 [shape = 'u32[]', space=smem, size = 0x4, offset = 0x4, fixed_abs, tag = 'smem constant byte address 0x4 - core index']
  #allocation1 [shape = 'u32[144,128]{1,0:T(1,128)}', space=vmem, size = 0x12000, scoped, tag = 'internal scratch']
  #allocation2 [shape = 'f32[16,1024]{1,0:T(8,128)}', space=vmem, size = 0x10000, scoped, tag = 'scratch operand']
  #allocation3 [shape = 'f32[6,384]{1,0:T(8,128)}', space=vmem, size = 0x3000, scoped, tag = 'scratch operand']
  %s0 = inlined_call_operand.vmem [shape: bf16[128,256], index: 0, kind: input, shape index: {}]
  %s1 = inlined_call_operand.vmem [shape: bf16[3584,128], index: 1, kind: input, shape index: {}]
  %s2 = inlined_call_operand.vmem [shape: f32[4,128], index: 2, kind: input, shape index: {}]
  %s3 = inlined_call_operand.hbm [shape: f32[2,128], index: 3, kind: output, shape index: {}]
  %s4 = sld [smem:[#allocation0]]
  $region22: #{forward.1} parent=0
    _
  %s6 = ssub.s32 1, %s4
  %s7 = scalar_select 0, %s6, %s4
  $region1: #{forward.1} parent=0
    #allocation4 [shape = 'u8[1024]{0}', space=vmem, size = 0x400, scoped, tag = 'output window, operand 0, single buffered']
    #allocation5 [shape = 's32[1]{0}', space=sflag, size = 0x4, scoped, tag = 'scoped memory for forward.1']
    %8 = vsyncpa [#allocation5], 0
    // Predicated region
    $region2: #{forward.1} parent=1 // pred_check
      _
    $region3: #{forward.1} parent=1 // pred_check_branch
      %10 = sbr.rel (0) target = $region5
    $region4: #{forward.1} parent=1 // pred_region
      _
    $region5: #{forward.1} parent=1 // pred_fallthru
      _
    // Predicated region
    $region6: #{forward.1} parent=1 // pred_check
      _
    $region7: #{forward.1} parent=1 // pred_check_branch
      %12 = sbr.rel (0) target = $region9
    $region8: #{forward.1} parent=1 // pred_region
      _
    $region9: #{forward.1} parent=1 // pred_fallthru
      _
    // Predicated region
    $region10: #{forward.1} parent=1 // pred_check
      _
    $region11: #{forward.1} parent=1 // pred_check_branch
      %14 = sbr.rel (0) target = $region13
    $region12: #{forward.1} parent=1 // pred_region
      _
    $region13: #{forward.1} parent=1 // pred_fallthru
      _
    %v16 = vld [vmem:[%s0] sm:$0xff]
    %v17 = vld [vmem:[%s0 + $0x8] sm:$0xff]
    %v18 = vld [vmem:[%s0 + $0x10] sm:$0xff]
    %v19 = vld [vmem:[%s0 + $0x18] sm:$0xff]
    %v20 = vld [vmem:[%s0 + $0x20] sm:$0xff]
    %v21 = vld [vmem:[%s0 + $0x28] sm:$0xff]
    %v22 = vld [vmem:[%s0 + $0x30] sm:$0xff]
    %v23 = vld [vmem:[%s0 + $0x38] sm:$0xff]
    %v24 = vld [vmem:[%s0 + $0x40] sm:$0xff]
    %v25 = vld [vmem:[%s0 + $0x48] sm:$0xff]
    %v26 = vld [vmem:[%s0 + $0x50] sm:$0xff]
    %v27 = vld [vmem:[%s0 + $0x58] sm:$0xff]
    %v28 = vld [vmem:[%s0 + $0x60] sm:$0xff]
    %v29 = vld [vmem:[%s0 + $0x68] sm:$0xff]
    %v30 = vld [vmem:[%s0 + $0x70] sm:$0xff]
    %v31 = vld [vmem:[%s0 + $0x78] sm:$0xff]
    %v32 = vld [vmem:[%s1] sm:$0xf]
    %v33 = vld [vmem:[%s1 + $0x4] sm:$0xf]
    %v34 = vld [vmem:[%s1 + $0x8] sm:$0xf]
    %v35 = vld [vmem:[%s1 + $0xc] sm:$0xf]
    %v36 = vld [vmem:[%s1 + $0x10] sm:$0xf]
    %v37 = vld [vmem:[%s1 + $0x14] sm:$0xf]
    %v38 = vld [vmem:[%s1 + $0x18] sm:$0xf]
    %v39 = vld [vmem:[%s1 + $0x1c] sm:$0xf]
    %v40 = vld [vmem:[%s1 + $0x20] sm:$0xf]
    %v41 = vld [vmem:[%s1 + $0x24] sm:$0xf]
    %v42 = vld [vmem:[%s1 + $0x28] sm:$0xf]
    %v43 = vld [vmem:[%s1 + $0x2c] sm:$0xf]
    %v44 = vld [vmem:[%s1 + $0x30] sm:$0xf]
    %v45 = vld [vmem:[%s1 + $0x34] sm:$0xf]
    %v46 = vld [vmem:[%s1 + $0x38] sm:$0xf]
    %v47 = vld [vmem:[%s1 + $0x3c] sm:$0xf]
    %v48 = vld [vmem:[%s1 + $0x40] sm:$0xf]
    %v49 = vld [vmem:[%s1 + $0x44] sm:$0xf]
    %v50 = vld [vmem:[%s1 + $0x48] sm:$0xf]
    %v51 = vld [vmem:[%s1 + $0x4c] sm:$0xf]
    %v52 = vld [vmem:[%s1 + $0x50] sm:$0xf]
    %v53 = vld [vmem:[%s1 + $0x54] sm:$0xf]
    %v54 = vld [vmem:[%s1 + $0x58] sm:$0xf]
    %v55 = vld [vmem:[%s1 + $0x5c] sm:$0xf]
    %v56 = vld [vmem:[%s1 + $0x60] sm:$0xf]
    %v57 = vld [vmem:[%s1 + $0x64] sm:$0xf]
    %v58 = vld [vmem:[%s1 + $0x68] sm:$0xf]
    %v59 = vld [vmem:[%s1 + $0x6c] sm:$0xf]
    %v60 = vld [vmem:[%s1 + $0x70] sm:$0xf]
    %v61 = vld [vmem:[%s1 + $0x74] sm:$0xf]
    %v62 = vld [vmem:[%s1 + $0x78] sm:$0xf]
    %v63 = vld [vmem:[%s1 + $0x7c] sm:$0xf]
    %v64 = vld [vmem:[%s2] sm:$0x1]
    %v65 = vlaneseq
    %v66 = vshrl.u32 %v65, 7
    %v67 = vsub.s32 0, %v66
    %v68 = vrot.slane %v64, %v67
    %v85 = vunpack.c.l.b16 %v16
    %v86 = vunpack.c.h.b16 %v16
    %v87 = vunpack.c.l.b16 %v17
    %v88 = vunpack.c.h.b16 %v17
    %v89 = vunpack.c.l.b16 %v18
    %v90 = vunpack.c.h.b16 %v18
    %v91 = vunpack.c.l.b16 %v19
    %v92 = vunpack.c.h.b16 %v19
    %v93 = vunpack.c.l.b16 %v20
    %v94 = vunpack.c.h.b16 %v20
    %v95 = vunpack.c.l.b16 %v21
    %v96 = vunpack.c.h.b16 %v21
    %v97 = vunpack.c.l.b16 %v22
    %v98 = vunpack.c.h.b16 %v22
    %v99 = vunpack.c.l.b16 %v23
    %v100 = vunpack.c.h.b16 %v23
    %v101 = vunpack.c.l.b16 %v24
    %v102 = vunpack.c.h.b16 %v24
    %v103 = vunpack.c.l.b16 %v25
    %v104 = vunpack.c.h.b16 %v25
    %v105 = vunpack.c.l.b16 %v26
    %v106 = vunpack.c.h.b16 %v26
    %v107 = vunpack.c.l.b16 %v27
    %v108 = vunpack.c.h.b16 %v27
    %v109 = vunpack.c.l.b16 %v28
    %v110 = vunpack.c.h.b16 %v28
    %v111 = vunpack.c.l.b16 %v29
    %v112 = vunpack.c.h.b16 %v29
    %v113 = vunpack.c.l.b16 %v30
    %v114 = vunpack.c.h.b16 %v30
    %v115 = vunpack.c.l.b16 %v31
    %v116 = vunpack.c.h.b16 %v31
    %v117 = vpack.c.b16 %v87, %v85
    %v118 = vpack.c.b16 %v88, %v86
    %v119 = vpack.c.b16 %v91, %v89
    %v120 = vpack.c.b16 %v92, %v90
    %v121 = vpack.c.b16 %v95, %v93
    %v122 = vpack.c.b16 %v96, %v94
    %v123 = vpack.c.b16 %v99, %v97
    %v124 = vpack.c.b16 %v100, %v98
    %v125 = vpack.c.b16 %v103, %v101
    %v126 = vpack.c.b16 %v104, %v102
    %v127 = vpack.c.b16 %v107, %v105
    %v128 = vpack.c.b16 %v108, %v106
    %v129 = vpack.c.b16 %v111, %v109
    %v130 = vpack.c.b16 %v112, %v110
    %v131 = vpack.c.b16 %v115, %v113
    %v132 = vpack.c.b16 %v116, %v114
    %v181 = vunpack.c.l.b16 %v32
    %v182 = vunpack.c.l.b16 %v33
    %v183 = vunpack.c.l.b16 %v34
    %v184 = vunpack.c.l.b16 %v35
    %v185 = vunpack.c.l.b16 %v36
    %v186 = vunpack.c.l.b16 %v37
    %v187 = vunpack.c.l.b16 %v38
    %v188 = vunpack.c.l.b16 %v39
    %v189 = vunpack.c.l.b16 %v40
    %v190 = vunpack.c.l.b16 %v41
    %v191 = vunpack.c.l.b16 %v42
    %v192 = vunpack.c.l.b16 %v43
    %v193 = vunpack.c.l.b16 %v44
    %v194 = vunpack.c.l.b16 %v45
    %v195 = vunpack.c.l.b16 %v46
    %v196 = vunpack.c.l.b16 %v47
    %v197 = vunpack.c.l.b16 %v48
    %v198 = vunpack.c.l.b16 %v49
    %v199 = vunpack.c.l.b16 %v50
    %v200 = vunpack.c.l.b16 %v51
    %v201 = vunpack.c.l.b16 %v52
    %v202 = vunpack.c.l.b16 %v53
    %v203 = vunpack.c.l.b16 %v54
    %v204 = vunpack.c.l.b16 %v55
    %v205 = vunpack.c.l.b16 %v56
    %v206 = vunpack.c.l.b16 %v57
    %v207 = vunpack.c.l.b16 %v58
    %v208 = vunpack.c.l.b16 %v59
    %v209 = vunpack.c.l.b16 %v60
    %v210 = vunpack.c.l.b16 %v61
    %v211 = vunpack.c.l.b16 %v62
    %v212 = vunpack.c.l.b16 %v63
    %v213 = vpack.c.b16 %v182, %v181
    %v214 = vpack.c.b16 %v184, %v183
    %v215 = vpack.c.b16 %v186, %v185
    %v216 = vpack.c.b16 %v188, %v187
    %v217 = vpack.c.b16 %v190, %v189
    %v218 = vpack.c.b16 %v192, %v191
    %v219 = vpack.c.b16 %v194, %v193
    %v220 = vpack.c.b16 %v196, %v195
    %v221 = vpack.c.b16 %v198, %v197
    %v222 = vpack.c.b16 %v200, %v199
    %v223 = vpack.c.b16 %v202, %v201
    %v224 = vpack.c.b16 %v204, %v203
    %v225 = vpack.c.b16 %v206, %v205
    %v226 = vpack.c.b16 %v208, %v207
    %v227 = vpack.c.b16 %v210, %v209
    %v228 = vpack.c.b16 %v212, %v211
    %245 = vmatprep.subr.bf16.mxu0 0
    %246 = vmatpush1.bf16.msra.mxu0 %v220
    %247 = vmatprep.subr.bf16.mxu0 0
    %248 = vmatpush1.bf16.msra.mxu0 %v219
    %249 = vmatprep.subr.bf16.mxu0 0
    %250 = vmatpush1.bf16.msra.mxu0 %v218
    %251 = vmatprep.subr.bf16.mxu0 0
    %252 = vmatpush1.bf16.msra.mxu0 %v217
    %253 = vmatprep.subr.bf16.mxu0 0
    %254 = vmatpush1.bf16.msra.mxu0 %v216
    %255 = vmatprep.subr.bf16.mxu0 0
    %256 = vmatpush1.bf16.msra.mxu0 %v215
    %257 = vmatprep.subr.bf16.mxu0 0
    %258 = vmatpush1.bf16.msra.mxu0 %v214
    %259 = vmatprep.subr.bf16.mxu0 0
    %260 = vmatpush1.bf16.msra.mxu0 %v213
    %261 = vmatprep.subr.bf16.mxu0 0
    %262 = vmatpush2.bf16.msra.mxu0 %v228
    %263 = vmatprep.subr.bf16.mxu0 0
    %264 = vmatpush2.bf16.msra.mxu0 %v227
    %265 = vmatprep.subr.bf16.mxu0 0
    %266 = vmatpush2.bf16.msra.mxu0 %v226
    %267 = vmatprep.subr.bf16.mxu0 0
    %268 = vmatpush2.bf16.msra.mxu0 %v225
    %269 = vmatprep.subr.bf16.mxu0 0
    %270 = vmatpush2.bf16.msra.mxu0 %v224
    %271 = vmatprep.subr.bf16.mxu0 0
    %272 = vmatpush2.bf16.msra.mxu0 %v223
    %273 = vmatprep.subr.bf16.mxu0 0
    %274 = vmatpush2.bf16.msra.mxu0 %v222
    %275 = vmatprep.subr.bf16.mxu0 0
    %276 = vmatpush2.bf16.msra.mxu0 %v221
    %277 = vmatprep.mubr.bf16.mxu0 %v118
    %278 = vmatmul.mubr.bf16.gmra.mxu0 %v117
    %v279 = vpop.f32.mrf.mxu0
    %v280 = vadd.f32 %v68, %v279
    %v281 = vpop.f32.mrf.mxu0
    %v282 = vpop.f32.mrf.mxu0
    %v283 = vadd.f32 %v68, %v282
    %v284 = vpop.f32.mrf.mxu0
    %285 = vmatprep.mubr.bf16.mxu0 %v120
    %286 = vmatmul.mubr.bf16.gmra.mxu0 %v119
    %v287 = vpop.f32.mrf.mxu0
    %v288 = vadd.f32 %v68, %v287
    %v289 = vpop.f32.mrf.mxu0
    %v290 = vpop.f32.mrf.mxu0
    %v291 = vadd.f32 %v68, %v290
    %v292 = vpop.f32.mrf.mxu0
    %293 = vmatprep.mubr.bf16.mxu0 %v122
    %294 = vmatmul.mubr.bf16.gmra.mxu0 %v121
    %v295 = vpop.f32.mrf.mxu0
    %v296 = vadd.f32 %v68, %v295
    %v297 = vpop.f32.mrf.mxu0
    %v298 = vpop.f32.mrf.mxu0
    %v299 = vadd.f32 %v68, %v298
    %v300 = vpop.f32.mrf.mxu0
    %301 = vmatprep.mubr.bf16.mxu0 %v124
    %302 = vmatmul.mubr.bf16.gmra.mxu0 %v123
    %v303 = vpop.f32.mrf.mxu0
    %v304 = vadd.f32 %v68, %v303
    %v305 = vpop.f32.mrf.mxu0
    %v306 = vpop.f32.mrf.mxu0
    %v307 = vadd.f32 %v68, %v306
    %v308 = vpop.f32.mrf.mxu0
    %309 = vmatprep.mubr.bf16.mxu0 %v126
    %310 = vmatmul.mubr.bf16.gmra.mxu0 %v125
    %v311 = vpop.f32.mrf.mxu0
    %v312 = vadd.f32 %v68, %v311
    %v313 = vpop.f32.mrf.mxu0
    %v314 = vpop.f32.mrf.mxu0
    %v315 = vadd.f32 %v68, %v314
    %v316 = vpop.f32.mrf.mxu0
    %317 = vmatprep.mubr.bf16.mxu0 %v128
    %318 = vmatmul.mubr.bf16.gmra.mxu0 %v127
    %v319 = vpop.f32.mrf.mxu0
    %v320 = vadd.f32 %v68, %v319
    %v321 = vpop.f32.mrf.mxu0
    %v322 = vpop.f32.mrf.mxu0
    %v323 = vadd.f32 %v68, %v322
    %v324 = vpop.f32.mrf.mxu0
    %325 = vmatprep.mubr.bf16.mxu0 %v130
    %326 = vmatmul.mubr.bf16.gmra.mxu0 %v129
    %v327 = vpop.f32.mrf.mxu0
    %v328 = vadd.f32 %v68, %v327
    %v329 = vpop.f32.mrf.mxu0
    %v330 = vpop.f32.mrf.mxu0
    %v331 = vadd.f32 %v68, %v330
    %v332 = vpop.f32.mrf.mxu0
    %333 = vmatprep.mubr.bf16.mxu0 %v132
    %334 = vmatmul.mubr.bf16.gmra.mxu0 %v131
    %v335 = vpop.f32.mrf.mxu0
    %v336 = vadd.f32 %v68, %v335
    %v337 = vpop.f32.mrf.mxu0
    %v338 = vpop.f32.mrf.mxu0
    %v339 = vadd.f32 %v68, %v338
    %v340 = vpop.f32.mrf.mxu0
    %341 = vdwg.mxu0
    %v342 = vmax.f32 %v280, 0.0
    %v343 = vmax.f32 %v283, 0.0
    %v344 = vmax.f32 %v288, 0.0
    %v345 = vmax.f32 %v291, 0.0
    %v346 = vmax.f32 %v296, 0.0
    %v347 = vmax.f32 %v299, 0.0
    %v348 = vmax.f32 %v304, 0.0
    %v349 = vmax.f32 %v307, 0.0
    %v350 = vmax.f32 %v312, 0.0
    %v351 = vmax.f32 %v315, 0.0
    %v352 = vmax.f32 %v320, 0.0
    %v353 = vmax.f32 %v323, 0.0
    %v354 = vmax.f32 %v328, 0.0
    %v355 = vmax.f32 %v331, 0.0
    %v356 = vmax.f32 %v336, 0.0
    %v357 = vmax.f32 %v339, 0.0
    %358 = vst [vmem:[#allocation2] sm:$0xff] %v342
    %359 = vst [vmem:[#allocation2 + $0x40] sm:$0xff] %v343
    %360 = vst [vmem:[#allocation2 + $0x8] sm:$0xff] %v344
    %361 = vst [vmem:[#allocation2 + $0x48] sm:$0xff] %v345
    %362 = vst [vmem:[#allocation2 + $0x10] sm:$0xff] %v346
    %363 = vst [vmem:[#allocation2 + $0x50] sm:$0xff] %v347
    %364 = vst [vmem:[#allocation2 + $0x18] sm:$0xff] %v348
    %365 = vst [vmem:[#allocation2 + $0x58] sm:$0xff] %v349
    %366 = vst [vmem:[#allocation2 + $0x20] sm:$0xff] %v350
    %367 = vst [vmem:[#allocation2 + $0x60] sm:$0xff] %v351
    %368 = vst [vmem:[#allocation2 + $0x28] sm:$0xff] %v352
    %369 = vst [vmem:[#allocation2 + $0x68] sm:$0xff] %v353
    %370 = vst [vmem:[#allocation2 + $0x30] sm:$0xff] %v354
    %371 = vst [vmem:[#allocation2 + $0x70] sm:$0xff] %v355
    %372 = vst [vmem:[#allocation2 + $0x38] sm:$0xff] %v356
    %373 = vst [vmem:[#allocation2 + $0x78] sm:$0xff] %v357
    %v374 = vld [vmem:[%s2 + $0x1] sm:$0x1]
    %v375 = vld [vmem:[%s1 + $0x80] sm:$0xf]
    %v376 = vld [vmem:[%s1 + $0x84] sm:$0xf]
    %v377 = vld [vmem:[%s1 + $0x88] sm:$0xf]
    %v378 = vld [vmem:[%s1 + $0x8c] sm:$0xf]
    %v379 = vld [vmem:[%s1 + $0x90] sm:$0xf]
    %v380 = vld [vmem:[%s1 + $0x94] sm:$0xf]
    %v381 = vld [vmem:[%s1 + $0x98] sm:$0xf]
    %v382 = vld [vmem:[%s1 + $0x9c] sm:$0xf]
    %v383 = vld [vmem:[%s1 + $0xa0] sm:$0xf]
    %v384 = vld [vmem:[%s1 + $0xa4] sm:$0xf]
    %v385 = vld [vmem:[%s1 + $0xa8] sm:$0xf]
    %v386 = vld [vmem:[%s1 + $0xac] sm:$0xf]
    %v387 = vld [vmem:[%s1 + $0xb0] sm:$0xf]
    %v388 = vld [vmem:[%s1 + $0xb4] sm:$0xf]
    %v389 = vld [vmem:[%s1 + $0xb8] sm:$0xf]
    %v390 = vld [vmem:[%s1 + $0xbc] sm:$0xf]
    %v391 = vld [vmem:[%s1 + $0xc0] sm:$0xf]
    %v392 = vld [vmem:[%s1 + $0xc4] sm:$0xf]
    %v393 = vld [vmem:[%s1 + $0xc8] sm:$0xf]
    %v394 = vld [vmem:[%s1 + $0xcc] sm:$0xf]
    %v395 = vld [vmem:[%s1 + $0xd0] sm:$0xf]
    %v396 = vld [vmem:[%s1 + $0xd4] sm:$0xf]
    %v397 = vld [vmem:[%s1 + $0xd8] sm:$0xf]
    %v398 = vld [vmem:[%s1 + $0xdc] sm:$0xf]
    %v399 = vld [vmem:[%s1 + $0xe0] sm:$0xf]
    %v400 = vld [vmem:[%s1 + $0xe4] sm:$0xf]
    %v401 = vld [vmem:[%s1 + $0xe8] sm:$0xf]
    %v402 = vld [vmem:[%s1 + $0xec] sm:$0xf]
    %v403 = vld [vmem:[%s1 + $0xf0] sm:$0xf]
    %v404 = vld [vmem:[%s1 + $0xf4] sm:$0xf]
    %v405 = vld [vmem:[%s1 + $0xf8] sm:$0xf]
    %v406 = vld [vmem:[%s1 + $0xfc] sm:$0xf]
    %v407 = vld [vmem:[%s1 + $0x100] sm:$0xf]
    %v408 = vld [vmem:[%s1 + $0x104] sm:$0xf]
    %v409 = vld [vmem:[%s1 + $0x108] sm:$0xf]
    %v410 = vld [vmem:[%s1 + $0x10c] sm:$0xf]
    %v411 = vld [vmem:[%s1 + $0x110] sm:$0xf]
    %v412 = vld [vmem:[%s1 + $0x114] sm:$0xf]
    %v413 = vld [vmem:[%s1 + $0x118] sm:$0xf]
    %v414 = vld [vmem:[%s1 + $0x11c] sm:$0xf]
    %v415 = vld [vmem:[%s1 + $0x120] sm:$0xf]
    %v416 = vld [vmem:[%s1 + $0x124] sm:$0xf]
    %v417 = vld [vmem:[%s1 + $0x128] sm:$0xf]
    %v418 = vld [vmem:[%s1 + $0x12c] sm:$0xf]
    %v419 = vld [vmem:[%s1 + $0x130] sm:$0xf]
    %v420 = vld [vmem:[%s1 + $0x134] sm:$0xf]
    %v421 = vld [vmem:[%s1 + $0x138] sm:$0xf]
    %v422 = vld [vmem:[%s1 + $0x13c] sm:$0xf]
    %v423 = vld [vmem:[%s1 + $0x140] sm:$0xf]
    %v424 = vld [vmem:[%s1 + $0x144] sm:$0xf]
    %v425 = vld [vmem:[%s1 + $0x148] sm:$0xf]
    %v426 = vld [vmem:[%s1 + $0x14c] sm:$0xf]
    %v427 = vld [vmem:[%s1 + $0x150] sm:$0xf]
    %v428 = vld [vmem:[%s1 + $0x154] sm:$0xf]
    %v429 = vld [vmem:[%s1 + $0x158] sm:$0xf]
    %v430 = vld [vmem:[%s1 + $0x15c] sm:$0xf]
    %v431 = vld [vmem:[%s1 + $0x160] sm:$0xf]
    %v432 = vld [vmem:[%s1 + $0x164] sm:$0xf]
    %v433 = vld [vmem:[%s1 + $0x168] sm:$0xf]
    %v434 = vld [vmem:[%s1 + $0x16c] sm:$0xf]
    %v435 = vld [vmem:[%s1 + $0x170] sm:$0xf]
    %v436 = vld [vmem:[%s1 + $0x174] sm:$0xf]
    %v437 = vld [vmem:[%s1 + $0x178] sm:$0xf]
    %v438 = vld [vmem:[%s1 + $0x17c] sm:$0xf]
    %v439 = vld [vmem:[%s1 + $0x180] sm:$0xf]
    %v440 = vld [vmem:[%s1 + $0x184] sm:$0xf]
    %v441 = vld [vmem:[%s1 + $0x188] sm:$0xf]
    %v442 = vld [vmem:[%s1 + $0x18c] sm:$0xf]
    %v443 = vld [vmem:[%s1 + $0x190] sm:$0xf]
    %v444 = vld [vmem:[%s1 + $0x194] sm:$0xf]
    %v445 = vld [vmem:[%s1 + $0x198] sm:$0xf]
    %v446 = vld [vmem:[%s1 + $0x19c] sm:$0xf]
    %v447 = vld [vmem:[%s1 + $0x1a0] sm:$0xf]
    %v448 = vld [vmem:[%s1 + $0x1a4] sm:$0xf]
    %v449 = vld [vmem:[%s1 + $0x1a8] sm:$0xf]
    %v450 = vld [vmem:[%s1 + $0x1ac] sm:$0xf]
    %v451 = vld [vmem:[%s1 + $0x1b0] sm:$0xf]
    %v452 = vld [vmem:[%s1 + $0x1b4] sm:$0xf]
    %v453 = vld [vmem:[%s1 + $0x1b8] sm:$0xf]
    %v454 = vld [vmem:[%s1 + $0x1bc] sm:$0xf]
    %v455 = vld [vmem:[%s1 + $0x1c0] sm:$0xf]
    %v456 = vld [vmem:[%s1 + $0x1c4] sm:$0xf]
    %v457 = vld [vmem:[%s1 + $0x1c8] sm:$0xf]
    %v458 = vld [vmem:[%s1 + $0x1cc] sm:$0xf]
    %v459 = vld [vmem:[%s1 + $0x1d0] sm:$0xf]
    %v460 = vld [vmem:[%s1 + $0x1d4] sm:$0xf]
    %v461 = vld [vmem:[%s1 + $0x1d8] sm:$0xf]
    %v462 = vld [vmem:[%s1 + $0x1dc] sm:$0xf]
    %v463 = vld [vmem:[%s1 + $0x1e0] sm:$0xf]
    %v464 = vld [vmem:[%s1 + $0x1e4] sm:$0xf]
    %v465 = vld [vmem:[%s1 + $0x1e8] sm:$0xf]
    %v466 = vld [vmem:[%s1 + $0x1ec] sm:$0xf]
    %v467 = vld [vmem:[%s1 + $0x1f0] sm:$0xf]
    %v468 = vld [vmem:[%s1 + $0x1f4] sm:$0xf]
    %v469 = vld [vmem:[%s1 + $0x1f8] sm:$0xf]
    %v470 = vld [vmem:[%s1 + $0x1fc] sm:$0xf]
    %v471 = vld [vmem:[%s1 + $0x200] sm:$0xf]
    %v472 = vld [vmem:[%s1 + $0x204] sm:$0xf]
    %v473 = vld [vmem:[%s1 + $0x208] sm:$0xf]
    %v474 = vld [vmem:[%s1 + $0x20c] sm:$0xf]
    %v475 = vld [vmem:[%s1 + $0x210] sm:$0xf]
    %v476 = vld [vmem:[%s1 + $0x214] sm:$0xf]
    %v477 = vld [vmem:[%s1 + $0x218] sm:$0xf]
    %v478 = vld [vmem:[%s1 + $0x21c] sm:$0xf]
    %v479 = vld [vmem:[%s1 + $0x220] sm:$0xf]
    %v480 = vld [vmem:[%s1 + $0x224] sm:$0xf]
    %v481 = vld [vmem:[%s1 + $0x228] sm:$0xf]
    %v482 = vld [vmem:[%s1 + $0x22c] sm:$0xf]
    %v483 = vld [vmem:[%s1 + $0x230] sm:$0xf]
    %v484 = vld [vmem:[%s1 + $0x234] sm:$0xf]
    %v485 = vld [vmem:[%s1 + $0x238] sm:$0xf]
    %v486 = vld [vmem:[%s1 + $0x23c] sm:$0xf]
    %v487 = vld [vmem:[%s1 + $0x240] sm:$0xf]
    %v488 = vld [vmem:[%s1 + $0x244] sm:$0xf]
    %v489 = vld [vmem:[%s1 + $0x248] sm:$0xf]
    %v490 = vld [vmem:[%s1 + $0x24c] sm:$0xf]
    %v491 = vld [vmem:[%s1 + $0x250] sm:$0xf]
    %v492 = vld [vmem:[%s1 + $0x254] sm:$0xf]
    %v493 = vld [vmem:[%s1 + $0x258] sm:$0xf]
    %v494 = vld [vmem:[%s1 + $0x25c] sm:$0xf]
    %v495 = vld [vmem:[%s1 + $0x260] sm:$0xf]
    %v496 = vld [vmem:[%s1 + $0x264] sm:$0xf]
    %v497 = vld [vmem:[%s1 + $0x268] sm:$0xf]
    %v498 = vld [vmem:[%s1 + $0x26c] sm:$0xf]
    %v499 = vld [vmem:[%s1 + $0x270] sm:$0xf]
    %v500 = vld [vmem:[%s1 + $0x274] sm:$0xf]
    %v501 = vld [vmem:[%s1 + $0x278] sm:$0xf]
    %v502 = vld [vmem:[%s1 + $0x27c] sm:$0xf]
    %v503 = vld [vmem:[%s1 + $0x280] sm:$0xf]
    %v504 = vld [vmem:[%s1 + $0x284] sm:$0xf]
    %v505 = vld [vmem:[%s1 + $0x288] sm:$0xf]
    %v506 = vld [vmem:[%s1 + $0x28c] sm:$0xf]
    %v507 = vld [vmem:[%s1 + $0x290] sm:$0xf]
    %v508 = vld [vmem:[%s1 + $0x294] sm:$0xf]
    %v509 = vld [vmem:[%s1 + $0x298] sm:$0xf]
    %v510 = vld [vmem:[%s1 + $0x29c] sm:$0xf]
    %v511 = vld [vmem:[%s1 + $0x2a0] sm:$0xf]
    %v512 = vld [vmem:[%s1 + $0x2a4] sm:$0xf]
    %v513 = vld [vmem:[%s1 + $0x2a8] sm:$0xf]
    %v514 = vld [vmem:[%s1 + $0x2ac] sm:$0xf]
    %v515 = vld [vmem:[%s1 + $0x2b0] sm:$0xf]
    %v516 = vld [vmem:[%s1 + $0x2b4] sm:$0xf]
    %v517 = vld [vmem:[%s1 + $0x2b8] sm:$0xf]
    %v518 = vld [vmem:[%s1 + $0x2bc] sm:$0xf]
    %v519 = vld [vmem:[%s1 + $0x2c0] sm:$0xf]
    %v520 = vld [vmem:[%s1 + $0x2c4] sm:$0xf]
    %v521 = vld [vmem:[%s1 + $0x2c8] sm:$0xf]
    %v522 = vld [vmem:[%s1 + $0x2cc] sm:$0xf]
    %v523 = vld [vmem:[%s1 + $0x2d0] sm:$0xf]
    %v524 = vld [vmem:[%s1 + $0x2d4] sm:$0xf]
    %v525 = vld [vmem:[%s1 + $0x2d8] sm:$0xf]
    %v526 = vld [vmem:[%s1 + $0x2dc] sm:$0xf]
    %v527 = vld [vmem:[%s1 + $0x2e0] sm:$0xf]
    %v528 = vld [vmem:[%s1 + $0x2e4] sm:$0xf]
    %v529 = vld [vmem:[%s1 + $0x2e8] sm:$0xf]
    %v530 = vld [vmem:[%s1 + $0x2ec] sm:$0xf]
    %v531 = vld [vmem:[%s1 + $0x2f0] sm:$0xf]
    %v532 = vld [vmem:[%s1 + $0x2f4] sm:$0xf]
    %v533 = vld [vmem:[%s1 + $0x2f8] sm:$0xf]
    %v534 = vld [vmem:[%s1 + $0x2fc] sm:$0xf]
    %v535 = vld [vmem:[%s1 + $0x300] sm:$0xf]
    %v536 = vld [vmem:[%s1 + $0x304] sm:$0xf]
    %v537 = vld [vmem:[%s1 + $0x308] sm:$0xf]
    %v538 = vld [vmem:[%s1 + $0x30c] sm:$0xf]
    %v539 = vld [vmem:[%s1 + $0x310] sm:$0xf]
    %v540 = vld [vmem:[%s1 + $0x314] sm:$0xf]
    %v541 = vld [vmem:[%s1 + $0x318] sm:$0xf]
    %v542 = vld [vmem:[%s1 + $0x31c] sm:$0xf]
    %v543 = vld [vmem:[%s1 + $0x320] sm:$0xf]
    %v544 = vld [vmem:[%s1 + $0x324] sm:$0xf]
    %v545 = vld [vmem:[%s1 + $0x328] sm:$0xf]
    %v546 = vld [vmem:[%s1 + $0x32c] sm:$0xf]
    %v547 = vld [vmem:[%s1 + $0x330] sm:$0xf]
    %v548 = vld [vmem:[%s1 + $0x334] sm:$0xf]
    %v549 = vld [vmem:[%s1 + $0x338] sm:$0xf]
    %v550 = vld [vmem:[%s1 + $0x33c] sm:$0xf]
    %v551 = vld [vmem:[%s1 + $0x340] sm:$0xf]
    %v552 = vld [vmem:[%s1 + $0x344] sm:$0xf]
    %v553 = vld [vmem:[%s1 + $0x348] sm:$0xf]
    %v554 = vld [vmem:[%s1 + $0x34c] sm:$0xf]
    %v555 = vld [vmem:[%s1 + $0x350] sm:$0xf]
    %v556 = vld [vmem:[%s1 + $0x354] sm:$0xf]
    %v557 = vld [vmem:[%s1 + $0x358] sm:$0xf]
    %v558 = vld [vmem:[%s1 + $0x35c] sm:$0xf]
    %v559 = vld [vmem:[%s1 + $0x360] sm:$0xf]
    %v560 = vld [vmem:[%s1 + $0x364] sm:$0xf]
    %v561 = vld [vmem:[%s1 + $0x368] sm:$0xf]
    %v562 = vld [vmem:[%s1 + $0x36c] sm:$0xf]
    %v563 = vld [vmem:[%s1 + $0x370] sm:$0xf]
    %v564 = vld [vmem:[%s1 + $0x374] sm:$0xf]
    %v565 = vld [vmem:[%s1 + $0x378] sm:$0xf]
    %v566 = vld [vmem:[%s1 + $0x37c] sm:$0xf]
    %v567 = vld [vmem:[%s1 + $0x380] sm:$0xf]
    %v568 = vld [vmem:[%s1 + $0x384] sm:$0xf]
    %v569 = vld [vmem:[%s1 + $0x388] sm:$0xf]
    %v570 = vld [vmem:[%s1 + $0x38c] sm:$0xf]
    %v571 = vld [vmem:[%s1 + $0x390] sm:$0xf]
    %v572 = vld [vmem:[%s1 + $0x394] sm:$0xf]
    %v573 = vld [vmem:[%s1 + $0x398] sm:$0xf]
    %v574 = vld [vmem:[%s1 + $0x39c] sm:$0xf]
    %v575 = vld [vmem:[%s1 + $0x3a0] sm:$0xf]
    %v576 = vld [vmem:[%s1 + $0x3a4] sm:$0xf]
    %v577 = vld [vmem:[%s1 + $0x3a8] sm:$0xf]
    %v578 = vld [vmem:[%s1 + $0x3ac] sm:$0xf]
    %v579 = vld [vmem:[%s1 + $0x3b0] sm:$0xf]
    %v580 = vld [vmem:[%s1 + $0x3b4] sm:$0xf]
    %v581 = vld [vmem:[%s1 + $0x3b8] sm:$0xf]
    %v582 = vld [vmem:[%s1 + $0x3bc] sm:$0xf]
    %v583 = vld [vmem:[%s1 + $0x3c0] sm:$0xf]
    %v584 = vld [vmem:[%s1 + $0x3c4] sm:$0xf]
    %v585 = vld [vmem:[%s1 + $0x3c8] sm:$0xf]
    %v586 = vld [vmem:[%s1 + $0x3cc] sm:$0xf]
    %v587 = vld [vmem:[%s1 + $0x3d0] sm:$0xf]
    %v588 = vld [vmem:[%s1 + $0x3d4] sm:$0xf]
    %v589 = vld [vmem:[%s1 + $0x3d8] sm:$0xf]
    %v590 = vld [vmem:[%s1 + $0x3dc] sm:$0xf]
    %v591 = vld [vmem:[%s1 + $0x3e0] sm:$0xf]
    %v592 = vld [vmem:[%s1 + $0x3e4] sm:$0xf]
    %v593 = vld [vmem:[%s1 + $0x3e8] sm:$0xf]
    %v594 = vld [vmem:[%s1 + $0x3ec] sm:$0xf]
    %v595 = vld [vmem:[%s1 + $0x3f0] sm:$0xf]
    %v596 = vld [vmem:[%s1 + $0x3f4] sm:$0xf]
    %v597 = vld [vmem:[%s1 + $0x3f8] sm:$0xf]
    %v598 = vld [vmem:[%s1 + $0x3fc] sm:$0xf]
    %v599 = vld [vmem:[%s1 + $0x400] sm:$0xf]
    %v600 = vld [vmem:[%s1 + $0x404] sm:$0xf]
    %v601 = vld [vmem:[%s1 + $0x408] sm:$0xf]
    %v602 = vld [vmem:[%s1 + $0x40c] sm:$0xf]
    %v603 = vld [vmem:[%s1 + $0x410] sm:$0xf]
    %v604 = vld [vmem:[%s1 + $0x414] sm:$0xf]
    %v605 = vld [vmem:[%s1 + $0x418] sm:$0xf]
    %v606 = vld [vmem:[%s1 + $0x41c] sm:$0xf]
    %v607 = vld [vmem:[%s1 + $0x420] sm:$0xf]
    %v608 = vld [vmem:[%s1 + $0x424] sm:$0xf]
    %v609 = vld [vmem:[%s1 + $0x428] sm:$0xf]
    %v610 = vld [vmem:[%s1 + $0x42c] sm:$0xf]
    %v611 = vld [vmem:[%s1 + $0x430] sm:$0xf]
    %v612 = vld [vmem:[%s1 + $0x434] sm:$0xf]
    %v613 = vld [vmem:[%s1 + $0x438] sm:$0xf]
    %v614 = vld [vmem:[%s1 + $0x43c] sm:$0xf]
    %v615 = vld [vmem:[%s1 + $0x440] sm:$0xf]
    %v616 = vld [vmem:[%s1 + $0x444] sm:$0xf]
    %v617 = vld [vmem:[%s1 + $0x448] sm:$0xf]
    %v618 = vld [vmem:[%s1 + $0x44c] sm:$0xf]
    %v619 = vld [vmem:[%s1 + $0x450] sm:$0xf]
    %v620 = vld [vmem:[%s1 + $0x454] sm:$0xf]
    %v621 = vld [vmem:[%s1 + $0x458] sm:$0xf]
    %v622 = vld [vmem:[%s1 + $0x45c] sm:$0xf]
    %v623 = vld [vmem:[%s1 + $0x460] sm:$0xf]
    %v624 = vld [vmem:[%s1 + $0x464] sm:$0xf]
    %v625 = vld [vmem:[%s1 + $0x468] sm:$0xf]
    %v626 = vld [vmem:[%s1 + $0x46c] sm:$0xf]
    %v627 = vld [vmem:[%s1 + $0x470] sm:$0xf]
    %v628 = vld [vmem:[%s1 + $0x474] sm:$0xf]
    %v629 = vld [vmem:[%s1 + $0x478] sm:$0xf]
    %v630 = vld [vmem:[%s1 + $0x47c] sm:$0xf]
    %v631 = vld [vmem:[#allocation2] sm:$0x3f]
    %v632 = vld [vmem:[#allocation2 + $0x8] sm:$0x3f]
    %v633 = vld [vmem:[#allocation2 + $0x10] sm:$0x3f]
    %v634 = vld [vmem:[#allocation2 + $0x18] sm:$0x3f]
    %v635 = vld [vmem:[#allocation2 + $0x40] sm:$0x3f]
    %v636 = vld [vmem:[#allocation2 + $0x48] sm:$0x3f]
    %v637 = vld [vmem:[#allocation2 + $0x50] sm:$0x3f]
    %v638 = vld [vmem:[#allocation2 + $0x58] sm:$0x3f]
    %v639 = vld [vmem:[#allocation2] sm:$0xfc]
    %v640 = vld [vmem:[#allocation2 + $0x8] sm:$0xfc]
    %v641 = vld [vmem:[#allocation2 + $0x10] sm:$0xfc]
    %v642 = vld [vmem:[#allocation2 + $0x18] sm:$0xfc]
    %v643 = vld [vmem:[#allocation2 + $0x40] sm:$0xfc]
    %v644 = vld [vmem:[#allocation2 + $0x48] sm:$0xfc]
    %v645 = vld [vmem:[#allocation2 + $0x50] sm:$0xfc]
    %v646 = vld [vmem:[#allocation2 + $0x58] sm:$0xfc]
    %v651 = vrot.slane %v639, 2
    %v652 = vrot.slane %v640, 2
    %v653 = vrot.slane %v641, 2
    %v654 = vrot.slane %v642, 2
    %v663 = vrot.slane %v643, 2
    %v664 = vrot.slane %v644, 2
    %v665 = vrot.slane %v645, 2
    %v666 = vrot.slane %v646, 2
    %v671 = vpack.c.bf16 %v631, %v631
    %v672 = vpack.c.bf16 %v632, %v632
    %v673 = vpack.c.bf16 %v633, %v633
    %v674 = vpack.c.bf16 %v634, %v634
    %v675 = vpack.c.bf16 %v635, %v635
    %v676 = vpack.c.bf16 %v636, %v636
    %v677 = vpack.c.bf16 %v637, %v637
    %v678 = vpack.c.bf16 %v638, %v638
    %v679 = vpack.c.bf16 %v651, %v651
    %v680 = vpack.c.bf16 %v652, %v652
    %v681 = vpack.c.bf16 %v653, %v653
    %v682 = vpack.c.bf16 %v654, %v654
    %v683 = vpack.c.bf16 %v663, %v663
    %v684 = vpack.c.bf16 %v664, %v664
    %v685 = vpack.c.bf16 %v665, %v665
    %v686 = vpack.c.bf16 %v666, %v666
    %v687 = vlaneseq
    %v688 = vshrl.u32 %v687, 7
    %v689 = vsub.s32 0, %v688
    %v690 = vrot.slane %v374, %v689
    %v947 = vunpack.c.l.b16 %v375
    %v948 = vunpack.c.l.b16 %v376
    %v949 = vunpack.c.l.b16 %v377
    %v950 = vunpack.c.l.b16 %v378
    %v951 = vunpack.c.l.b16 %v379
    %v952 = vunpack.c.l.b16 %v380
    %v953 = vunpack.c.l.b16 %v381
    %v954 = vunpack.c.l.b16 %v382
    %v955 = vunpack.c.l.b16 %v383
    %v956 = vunpack.c.l.b16 %v384
    %v957 = vunpack.c.l.b16 %v385
    %v958 = vunpack.c.l.b16 %v386
    %v959 = vunpack.c.l.b16 %v387
    %v960 = vunpack.c.l.b16 %v388
    %v961 = vunpack.c.l.b16 %v389
    %v962 = vunpack.c.l.b16 %v390
    %v963 = vunpack.c.l.b16 %v391
    %v964 = vunpack.c.l.b16 %v392
    %v965 = vunpack.c.l.b16 %v393
    %v966 = vunpack.c.l.b16 %v394
    %v967 = vunpack.c.l.b16 %v395
    %v968 = vunpack.c.l.b16 %v396
    %v969 = vunpack.c.l.b16 %v397
    %v970 = vunpack.c.l.b16 %v398
    %v971 = vunpack.c.l.b16 %v399
    %v972 = vunpack.c.l.b16 %v400
    %v973 = vunpack.c.l.b16 %v401
    %v974 = vunpack.c.l.b16 %v402
    %v975 = vunpack.c.l.b16 %v403
    %v976 = vunpack.c.l.b16 %v404
    %v977 = vunpack.c.l.b16 %v405
    %v978 = vunpack.c.l.b16 %v406
    %v979 = vunpack.c.l.b16 %v407
    %v980 = vunpack.c.l.b16 %v408
    %v981 = vunpack.c.l.b16 %v409
    %v982 = vunpack.c.l.b16 %v410
    %v983 = vunpack.c.l.b16 %v411
    %v984 = vunpack.c.l.b16 %v412
    %v985 = vunpack.c.l.b16 %v413
    %v986 = vunpack.c.l.b16 %v414
    %v987 = vunpack.c.l.b16 %v415
    %v988 = vunpack.c.l.b16 %v416
    %v989 = vunpack.c.l.b16 %v417
    %v990 = vunpack.c.l.b16 %v418
    %v991 = vunpack.c.l.b16 %v419
    %v992 = vunpack.c.l.b16 %v420
    %v993 = vunpack.c.l.b16 %v421
    %v994 = vunpack.c.l.b16 %v422
    %v995 = vunpack.c.l.b16 %v423
    %v996 = vunpack.c.l.b16 %v424
    %v997 = vunpack.c.l.b16 %v425
    %v998 = vunpack.c.l.b16 %v426
    %v999 = vunpack.c.l.b16 %v427
    %v1000 = vunpack.c.l.b16 %v428
    %v1001 = vunpack.c.l.b16 %v429
    %v1002 = vunpack.c.l.b16 %v430
    %v1003 = vunpack.c.l.b16 %v431
    %v1004 = vunpack.c.l.b16 %v432
    %v1005 = vunpack.c.l.b16 %v433
    %v1006 = vunpack.c.l.b16 %v434
    %v1007 = vunpack.c.l.b16 %v435
    %v1008 = vunpack.c.l.b16 %v436
    %v1009 = vunpack.c.l.b16 %v437
    %v1010 = vunpack.c.l.b16 %v438
    %v1011 = vunpack.c.l.b16 %v439
    %v1012 = vunpack.c.l.b16 %v440
    %v1013 = vunpack.c.l.b16 %v441
    %v1014 = vunpack.c.l.b16 %v442
    %v1015 = vunpack.c.l.b16 %v443
    %v1016 = vunpack.c.l.b16 %v444
    %v1017 = vunpack.c.l.b16 %v445
    %v1018 = vunpack.c.l.b16 %v446
    %v1019 = vunpack.c.l.b16 %v447
    %v1020 = vunpack.c.l.b16 %v448
    %v1021 = vunpack.c.l.b16 %v449
    %v1022 = vunpack.c.l.b16 %v450
    %v1023 = vunpack.c.l.b16 %v451
    %v1024 = vunpack.c.l.b16 %v452
    %v1025 = vunpack.c.l.b16 %v453
    %v1026 = vunpack.c.l.b16 %v454
    %v1027 = vunpack.c.l.b16 %v455
    %v1028 = vunpack.c.l.b16 %v456
    %v1029 = vunpack.c.l.b16 %v457
    %v1030 = vunpack.c.l.b16 %v458
    %v1031 = vunpack.c.l.b16 %v459
    %v1032 = vunpack.c.l.b16 %v460
    %v1033 = vunpack.c.l.b16 %v461
    %v1034 = vunpack.c.l.b16 %v462
    %v1035 = vunpack.c.l.b16 %v463
    %v1036 = vunpack.c.l.b16 %v464
    %v1037 = vunpack.c.l.b16 %v465
    %v1038 = vunpack.c.l.b16 %v466
    %v1039 = vunpack.c.l.b16 %v467
    %v1040 = vunpack.c.l.b16 %v468
    %v1041 = vunpack.c.l.b16 %v469
    %v1042 = vunpack.c.l.b16 %v470
    %v1043 = vunpack.c.l.b16 %v471
    %v1044 = vunpack.c.l.b16 %v472
    %v1045 = vunpack.c.l.b16 %v473
    %v1046 = vunpack.c.l.b16 %v474
    %v1047 = vunpack.c.l.b16 %v475
    %v1048 = vunpack.c.l.b16 %v476
    %v1049 = vunpack.c.l.b16 %v477
    %v1050 = vunpack.c.l.b16 %v478
    %v1051 = vunpack.c.l.b16 %v479
    %v1052 = vunpack.c.l.b16 %v480
    %v1053 = vunpack.c.l.b16 %v481
    %v1054 = vunpack.c.l.b16 %v482
    %v1055 = vunpack.c.l.b16 %v483
    %v1056 = vunpack.c.l.b16 %v484
    %v1057 = vunpack.c.l.b16 %v485
    %v1058 = vunpack.c.l.b16 %v486
    %v1059 = vunpack.c.l.b16 %v487
    %v1060 = vunpack.c.l.b16 %v488
    %v1061 = vunpack.c.l.b16 %v489
    %v1062 = vunpack.c.l.b16 %v490
    %v1063 = vunpack.c.l.b16 %v491
    %v1064 = vunpack.c.l.b16 %v492
    %v1065 = vunpack.c.l.b16 %v493
    %v1066 = vunpack.c.l.b16 %v494
    %v1067 = vunpack.c.l.b16 %v495
    %v1068 = vunpack.c.l.b16 %v496
    %v1069 = vunpack.c.l.b16 %v497
    %v1070 = vunpack.c.l.b16 %v498
    %v1071 = vunpack.c.l.b16 %v499
    %v1072 = vunpack.c.l.b16 %v500
    %v1073 = vunpack.c.l.b16 %v501
    %v1074 = vunpack.c.l.b16 %v502
    %v1075 = vunpack.c.l.b16 %v503
    %v1076 = vunpack.c.l.b16 %v504
    %v1077 = vunpack.c.l.b16 %v505
    %v1078 = vunpack.c.l.b16 %v506
    %v1079 = vunpack.c.l.b16 %v507
    %v1080 = vunpack.c.l.b16 %v508
    %v1081 = vunpack.c.l.b16 %v509
    %v1082 = vunpack.c.l.b16 %v510
    %v1083 = vunpack.c.l.b16 %v511
    %v1084 = vunpack.c.l.b16 %v512
    %v1085 = vunpack.c.l.b16 %v513
    %v1086 = vunpack.c.l.b16 %v514
    %v1087 = vunpack.c.l.b16 %v515
    %v1088 = vunpack.c.l.b16 %v516
    %v1089 = vunpack.c.l.b16 %v517
    %v1090 = vunpack.c.l.b16 %v518
    %v1091 = vunpack.c.l.b16 %v519
    %v1092 = vunpack.c.l.b16 %v520
    %v1093 = vunpack.c.l.b16 %v521
    %v1094 = vunpack.c.l.b16 %v522
    %v1095 = vunpack.c.l.b16 %v523
    %v1096 = vunpack.c.l.b16 %v524
    %v1097 = vunpack.c.l.b16 %v525
    %v1098 = vunpack.c.l.b16 %v526
    %v1099 = vunpack.c.l.b16 %v527
    %v1100 = vunpack.c.l.b16 %v528
    %v1101 = vunpack.c.l.b16 %v529
    %v1102 = vunpack.c.l.b16 %v530
    %v1103 = vunpack.c.l.b16 %v531
    %v1104 = vunpack.c.l.b16 %v532
    %v1105 = vunpack.c.l.b16 %v533
    %v1106 = vunpack.c.l.b16 %v534
    %v1107 = vunpack.c.l.b16 %v535
    %v1108 = vunpack.c.l.b16 %v536
    %v1109 = vunpack.c.l.b16 %v537
    %v1110 = vunpack.c.l.b16 %v538
    %v1111 = vunpack.c.l.b16 %v539
    %v1112 = vunpack.c.l.b16 %v540
    %v1113 = vunpack.c.l.b16 %v541
    %v1114 = vunpack.c.l.b16 %v542
    %v1115 = vunpack.c.l.b16 %v543
    %v1116 = vunpack.c.l.b16 %v544
    %v1117 = vunpack.c.l.b16 %v545
    %v1118 = vunpack.c.l.b16 %v546
    %v1119 = vunpack.c.l.b16 %v547
    %v1120 = vunpack.c.l.b16 %v548
    %v1121 = vunpack.c.l.b16 %v549
    %v1122 = vunpack.c.l.b16 %v550
    %v1123 = vunpack.c.l.b16 %v551
    %v1124 = vunpack.c.l.b16 %v552
    %v1125 = vunpack.c.l.b16 %v553
    %v1126 = vunpack.c.l.b16 %v554
    %v1127 = vunpack.c.l.b16 %v555
    %v1128 = vunpack.c.l.b16 %v556
    %v1129 = vunpack.c.l.b16 %v557
    %v1130 = vunpack.c.l.b16 %v558
    %v1131 = vunpack.c.l.b16 %v559
    %v1132 = vunpack.c.l.b16 %v560
    %v1133 = vunpack.c.l.b16 %v561
    %v1134 = vunpack.c.l.b16 %v562
    %v1135 = vunpack.c.l.b16 %v563
    %v1136 = vunpack.c.l.b16 %v564
    %v1137 = vunpack.c.l.b16 %v565
    %v1138 = vunpack.c.l.b16 %v566
    %v1139 = vunpack.c.l.b16 %v567
    %v1140 = vunpack.c.l.b16 %v568
    %v1141 = vunpack.c.l.b16 %v569
    %v1142 = vunpack.c.l.b16 %v570
    %v1143 = vunpack.c.l.b16 %v571
    %v1144 = vunpack.c.l.b16 %v572
    %v1145 = vunpack.c.l.b16 %v573
    %v1146 = vunpack.c.l.b16 %v574
    %v1147 = vunpack.c.l.b16 %v575
    %v1148 = vunpack.c.l.b16 %v576
    %v1149 = vunpack.c.l.b16 %v577
    %v1150 = vunpack.c.l.b16 %v578
    %v1151 = vunpack.c.l.b16 %v579
    %v1152 = vunpack.c.l.b16 %v580
    %v1153 = vunpack.c.l.b16 %v581
    %v1154 = vunpack.c.l.b16 %v582
    %v1155 = vunpack.c.l.b16 %v583
    %v1156 = vunpack.c.l.b16 %v584
    %v1157 = vunpack.c.l.b16 %v585
    %v1158 = vunpack.c.l.b16 %v586
    %v1159 = vunpack.c.l.b16 %v587
    %v1160 = vunpack.c.l.b16 %v588
    %v1161 = vunpack.c.l.b16 %v589
    %v1162 = vunpack.c.l.b16 %v590
    %v1163 = vunpack.c.l.b16 %v591
    %v1164 = vunpack.c.l.b16 %v592
    %v1165 = vunpack.c.l.b16 %v593
    %v1166 = vunpack.c.l.b16 %v594
    %v1167 = vunpack.c.l.b16 %v595
    %v1168 = vunpack.c.l.b16 %v596
    %v1169 = vunpack.c.l.b16 %v597
    %v1170 = vunpack.c.l.b16 %v598
    %v1171 = vunpack.c.l.b16 %v599
    %v1172 = vunpack.c.l.b16 %v600
    %v1173 = vunpack.c.l.b16 %v601
    %v1174 = vunpack.c.l.b16 %v602
    %v1175 = vunpack.c.l.b16 %v603
    %v1176 = vunpack.c.l.b16 %v604
    %v1177 = vunpack.c.l.b16 %v605
    %v1178 = vunpack.c.l.b16 %v606
    %v1179 = vunpack.c.l.b16 %v607
    %v1180 = vunpack.c.l.b16 %v608
    %v1181 = vunpack.c.l.b16 %v609
    %v1182 = vunpack.c.l.b16 %v610
    %v1183 = vunpack.c.l.b16 %v611
    %v1184 = vunpack.c.l.b16 %v612
    %v1185 = vunpack.c.l.b16 %v613
    %v1186 = vunpack.c.l.b16 %v614
    %v1187 = vunpack.c.l.b16 %v615
    %v1188 = vunpack.c.l.b16 %v616
    %v1189 = vunpack.c.l.b16 %v617
    %v1190 = vunpack.c.l.b16 %v618
    %v1191 = vunpack.c.l.b16 %v619
    %v1192 = vunpack.c.l.b16 %v620
    %v1193 = vunpack.c.l.b16 %v621
    %v1194 = vunpack.c.l.b16 %v622
    %v1195 = vunpack.c.l.b16 %v623
    %v1196 = vunpack.c.l.b16 %v624
    %v1197 = vunpack.c.l.b16 %v625
    %v1198 = vunpack.c.l.b16 %v626
    %v1199 = vunpack.c.l.b16 %v627
    %v1200 = vunpack.c.l.b16 %v628
    %v1201 = vunpack.c.l.b16 %v629
    %v1202 = vunpack.c.l.b16 %v630
    %v1203 = vpack.c.b16 %v948, %v947
    %v1204 = vpack.c.b16 %v950, %v949
    %v1205 = vpack.c.b16 %v952, %v951
    %v1206 = vpack.c.b16 %v954, %v953
    %v1207 = vpack.c.b16 %v956, %v955
    %v1208 = vpack.c.b16 %v958, %v957
    %v1209 = vpack.c.b16 %v960, %v959
    %v1210 = vpack.c.b16 %v962, %v961
    %v1211 = vpack.c.b16 %v964, %v963
    %v1212 = vpack.c.b16 %v966, %v965
    %v1213 = vpack.c.b16 %v968, %v967
    %v1214 = vpack.c.b16 %v970, %v969
    %v1215 = vpack.c.b16 %v972, %v971
    %v1216 = vpack.c.b16 %v974, %v973
    %v1217 = vpack.c.b16 %v976, %v975
    %v1218 = vpack.c.b16 %v978, %v977
    %v1219 = vpack.c.b16 %v980, %v979
    %v1220 = vpack.c.b16 %v982, %v981
    %v1221 = vpack.c.b16 %v984, %v983
    %v1222 = vpack.c.b16 %v986, %v985
    %v1223 = vpack.c.b16 %v988, %v987
    %v1224 = vpack.c.b16 %v990, %v989
    %v1225 = vpack.c.b16 %v992, %v991
    %v1226 = vpack.c.b16 %v994, %v993
    %v1227 = vpack.c.b16 %v996, %v995
    %v1228 = vpack.c.b16 %v998, %v997
    %v1229 = vpack.c.b16 %v1000, %v999
    %v1230 = vpack.c.b16 %v1002, %v1001
    %v1231 = vpack.c.b16 %v1004, %v1003
    %v1232 = vpack.c.b16 %v1006, %v1005
    %v1233 = vpack.c.b16 %v1008, %v1007
    %v1234 = vpack.c.b16 %v1010, %v1009
    %v1235 = vpack.c.b16 %v1012, %v1011
    %v1236 = vpack.c.b16 %v1014, %v1013
    %v1237 = vpack.c.b16 %v1016, %v1015
    %v1238 = vpack.c.b16 %v1018, %v1017
    %v1239 = vpack.c.b16 %v1020, %v1019
    %v1240 = vpack.c.b16 %v1022, %v1021
    %v1241 = vpack.c.b16 %v1024, %v1023
    %v1242 = vpack.c.b16 %v1026, %v1025
    %v1243 = vpack.c.b16 %v1028, %v1027
    %v1244 = vpack.c.b16 %v1030, %v1029
    %v1245 = vpack.c.b16 %v1032, %v1031
    %v1246 = vpack.c.b16 %v1034, %v1033
    %v1247 = vpack.c.b16 %v1036, %v1035
    %v1248 = vpack.c.b16 %v1038, %v1037
    %v1249 = vpack.c.b16 %v1040, %v1039
    %v1250 = vpack.c.b16 %v1042, %v1041
    %v1251 = vpack.c.b16 %v1044, %v1043
    %v1252 = vpack.c.b16 %v1046, %v1045
    %v1253 = vpack.c.b16 %v1048, %v1047
    %v1254 = vpack.c.b16 %v1050, %v1049
    %v1255 = vpack.c.b16 %v1052, %v1051
    %v1256 = vpack.c.b16 %v1054, %v1053
    %v1257 = vpack.c.b16 %v1056, %v1055
    %v1258 = vpack.c.b16 %v1058, %v1057
    %v1259 = vpack.c.b16 %v1060, %v1059
    %v1260 = vpack.c.b16 %v1062, %v1061
    %v1261 = vpack.c.b16 %v1064, %v1063
    %v1262 = vpack.c.b16 %v1066, %v1065
    %v1263 = vpack.c.b16 %v1068, %v1067
    %v1264 = vpack.c.b16 %v1070, %v1069
    %v1265 = vpack.c.b16 %v1072, %v1071
    %v1266 = vpack.c.b16 %v1074, %v1073
    %v1267 = vpack.c.b16 %v1076, %v1075
    %v1268 = vpack.c.b16 %v1078, %v1077
    %v1269 = vpack.c.b16 %v1080, %v1079
    %v1270 = vpack.c.b16 %v1082, %v1081
    %v1271 = vpack.c.b16 %v1084, %v1083
    %v1272 = vpack.c.b16 %v1086, %v1085
    %v1273 = vpack.c.b16 %v1088, %v1087
    %v1274 = vpack.c.b16 %v1090, %v1089
    %v1275 = vpack.c.b16 %v1092, %v1091
    %v1276 = vpack.c.b16 %v1094, %v1093
    %v1277 = vpack.c.b16 %v1096, %v1095
    %v1278 = vpack.c.b16 %v1098, %v1097
    %v1279 = vpack.c.b16 %v1100, %v1099
    %v1280 = vpack.c.b16 %v1102, %v1101
    %v1281 = vpack.c.b16 %v1104, %v1103
    %v1282 = vpack.c.b16 %v1106, %v1105
    %v1283 = vpack.c.b16 %v1108, %v1107
    %v1284 = vpack.c.b16 %v1110, %v1109
    %v1285 = vpack.c.b16 %v1112, %v1111
    %v1286 = vpack.c.b16 %v1114, %v1113
    %v1287 = vpack.c.b16 %v1116, %v1115
    %v1288 = vpack.c.b16 %v1118, %v1117
    %v1289 = vpack.c.b16 %v1120, %v1119
    %v1290 = vpack.c.b16 %v1122, %v1121
    %v1291 = vpack.c.b16 %v1124, %v1123
    %v1292 = vpack.c.b16 %v1126, %v1125
    %v1293 = vpack.c.b16 %v1128, %v1127
    %v1294 = vpack.c.b16 %v1130, %v1129
    %v1295 = vpack.c.b16 %v1132, %v1131
    %v1296 = vpack.c.b16 %v1134, %v1133
    %v1297 = vpack.c.b16 %v1136, %v1135
    %v1298 = vpack.c.b16 %v1138, %v1137
    %v1299 = vpack.c.b16 %v1140, %v1139
    %v1300 = vpack.c.b16 %v1142, %v1141
    %v1301 = vpack.c.b16 %v1144, %v1143
    %v1302 = vpack.c.b16 %v1146, %v1145
    %v1303 = vpack.c.b16 %v1148, %v1147
    %v1304 = vpack.c.b16 %v1150, %v1149
    %v1305 = vpack.c.b16 %v1152, %v1151
    %v1306 = vpack.c.b16 %v1154, %v1153
    %v1307 = vpack.c.b16 %v1156, %v1155
    %v1308 = vpack.c.b16 %v1158, %v1157
    %v1309 = vpack.c.b16 %v1160, %v1159
    %v1310 = vpack.c.b16 %v1162, %v1161
    %v1311 = vpack.c.b16 %v1164, %v1163
    %v1312 = vpack.c.b16 %v1166, %v1165
    %v1313 = vpack.c.b16 %v1168, %v1167
    %v1314 = vpack.c.b16 %v1170, %v1169
    %v1315 = vpack.c.b16 %v1172, %v1171
    %v1316 = vpack.c.b16 %v1174, %v1173
    %v1317 = vpack.c.b16 %v1176, %v1175
    %v1318 = vpack.c.b16 %v1178, %v1177
    %v1319 = vpack.c.b16 %v1180, %v1179
    %v1320 = vpack.c.b16 %v1182, %v1181
    %v1321 = vpack.c.b16 %v1184, %v1183
    %v1322 = vpack.c.b16 %v1186, %v1185
    %v1323 = vpack.c.b16 %v1188, %v1187
    %v1324 = vpack.c.b16 %v1190, %v1189
    %v1325 = vpack.c.b16 %v1192, %v1191
    %v1326 = vpack.c.b16 %v1194, %v1193
    %v1327 = vpack.c.b16 %v1196, %v1195
    %v1328 = vpack.c.b16 %v1198, %v1197
    %v1329 = vpack.c.b16 %v1200, %v1199
    %v1330 = vpack.c.b16 %v1202, %v1201
    %1459 = vmatprep.subr.bf16.mxu0 0
    %1460 = vmatpush1.bf16.msra.mxu0 %v1210
    %1461 = vmatprep.subr.bf16.mxu0 0
    %1462 = vmatpush1.bf16.msra.mxu0 %v1209
    %1463 = vmatprep.subr.bf16.mxu0 0
    %1464 = vmatpush1.bf16.msra.mxu0 %v1208
    %1465 = vmatprep.subr.bf16.mxu0 0
    %1466 = vmatpush1.bf16.msra.mxu0 %v1207
    %1467 = vmatprep.subr.bf16.mxu0 0
    %1468 = vmatpush1.bf16.msra.mxu0 %v1206
    %1469 = vmatprep.subr.bf16.mxu0 0
    %1470 = vmatpush1.bf16.msra.mxu0 %v1205
    %1471 = vmatprep.subr.bf16.mxu0 0
    %1472 = vmatpush1.bf16.msra.mxu0 %v1204
    %1473 = vmatprep.subr.bf16.mxu0 0
    %1474 = vmatpush1.bf16.msra.mxu0 %v1203
    %1475 = vmatprep.subr.bf16.mxu0 0
    %1476 = vmatpush2.bf16.msra.mxu0 %v1218
    %1477 = vmatprep.subr.bf16.mxu0 0
    %1478 = vmatpush2.bf16.msra.mxu0 %v1217
    %1479 = vmatprep.subr.bf16.mxu0 0
    %1480 = vmatpush2.bf16.msra.mxu0 %v1216
    %1481 = vmatprep.subr.bf16.mxu0 0
    %1482 = vmatpush2.bf16.msra.mxu0 %v1215
    %1483 = vmatprep.subr.bf16.mxu0 0
    %1484 = vmatpush2.bf16.msra.mxu0 %v1214
    %1485 = vmatprep.subr.bf16.mxu0 0
    %1486 = vmatpush2.bf16.msra.mxu0 %v1213
    %1487 = vmatprep.subr.bf16.mxu0 0
    %1488 = vmatpush2.bf16.msra.mxu0 %v1212
    %1489 = vmatprep.subr.bf16.mxu0 0
    %1490 = vmatpush2.bf16.msra.mxu0 %v1211
    %1491 = vmatprep.mubr.bf16.mxu0 %v672
    %1492 = vmatmul.mubr.bf16.gmra.mxu0 %v671
    %v1493 = vpop.f32.mrf.mxu0
    %v1494 = vadd.f32 %v690, %v1493
    %v1495 = vpop.f32.mrf.mxu0
    %v1496 = vpop.f32.mrf.mxu0
    %v1497 = vpop.f32.mrf.mxu0
    %1498 = vdwg.mxu0
    %1499 = vmatprep.subr.bf16.mxu0 0
    %1500 = vmatpush1.bf16.msra.mxu0 %v1226
    %1501 = vmatprep.subr.bf16.mxu0 0
    %1502 = vmatpush1.bf16.msra.mxu0 %v1225
    %1503 = vmatprep.subr.bf16.mxu0 0
    %1504 = vmatpush1.bf16.msra.mxu0 %v1224
    %1505 = vmatprep.subr.bf16.mxu0 0
    %1506 = vmatpush1.bf16.msra.mxu0 %v1223
    %1507 = vmatprep.subr.bf16.mxu0 0
    %1508 = vmatpush1.bf16.msra.mxu0 %v1222
    %1509 = vmatprep.subr.bf16.mxu0 0
    %1510 = vmatpush1.bf16.msra.mxu0 %v1221
    %1511 = vmatprep.subr.bf16.mxu0 0
    %1512 = vmatpush1.bf16.msra.mxu0 %v1220
    %1513 = vmatprep.subr.bf16.mxu0 0
    %1514 = vmatpush1.bf16.msra.mxu0 %v1219
    %1515 = vmatprep.subr.bf16.mxu0 0
    %1516 = vmatpush2.bf16.msra.mxu0 %v1234
    %1517 = vmatprep.subr.bf16.mxu0 0
    %1518 = vmatpush2.bf16.msra.mxu0 %v1233
    %1519 = vmatprep.subr.bf16.mxu0 0
    %1520 = vmatpush2.bf16.msra.mxu0 %v1232
    %1521 = vmatprep.subr.bf16.mxu0 0
    %1522 = vmatpush2.bf16.msra.mxu0 %v1231
    %1523 = vmatprep.subr.bf16.mxu0 0
    %1524 = vmatpush2.bf16.msra.mxu0 %v1230
    %1525 = vmatprep.subr.bf16.mxu0 0
    %1526 = vmatpush2.bf16.msra.mxu0 %v1229
    %1527 = vmatprep.subr.bf16.mxu0 0
    %1528 = vmatpush2.bf16.msra.mxu0 %v1228
    %1529 = vmatprep.subr.bf16.mxu0 0
    %1530 = vmatpush2.bf16.msra.mxu0 %v1227
    %1531 = vmatprep.mubr.bf16.mxu0 %v674
    %1532 = vmatmul.mubr.bf16.gmra.mxu0 %v673
    %v1533 = vpop.f32.mrf.mxu0
    %v1534 = vadd.f32 %v1494, %v1533
    %v1535 = vpop.f32.mrf.mxu0
    %v1536 = vpop.f32.mrf.mxu0
    %v1537 = vpop.f32.mrf.mxu0
    %1538 = vdwg.mxu0
    %1539 = vmatprep.subr.bf16.mxu0 0
    %1540 = vmatpush1.bf16.msra.mxu0 %v1242
    %1541 = vmatprep.subr.bf16.mxu0 0
    %1542 = vmatpush1.bf16.msra.mxu0 %v1241
    %1543 = vmatprep.subr.bf16.mxu0 0
    %1544 = vmatpush1.bf16.msra.mxu0 %v1240
    %1545 = vmatprep.subr.bf16.mxu0 0
    %1546 = vmatpush1.bf16.msra.mxu0 %v1239
    %1547 = vmatprep.subr.bf16.mxu0 0
    %1548 = vmatpush1.bf16.msra.mxu0 %v1238
    %1549 = vmatprep.subr.bf16.mxu0 0
    %1550 = vmatpush1.bf16.msra.mxu0 %v1237
    %1551 = vmatprep.subr.bf16.mxu0 0
    %1552 = vmatpush1.bf16.msra.mxu0 %v1236
    %1553 = vmatprep.subr.bf16.mxu0 0
    %1554 = vmatpush1.bf16.msra.mxu0 %v1235
    %1555 = vmatprep.subr.bf16.mxu0 0
    %1556 = vmatpush2.bf16.msra.mxu0 %v1250
    %1557 = vmatprep.subr.bf16.mxu0 0
    %1558 = vmatpush2.bf16.msra.mxu0 %v1249
    %1559 = vmatprep.subr.bf16.mxu0 0
    %1560 = vmatpush2.bf16.msra.mxu0 %v1248
    %1561 = vmatprep.subr.bf16.mxu0 0
    %1562 = vmatpush2.bf16.msra.mxu0 %v1247
    %1563 = vmatprep.subr.bf16.mxu0 0
    %1564 = vmatpush2.bf16.msra.mxu0 %v1246
    %1565 = vmatprep.subr.bf16.mxu0 0
    %1566 = vmatpush2.bf16.msra.mxu0 %v1245
    %1567 = vmatprep.subr.bf16.mxu0 0
    %1568 = vmatpush2.bf16.msra.mxu0 %v1244
    %1569 = vmatprep.subr.bf16.mxu0 0
    %1570 = vmatpush2.bf16.msra.mxu0 %v1243
    %1571 = vmatprep.mubr.bf16.mxu0 %v676
    %1572 = vmatmul.mubr.bf16.gmra.mxu0 %v675
    %v1573 = vpop.f32.mrf.mxu0
    %v1574 = vadd.f32 %v1534, %v1573
    %v1575 = vpop.f32.mrf.mxu0
    %v1576 = vpop.f32.mrf.mxu0
    %v1577 = vpop.f32.mrf.mxu0
    %1578 = vdwg.mxu0
    %1579 = vmatprep.subr.bf16.mxu0 0
    %1580 = vmatpush1.bf16.msra.mxu0 %v1258
    %1581 = vmatprep.subr.bf16.mxu0 0
    %1582 = vmatpush1.bf16.msra.mxu0 %v1257
    %1583 = vmatprep.subr.bf16.mxu0 0
    %1584 = vmatpush1.bf16.msra.mxu0 %v1256
    %1585 = vmatprep.subr.bf16.mxu0 0
    %1586 = vmatpush1.bf16.msra.mxu0 %v1255
    %1587 = vmatprep.subr.bf16.mxu0 0
    %1588 = vmatpush1.bf16.msra.mxu0 %v1254
    %1589 = vmatprep.subr.bf16.mxu0 0
    %1590 = vmatpush1.bf16.msra.mxu0 %v1253
    %1591 = vmatprep.subr.bf16.mxu0 0
    %1592 = vmatpush1.bf16.msra.mxu0 %v1252
    %1593 = vmatprep.subr.bf16.mxu0 0
    %1594 = vmatpush1.bf16.msra.mxu0 %v1251
    %1595 = vmatprep.subr.bf16.mxu0 0
    %1596 = vmatpush2.bf16.msra.mxu0 %v1266
    %1597 = vmatprep.subr.bf16.mxu0 0
    %1598 = vmatpush2.bf16.msra.mxu0 %v1265
    %1599 = vmatprep.subr.bf16.mxu0 0
    %1600 = vmatpush2.bf16.msra.mxu0 %v1264
    %1601 = vmatprep.subr.bf16.mxu0 0
    %1602 = vmatpush2.bf16.msra.mxu0 %v1263
    %1603 = vmatprep.subr.bf16.mxu0 0
    %1604 = vmatpush2.bf16.msra.mxu0 %v1262
    %1605 = vmatprep.subr.bf16.mxu0 0
    %1606 = vmatpush2.bf16.msra.mxu0 %v1261
    %1607 = vmatprep.subr.bf16.mxu0 0
    %1608 = vmatpush2.bf16.msra.mxu0 %v1260
    %1609 = vmatprep.subr.bf16.mxu0 0
    %1610 = vmatpush2.bf16.msra.mxu0 %v1259
    %1611 = vmatprep.mubr.bf16.mxu0 %v678
    %1612 = vmatmul.mubr.bf16.gmra.mxu0 %v677
    %v1613 = vpop.f32.mrf.mxu0
    %v1614 = vadd.f32 %v1574, %v1613
    %v1615 = vpop.f32.mrf.mxu0
    %v1616 = vpop.f32.mrf.mxu0
    %v1617 = vpop.f32.mrf.mxu0
    %1618 = vdwg.mxu0
    %1619 = vmatprep.subr.bf16.mxu0 0
    %1620 = vmatpush1.bf16.msra.mxu0 %v1274
    %1621 = vmatprep.subr.bf16.mxu0 0
    %1622 = vmatpush1.bf16.msra.mxu0 %v1273
    %1623 = vmatprep.subr.bf16.mxu0 0
    %1624 = vmatpush1.bf16.msra.mxu0 %v1272
    %1625 = vmatprep.subr.bf16.mxu0 0
    %1626 = vmatpush1.bf16.msra.mxu0 %v1271
    %1627 = vmatprep.subr.bf16.mxu0 0
    %1628 = vmatpush1.bf16.msra.mxu0 %v1270
    %1629 = vmatprep.subr.bf16.mxu0 0
    %1630 = vmatpush1.bf16.msra.mxu0 %v1269
    %1631 = vmatprep.subr.bf16.mxu0 0
    %1632 = vmatpush1.bf16.msra.mxu0 %v1268
    %1633 = vmatprep.subr.bf16.mxu0 0
    %1634 = vmatpush1.bf16.msra.mxu0 %v1267
    %1635 = vmatprep.subr.bf16.mxu0 0
    %1636 = vmatpush2.bf16.msra.mxu0 %v1282
    %1637 = vmatprep.subr.bf16.mxu0 0
    %1638 = vmatpush2.bf16.msra.mxu0 %v1281
    %1639 = vmatprep.subr.bf16.mxu0 0
    %1640 = vmatpush2.bf16.msra.mxu0 %v1280
    %1641 = vmatprep.subr.bf16.mxu0 0
    %1642 = vmatpush2.bf16.msra.mxu0 %v1279
    %1643 = vmatprep.subr.bf16.mxu0 0
    %1644 = vmatpush2.bf16.msra.mxu0 %v1278
    %1645 = vmatprep.subr.bf16.mxu0 0
    %1646 = vmatpush2.bf16.msra.mxu0 %v1277
    %1647 = vmatprep.subr.bf16.mxu0 0
    %1648 = vmatpush2.bf16.msra.mxu0 %v1276
    %1649 = vmatprep.subr.bf16.mxu0 0
    %1650 = vmatpush2.bf16.msra.mxu0 %v1275
    %1651 = vmatprep.mubr.bf16.mxu0 %v680
    %1652 = vmatmul.mubr.bf16.gmra.mxu0 %v679
    %v1653 = vpop.f32.mrf.mxu0
    %v1654 = vadd.f32 %v1614, %v1653
    %v1655 = vpop.f32.mrf.mxu0
    %v1656 = vpop.f32.mrf.mxu0
    %v1657 = vpop.f32.mrf.mxu0
    %1658 = vdwg.mxu0
    %1659 = vmatprep.subr.bf16.mxu0 0
    %1660 = vmatpush1.bf16.msra.mxu0 %v1290
    %1661 = vmatprep.subr.bf16.mxu0 0
    %1662 = vmatpush1.bf16.msra.mxu0 %v1289
    %1663 = vmatprep.subr.bf16.mxu0 0
    %1664 = vmatpush1.bf16.msra.mxu0 %v1288
    %1665 = vmatprep.subr.bf16.mxu0 0
    %1666 = vmatpush1.bf16.msra.mxu0 %v1287
    %1667 = vmatprep.subr.bf16.mxu0 0
    %1668 = vmatpush1.bf16.msra.mxu0 %v1286
    %1669 = vmatprep.subr.bf16.mxu0 0
    %1670 = vmatpush1.bf16.msra.mxu0 %v1285
    %1671 = vmatprep.subr.bf16.mxu0 0
    %1672 = vmatpush1.bf16.msra.mxu0 %v1284
    %1673 = vmatprep.subr.bf16.mxu0 0
    %1674 = vmatpush1.bf16.msra.mxu0 %v1283
    %1675 = vmatprep.subr.bf16.mxu0 0
    %1676 = vmatpush2.bf16.msra.mxu0 %v1298
    %1677 = vmatprep.subr.bf16.mxu0 0
    %1678 = vmatpush2.bf16.msra.mxu0 %v1297
    %1679 = vmatprep.subr.bf16.mxu0 0
    %1680 = vmatpush2.bf16.msra.mxu0 %v1296
    %1681 = vmatprep.subr.bf16.mxu0 0
    %1682 = vmatpush2.bf16.msra.mxu0 %v1295
    %1683 = vmatprep.subr.bf16.mxu0 0
    %1684 = vmatpush2.bf16.msra.mxu0 %v1294
    %1685 = vmatprep.subr.bf16.mxu0 0
    %1686 = vmatpush2.bf16.msra.mxu0 %v1293
    %1687 = vmatprep.subr.bf16.mxu0 0
    %1688 = vmatpush2.bf16.msra.mxu0 %v1292
    %1689 = vmatprep.subr.bf16.mxu0 0
    %1690 = vmatpush2.bf16.msra.mxu0 %v1291
    %1691 = vmatprep.mubr.bf16.mxu0 %v682
    %1692 = vmatmul.mubr.bf16.gmra.mxu0 %v681
    %v1693 = vpop.f32.mrf.mxu0
    %v1694 = vadd.f32 %v1654, %v1693
    %v1695 = vpop.f32.mrf.mxu0
    %v1696 = vpop.f32.mrf.mxu0
    %v1697 = vpop.f32.mrf.mxu0
    %1698 = vdwg.mxu0
    %1699 = vmatprep.subr.bf16.mxu0 0
    %1700 = vmatpush1.bf16.msra.mxu0 %v1306
    %1701 = vmatprep.subr.bf16.mxu0 0
    %1702 = vmatpush1.bf16.msra.mxu0 %v1305
    %1703 = vmatprep.subr.bf16.mxu0 0
    %1704 = vmatpush1.bf16.msra.mxu0 %v1304
    %1705 = vmatprep.subr.bf16.mxu0 0
    %1706 = vmatpush1.bf16.msra.mxu0 %v1303
    %1707 = vmatprep.subr.bf16.mxu0 0
    %1708 = vmatpush1.bf16.msra.mxu0 %v1302
    %1709 = vmatprep.subr.bf16.mxu0 0
    %1710 = vmatpush1.bf16.msra.mxu0 %v1301
    %1711 = vmatprep.subr.bf16.mxu0 0
    %1712 = vmatpush1.bf16.msra.mxu0 %v1300
    %1713 = vmatprep.subr.bf16.mxu0 0
    %1714 = vmatpush1.bf16.msra.mxu0 %v1299
    %1715 = vmatprep.subr.bf16.mxu0 0
    %1716 = vmatpush2.bf16.msra.mxu0 %v1314
    %1717 = vmatprep.subr.bf16.mxu0 0
    %1718 = vmatpush2.bf16.msra.mxu0 %v1313
    %1719 = vmatprep.subr.bf16.mxu0 0
    %1720 = vmatpush2.bf16.msra.mxu0 %v1312
    %1721 = vmatprep.subr.bf16.mxu0 0
    %1722 = vmatpush2.bf16.msra.mxu0 %v1311
    %1723 = vmatprep.subr.bf16.mxu0 0
    %1724 = vmatpush2.bf16.msra.mxu0 %v1310
    %1725 = vmatprep.subr.bf16.mxu0 0
    %1726 = vmatpush2.bf16.msra.mxu0 %v1309
    %1727 = vmatprep.subr.bf16.mxu0 0
    %1728 = vmatpush2.bf16.msra.mxu0 %v1308
    %1729 = vmatprep.subr.bf16.mxu0 0
    %1730 = vmatpush2.bf16.msra.mxu0 %v1307
    %1731 = vmatprep.mubr.bf16.mxu0 %v684
    %1732 = vmatmul.mubr.bf16.gmra.mxu0 %v683
    %v1733 = vpop.f32.mrf.mxu0
    %v1734 = vadd.f32 %v1694, %v1733
    %v1735 = vpop.f32.mrf.mxu0
    %v1736 = vpop.f32.mrf.mxu0
    %v1737 = vpop.f32.mrf.mxu0
    %1738 = vdwg.mxu0
    %1739 = vmatprep.subr.bf16.mxu0 0
    %1740 = vmatpush1.bf16.msra.mxu0 %v1322
    %1741 = vmatprep.subr.bf16.mxu0 0
    %1742 = vmatpush1.bf16.msra.mxu0 %v1321
    %1743 = vmatprep.subr.bf16.mxu0 0
    %1744 = vmatpush1.bf16.msra.mxu0 %v1320
    %1745 = vmatprep.subr.bf16.mxu0 0
    %1746 = vmatpush1.bf16.msra.mxu0 %v1319
    %1747 = vmatprep.subr.bf16.mxu0 0
    %1748 = vmatpush1.bf16.msra.mxu0 %v1318
    %1749 = vmatprep.subr.bf16.mxu0 0
    %1750 = vmatpush1.bf16.msra.mxu0 %v1317
    %1751 = vmatprep.subr.bf16.mxu0 0
    %1752 = vmatpush1.bf16.msra.mxu0 %v1316
    %1753 = vmatprep.subr.bf16.mxu0 0
    %1754 = vmatpush1.bf16.msra.mxu0 %v1315
    %1755 = vmatprep.subr.bf16.mxu0 0
    %1756 = vmatpush2.bf16.msra.mxu0 %v1330
    %1757 = vmatprep.subr.bf16.mxu0 0
    %1758 = vmatpush2.bf16.msra.mxu0 %v1329
    %1759 = vmatprep.subr.bf16.mxu0 0
    %1760 = vmatpush2.bf16.msra.mxu0 %v1328
    %1761 = vmatprep.subr.bf16.mxu0 0
    %1762 = vmatpush2.bf16.msra.mxu0 %v1327
    %1763 = vmatprep.subr.bf16.mxu0 0
    %1764 = vmatpush2.bf16.msra.mxu0 %v1326
    %1765 = vmatprep.subr.bf16.mxu0 0
    %1766 = vmatpush2.bf16.msra.mxu0 %v1325
    %1767 = vmatprep.subr.bf16.mxu0 0
    %1768 = vmatpush2.bf16.msra.mxu0 %v1324
    %1769 = vmatprep.subr.bf16.mxu0 0
    %1770 = vmatpush2.bf16.msra.mxu0 %v1323
    %1771 = vmatprep.mubr.bf16.mxu0 %v686
    %1772 = vmatmul.mubr.bf16.gmra.mxu0 %v685
    %v1773 = vpop.f32.mrf.mxu0
    %v1774 = vadd.f32 %v1734, %v1773
    %v1775 = vpop.f32.mrf.mxu0
    %v1776 = vpop.f32.mrf.mxu0
    %v1777 = vpop.f32.mrf.mxu0
    %1778 = vdwg.mxu0
    %v1779 = vmax.f32 %v1774, 0.0
    %1780 = vst [vmem:[#allocation3] sm:$0x3f] %v1779
    %v1781 = vld [vmem:[#allocation2 + $0x10] sm:$0x3f]
    %v1782 = vld [vmem:[#allocation2 + $0x18] sm:$0x3f]
    %v1783 = vld [vmem:[#allocation2 + $0x20] sm:$0x3f]
    %v1784 = vld [vmem:[#allocation2 + $0x28] sm:$0x3f]
    %v1785 = vld [vmem:[#allocation2 + $0x50] sm:$0x3f]
    %v1786 = vld [vmem:[#allocation2 + $0x58] sm:$0x3f]
    %v1787 = vld [vmem:[#allocation2 + $0x60] sm:$0x3f]
    %v1788 = vld [vmem:[#allocation2 + $0x68] sm:$0x3f]
    %v1789 = vld [vmem:[#allocation2 + $0x10] sm:$0xfc]
    %v1790 = vld [vmem:[#allocation2 + $0x18] sm:$0xfc]
    %v1791 = vld [vmem:[#allocation2 + $0x20] sm:$0xfc]
    %v1792 = vld [vmem:[#allocation2 + $0x28] sm:$0xfc]
    %v1793 = vld [vmem:[#allocation2 + $0x50] sm:$0xfc]
    %v1794 = vld [vmem:[#allocation2 + $0x58] sm:$0xfc]
    %v1795 = vld [vmem:[#allocation2 + $0x60] sm:$0xfc]
    %v1796 = vld [vmem:[#allocation2 + $0x68] sm:$0xfc]
    %v1801 = vrot.slane %v1789, 2
    %v1802 = vrot.slane %v1790, 2
    %v1803 = vrot.slane %v1791, 2
    %v1804 = vrot.slane %v1792, 2
    %v1813 = vrot.slane %v1793, 2
    %v1814 = vrot.slane %v1794, 2
    %v1815 = vrot.slane %v1795, 2
    %v1816 = vrot.slane %v1796, 2
    %v1821 = vpack.c.bf16 %v1781, %v1781
    %v1822 = vpack.c.bf16 %v1782, %v1782
    %v1823 = vpack.c.bf16 %v1783, %v1783
    %v1824 = vpack.c.bf16 %v1784, %v1784
    %v1825 = vpack.c.bf16 %v1785, %v1785
    %v1826 = vpack.c.bf16 %v1786, %v1786
    %v1827 = vpack.c.bf16 %v1787, %v1787
    %v1828 = vpack.c.bf16 %v1788, %v1788
    %v1829 = vpack.c.bf16 %v1801, %v1801
    %v1830 = vpack.c.bf16 %v1802, %v1802
    %v1831 = vpack.c.bf16 %v1803, %v1803
    %v1832 = vpack.c.bf16 %v1804, %v1804
    %v1833 = vpack.c.bf16 %v1813, %v1813
    %v1834 = vpack.c.bf16 %v1814, %v1814
    %v1835 = vpack.c.bf16 %v1815, %v1815
    %v1836 = vpack.c.bf16 %v1816, %v1816
    %1837 = vmatprep.subr.bf16.mxu0 0
    %1838 = vmatpush1.bf16.msra.mxu0 %v1210
    %1839 = vmatprep.subr.bf16.mxu0 0
    %1840 = vmatpush1.bf16.msra.mxu0 %v1209
    %1841 = vmatprep.subr.bf16.mxu0 0
    %1842 = vmatpush1.bf16.msra.mxu0 %v1208
    %1843 = vmatprep.subr.bf16.mxu0 0
    %1844 = vmatpush1.bf16.msra.mxu0 %v1207
    %1845 = vmatprep.subr.bf16.mxu0 0
    %1846 = vmatpush1.bf16.msra.mxu0 %v1206
    %1847 = vmatprep.subr.bf16.mxu0 0
    %1848 = vmatpush1.bf16.msra.mxu0 %v1205
    %1849 = vmatprep.subr.bf16.mxu0 0
    %1850 = vmatpush1.bf16.msra.mxu0 %v1204
    %1851 = vmatprep.subr.bf16.mxu0 0
    %1852 = vmatpush1.bf16.msra.mxu0 %v1203
    %1853 = vmatprep.subr.bf16.mxu0 0
    %1854 = vmatpush2.bf16.msra.mxu0 %v1218
    %1855 = vmatprep.subr.bf16.mxu0 0
    %1856 = vmatpush2.bf16.msra.mxu0 %v1217
    %1857 = vmatprep.subr.bf16.mxu0 0
    %1858 = vmatpush2.bf16.msra.mxu0 %v1216
    %1859 = vmatprep.subr.bf16.mxu0 0
    %1860 = vmatpush2.bf16.msra.mxu0 %v1215
    %1861 = vmatprep.subr.bf16.mxu0 0
    %1862 = vmatpush2.bf16.msra.mxu0 %v1214
    %1863 = vmatprep.subr.bf16.mxu0 0
    %1864 = vmatpush2.bf16.msra.mxu0 %v1213
    %1865 = vmatprep.subr.bf16.mxu0 0
    %1866 = vmatpush2.bf16.msra.mxu0 %v1212
    %1867 = vmatprep.subr.bf16.mxu0 0
    %1868 = vmatpush2.bf16.msra.mxu0 %v1211
    %1869 = vmatprep.mubr.bf16.mxu0 %v1822
    %1870 = vmatmul.mubr.bf16.gmra.mxu0 %v1821
    %v1871 = vpop.f32.mrf.mxu0
    %v1872 = vadd.f32 %v690, %v1871
    %v1873 = vpop.f32.mrf.mxu0
    %v1874 = vpop.f32.mrf.mxu0
    %v1875 = vpop.f32.mrf.mxu0
    %1876 = vdwg.mxu0
    %1877 = vmatprep.subr.bf16.mxu0 0
    %1878 = vmatpush1.bf16.msra.mxu0 %v1226
    %1879 = vmatprep.subr.bf16.mxu0 0
    %1880 = vmatpush1.bf16.msra.mxu0 %v1225
    %1881 = vmatprep.subr.bf16.mxu0 0
    %1882 = vmatpush1.bf16.msra.mxu0 %v1224
    %1883 = vmatprep.subr.bf16.mxu0 0
    %1884 = vmatpush1.bf16.msra.mxu0 %v1223
    %1885 = vmatprep.subr.bf16.mxu0 0
    %1886 = vmatpush1.bf16.msra.mxu0 %v1222
    %1887 = vmatprep.subr.bf16.mxu0 0
    %1888 = vmatpush1.bf16.msra.mxu0 %v1221
    %1889 = vmatprep.subr.bf16.mxu0 0
    %1890 = vmatpush1.bf16.msra.mxu0 %v1220
    %1891 = vmatprep.subr.bf16.mxu0 0
    %1892 = vmatpush1.bf16.msra.mxu0 %v1219
    %1893 = vmatprep.subr.bf16.mxu0 0
    %1894 = vmatpush2.bf16.msra.mxu0 %v1234
    %1895 = vmatprep.subr.bf16.mxu0 0
    %1896 = vmatpush2.bf16.msra.mxu0 %v1233
    %1897 = vmatprep.subr.bf16.mxu0 0
    %1898 = vmatpush2.bf16.msra.mxu0 %v1232
    %1899 = vmatprep.subr.bf16.mxu0 0
    %1900 = vmatpush2.bf16.msra.mxu0 %v1231
    %1901 = vmatprep.subr.bf16.mxu0 0
    %1902 = vmatpush2.bf16.msra.mxu0 %v1230
    %1903 = vmatprep.subr.bf16.mxu0 0
    %1904 = vmatpush2.bf16.msra.mxu0 %v1229
    %1905 = vmatprep.subr.bf16.mxu0 0
    %1906 = vmatpush2.bf16.msra.mxu0 %v1228
    %1907 = vmatprep.subr.bf16.mxu0 0
    %1908 = vmatpush2.bf16.msra.mxu0 %v1227
    %1909 = vmatprep.mubr.bf16.mxu0 %v1824
    %1910 = vmatmul.mubr.bf16.gmra.mxu0 %v1823
    %v1911 = vpop.f32.mrf.mxu0
    %v1912 = vadd.f32 %v1872, %v1911
    %v1913 = vpop.f32.mrf.mxu0
    %v1914 = vpop.f32.mrf.mxu0
    %v1915 = vpop.f32.mrf.mxu0
    %1916 = vdwg.mxu0
    %1917 = vmatprep.subr.bf16.mxu0 0
    %1918 = vmatpush1.bf16.msra.mxu0 %v1242
    %1919 = vmatprep.subr.bf16.mxu0 0
    %1920 = vmatpush1.bf16.msra.mxu0 %v1241
    %1921 = vmatprep.subr.bf16.mxu0 0
    %1922 = vmatpush1.bf16.msra.mxu0 %v1240
    %1923 = vmatprep.subr.bf16.mxu0 0
    %1924 = vmatpush1.bf16.msra.mxu0 %v1239
    %1925 = vmatprep.subr.bf16.mxu0 0
    %1926 = vmatpush1.bf16.msra.mxu0 %v1238
    %1927 = vmatprep.subr.bf16.mxu0 0
    %1928 = vmatpush1.bf16.msra.mxu0 %v1237
    %1929 = vmatprep.subr.bf16.mxu0 0
    %1930 = vmatpush1.bf16.msra.mxu0 %v1236
    %1931 = vmatprep.subr.bf16.mxu0 0
    %1932 = vmatpush1.bf16.msra.mxu0 %v1235
    %1933 = vmatprep.subr.bf16.mxu0 0
    %1934 = vmatpush2.bf16.msra.mxu0 %v1250
    %1935 = vmatprep.subr.bf16.mxu0 0
    %1936 = vmatpush2.bf16.msra.mxu0 %v1249
    %1937 = vmatprep.subr.bf16.mxu0 0
    %1938 = vmatpush2.bf16.msra.mxu0 %v1248
    %1939 = vmatprep.subr.bf16.mxu0 0
    %1940 = vmatpush2.bf16.msra.mxu0 %v1247
    %1941 = vmatprep.subr.bf16.mxu0 0
    %1942 = vmatpush2.bf16.msra.mxu0 %v1246
    %1943 = vmatprep.subr.bf16.mxu0 0
    %1944 = vmatpush2.bf16.msra.mxu0 %v1245
    %1945 = vmatprep.subr.bf16.mxu0 0
    %1946 = vmatpush2.bf16.msra.mxu0 %v1244
    %1947 = vmatprep.subr.bf16.mxu0 0
    %1948 = vmatpush2.bf16.msra.mxu0 %v1243
    %1949 = vmatprep.mubr.bf16.mxu0 %v1826
    %1950 = vmatmul.mubr.bf16.gmra.mxu0 %v1825
    %v1951 = vpop.f32.mrf.mxu0
    %v1952 = vadd.f32 %v1912, %v1951
    %v1953 = vpop.f32.mrf.mxu0
    %v1954 = vpop.f32.mrf.mxu0
    %v1955 = vpop.f32.mrf.mxu0
    %1956 = vdwg.mxu0
    %1957 = vmatprep.subr.bf16.mxu0 0
    %1958 = vmatpush1.bf16.msra.mxu0 %v1258
    %1959 = vmatprep.subr.bf16.mxu0 0
    %1960 = vmatpush1.bf16.msra.mxu0 %v1257
    %1961 = vmatprep.subr.bf16.mxu0 0
    %1962 = vmatpush1.bf16.msra.mxu0 %v1256
    %1963 = vmatprep.subr.bf16.mxu0 0
    %1964 = vmatpush1.bf16.msra.mxu0 %v1255
    %1965 = vmatprep.subr.bf16.mxu0 0
    %1966 = vmatpush1.bf16.msra.mxu0 %v1254
    %1967 = vmatprep.subr.bf16.mxu0 0
    %1968 = vmatpush1.bf16.msra.mxu0 %v1253
    %1969 = vmatprep.subr.bf16.mxu0 0
    %1970 = vmatpush1.bf16.msra.mxu0 %v1252
    %1971 = vmatprep.subr.bf16.mxu0 0
    %1972 = vmatpush1.bf16.msra.mxu0 %v1251
    %1973 = vmatprep.subr.bf16.mxu0 0
    %1974 = vmatpush2.bf16.msra.mxu0 %v1266
    %1975 = vmatprep.subr.bf16.mxu0 0
    %1976 = vmatpush2.bf16.msra.mxu0 %v1265
    %1977 = vmatprep.subr.bf16.mxu0 0
    %1978 = vmatpush2.bf16.msra.mxu0 %v1264
    %1979 = vmatprep.subr.bf16.mxu0 0
    %1980 = vmatpush2.bf16.msra.mxu0 %v1263
    %1981 = vmatprep.subr.bf16.mxu0 0
    %1982 = vmatpush2.bf16.msra.mxu0 %v1262
    %1983 = vmatprep.subr.bf16.mxu0 0
    %1984 = vmatpush2.bf16.msra.mxu0 %v1261
    %1985 = vmatprep.subr.bf16.mxu0 0
    %1986 = vmatpush2.bf16.msra.mxu0 %v1260
    %1987 = vmatprep.subr.bf16.mxu0 0
    %1988 = vmatpush2.bf16.msra.mxu0 %v1259
    %1989 = vmatprep.mubr.bf16.mxu0 %v1828
    %1990 = vmatmul.mubr.bf16.gmra.mxu0 %v1827
    %v1991 = vpop.f32.mrf.mxu0
    %v1992 = vadd.f32 %v1952, %v1991
    %v1993 = vpop.f32.mrf.mxu0
    %v1994 = vpop.f32.mrf.mxu0
    %v1995 = vpop.f32.mrf.mxu0
    %1996 = vdwg.mxu0
    %1997 = vmatprep.subr.bf16.mxu0 0
    %1998 = vmatpush1.bf16.msra.mxu0 %v1274
    %1999 = vmatprep.subr.bf16.mxu0 0
    %2000 = vmatpush1.bf16.msra.mxu0 %v1273
    %2001 = vmatprep.subr.bf16.mxu0 0
    %2002 = vmatpush1.bf16.msra.mxu0 %v1272
    %2003 = vmatprep.subr.bf16.mxu0 0
    %2004 = vmatpush1.bf16.msra.mxu0 %v1271
    %2005 = vmatprep.subr.bf16.mxu0 0
    %2006 = vmatpush1.bf16.msra.mxu0 %v1270
    %2007 = vmatprep.subr.bf16.mxu0 0
    %2008 = vmatpush1.bf16.msra.mxu0 %v1269
    %2009 = vmatprep.subr.bf16.mxu0 0
    %2010 = vmatpush1.bf16.msra.mxu0 %v1268
    %2011 = vmatprep.subr.bf16.mxu0 0
    %2012 = vmatpush1.bf16.msra.mxu0 %v1267
    %2013 = vmatprep.subr.bf16.mxu0 0
    %2014 = vmatpush2.bf16.msra.mxu0 %v1282
    %2015 = vmatprep.subr.bf16.mxu0 0
    %2016 = vmatpush2.bf16.msra.mxu0 %v1281
    %2017 = vmatprep.subr.bf16.mxu0 0
    %2018 = vmatpush2.bf16.msra.mxu0 %v1280
    %2019 = vmatprep.subr.bf16.mxu0 0
    %2020 = vmatpush2.bf16.msra.mxu0 %v1279
    %2021 = vmatprep.subr.bf16.mxu0 0
    %2022 = vmatpush2.bf16.msra.mxu0 %v1278
    %2023 = vmatprep.subr.bf16.mxu0 0
    %2024 = vmatpush2.bf16.msra.mxu0 %v1277
    %2025 = vmatprep.subr.bf16.mxu0 0
    %2026 = vmatpush2.bf16.msra.mxu0 %v1276
    %2027 = vmatprep.subr.bf16.mxu0 0
    %2028 = vmatpush2.bf16.msra.mxu0 %v1275
    %2029 = vmatprep.mubr.bf16.mxu0 %v1830
    %2030 = vmatmul.mubr.bf16.gmra.mxu0 %v1829
    %v2031 = vpop.f32.mrf.mxu0
    %v2032 = vadd.f32 %v1992, %v2031
    %v2033 = vpop.f32.mrf.mxu0
    %v2034 = vpop.f32.mrf.mxu0
    %v2035 = vpop.f32.mrf.mxu0
    %2036 = vdwg.mxu0
    %2037 = vmatprep.subr.bf16.mxu0 0
    %2038 = vmatpush1.bf16.msra.mxu0 %v1290
    %2039 = vmatprep.subr.bf16.mxu0 0
    %2040 = vmatpush1.bf16.msra.mxu0 %v1289
    %2041 = vmatprep.subr.bf16.mxu0 0
    %2042 = vmatpush1.bf16.msra.mxu0 %v1288
    %2043 = vmatprep.subr.bf16.mxu0 0
    %2044 = vmatpush1.bf16.msra.mxu0 %v1287
    %2045 = vmatprep.subr.bf16.mxu0 0
    %2046 = vmatpush1.bf16.msra.mxu0 %v1286
    %2047 = vmatprep.subr.bf16.mxu0 0
    %2048 = vmatpush1.bf16.msra.mxu0 %v1285
    %2049 = vmatprep.subr.bf16.mxu0 0
    %2050 = vmatpush1.bf16.msra.mxu0 %v1284
    %2051 = vmatprep.subr.bf16.mxu0 0
    %2052 = vmatpush1.bf16.msra.mxu0 %v1283
    %2053 = vmatprep.subr.bf16.mxu0 0
    %2054 = vmatpush2.bf16.msra.mxu0 %v1298
    %2055 = vmatprep.subr.bf16.mxu0 0
    %2056 = vmatpush2.bf16.msra.mxu0 %v1297
    %2057 = vmatprep.subr.bf16.mxu0 0
    %2058 = vmatpush2.bf16.msra.mxu0 %v1296
    %2059 = vmatprep.subr.bf16.mxu0 0
    %2060 = vmatpush2.bf16.msra.mxu0 %v1295
    %2061 = vmatprep.subr.bf16.mxu0 0
    %2062 = vmatpush2.bf16.msra.mxu0 %v1294
    %2063 = vmatprep.subr.bf16.mxu0 0
    %2064 = vmatpush2.bf16.msra.mxu0 %v1293
    %2065 = vmatprep.subr.bf16.mxu0 0
    %2066 = vmatpush2.bf16.msra.mxu0 %v1292
    %2067 = vmatprep.subr.bf16.mxu0 0
    %2068 = vmatpush2.bf16.msra.mxu0 %v1291
    %2069 = vmatprep.mubr.bf16.mxu0 %v1832
    %2070 = vmatmul.mubr.bf16.gmra.mxu0 %v1831
    %v2071 = vpop.f32.mrf.mxu0
    %v2072 = vadd.f32 %v2032, %v2071
    %v2073 = vpop.f32.mrf.mxu0
    %v2074 = vpop.f32.mrf.mxu0
    %v2075 = vpop.f32.mrf.mxu0
    %2076 = vdwg.mxu0
    %2077 = vmatprep.subr.bf16.mxu0 0
    %2078 = vmatpush1.bf16.msra.mxu0 %v1306
    %2079 = vmatprep.subr.bf16.mxu0 0
    %2080 = vmatpush1.bf16.msra.mxu0 %v1305
    %2081 = vmatprep.subr.bf16.mxu0 0
    %2082 = vmatpush1.bf16.msra.mxu0 %v1304
    %2083 = vmatprep.subr.bf16.mxu0 0
    %2084 = vmatpush1.bf16.msra.mxu0 %v1303
    %2085 = vmatprep.subr.bf16.mxu0 0
    %2086 = vmatpush1.bf16.msra.mxu0 %v1302
    %2087 = vmatprep.subr.bf16.mxu0 0
    %2088 = vmatpush1.bf16.msra.mxu0 %v1301
    %2089 = vmatprep.subr.bf16.mxu0 0
    %2090 = vmatpush1.bf16.msra.mxu0 %v1300
    %2091 = vmatprep.subr.bf16.mxu0 0
    %2092 = vmatpush1.bf16.msra.mxu0 %v1299
    %2093 = vmatprep.subr.bf16.mxu0 0
    %2094 = vmatpush2.bf16.msra.mxu0 %v1314
    %2095 = vmatprep.subr.bf16.mxu0 0
    %2096 = vmatpush2.bf16.msra.mxu0 %v1313
    %2097 = vmatprep.subr.bf16.mxu0 0
    %2098 = vmatpush2.bf16.msra.mxu0 %v1312
    %2099 = vmatprep.subr.bf16.mxu0 0
    %2100 = vmatpush2.bf16.msra.mxu0 %v1311
    %2101 = vmatprep.subr.bf16.mxu0 0
    %2102 = vmatpush2.bf16.msra.mxu0 %v1310
    %2103 = vmatprep.subr.bf16.mxu0 0
    %2104 = vmatpush2.bf16.msra.mxu0 %v1309
    %2105 = vmatprep.subr.bf16.mxu0 0
    %2106 = vmatpush2.bf16.msra.mxu0 %v1308
    %2107 = vmatprep.subr.bf16.mxu0 0
    %2108 = vmatpush2.bf16.msra.mxu0 %v1307
    %2109 = vmatprep.mubr.bf16.mxu0 %v1834
    %2110 = vmatmul.mubr.bf16.gmra.mxu0 %v1833
    %v2111 = vpop.f32.mrf.mxu0
    %v2112 = vadd.f32 %v2072, %v2111
    %v2113 = vpop.f32.mrf.mxu0
    %v2114 = vpop.f32.mrf.mxu0
    %v2115 = vpop.f32.mrf.mxu0
    %2116 = vdwg.mxu0
    %2117 = vmatprep.subr.bf16.mxu0 0
    %2118 = vmatpush1.bf16.msra.mxu0 %v1322
    %2119 = vmatprep.subr.bf16.mxu0 0
    %2120 = vmatpush1.bf16.msra.mxu0 %v1321
    %2121 = vmatprep.subr.bf16.mxu0 0
    %2122 = vmatpush1.bf16.msra.mxu0 %v1320
    %2123 = vmatprep.subr.bf16.mxu0 0
    %2124 = vmatpush1.bf16.msra.mxu0 %v1319
    %2125 = vmatprep.subr.bf16.mxu0 0
    %2126 = vmatpush1.bf16.msra.mxu0 %v1318
    %2127 = vmatprep.subr.bf16.mxu0 0
    %2128 = vmatpush1.bf16.msra.mxu0 %v1317
    %2129 = vmatprep.subr.bf16.mxu0 0
    %2130 = vmatpush1.bf16.msra.mxu0 %v1316
    %2131 = vmatprep.subr.bf16.mxu0 0
    %2132 = vmatpush1.bf16.msra.mxu0 %v1315
    %2133 = vmatprep.subr.bf16.mxu0 0
    %2134 = vmatpush2.bf16.msra.mxu0 %v1330
    %2135 = vmatprep.subr.bf16.mxu0 0
    %2136 = vmatpush2.bf16.msra.mxu0 %v1329
    %2137 = vmatprep.subr.bf16.mxu0 0
    %2138 = vmatpush2.bf16.msra.mxu0 %v1328
    %2139 = vmatprep.subr.bf16.mxu0 0
    %2140 = vmatpush2.bf16.msra.mxu0 %v1327
    %2141 = vmatprep.subr.bf16.mxu0 0
    %2142 = vmatpush2.bf16.msra.mxu0 %v1326
    %2143 = vmatprep.subr.bf16.mxu0 0
    %2144 = vmatpush2.bf16.msra.mxu0 %v1325
    %2145 = vmatprep.subr.bf16.mxu0 0
    %2146 = vmatpush2.bf16.msra.mxu0 %v1324
    %2147 = vmatprep.subr.bf16.mxu0 0
    %2148 = vmatpush2.bf16.msra.mxu0 %v1323
    %2149 = vmatprep.mubr.bf16.mxu0 %v1836
    %2150 = vmatmul.mubr.bf16.gmra.mxu0 %v1835
    %v2151 = vpop.f32.mrf.mxu0
    %v2152 = vadd.f32 %v2112, %v2151
    %v2153 = vpop.f32.mrf.mxu0
    %v2154 = vpop.f32.mrf.mxu0
    %v2155 = vpop.f32.mrf.mxu0
    %2156 = vdwg.mxu0
    %v2157 = vmax.f32 %v2152, 0.0
    %2158 = vst [vmem:[#allocation3 + $0x8] sm:$0x3f] %v2157
    %v2159 = vld [vmem:[#allocation2 + $0x20] sm:$0x3f]
    %v2160 = vld [vmem:[#allocation2 + $0x28] sm:$0x3f]
    %v2161 = vld [vmem:[#allocation2 + $0x30] sm:$0x3f]
    %v2162 = vld [vmem:[#allocation2 + $0x38] sm:$0x3f]
    %v2163 = vld [vmem:[#allocation2 + $0x60] sm:$0x3f]
    %v2164 = vld [vmem:[#allocation2 + $0x68] sm:$0x3f]
    %v2165 = vld [vmem:[#allocation2 + $0x70] sm:$0x3f]
    %v2166 = vld [vmem:[#allocation2 + $0x78] sm:$0x3f]
    %v2167 = vld [vmem:[#allocation2 + $0x20] sm:$0xfc]
    %v2168 = vld [vmem:[#allocation2 + $0x28] sm:$0xfc]
    %v2169 = vld [vmem:[#allocation2 + $0x30] sm:$0xfc]
    %v2170 = vld [vmem:[#allocation2 + $0x38] sm:$0xfc]
    %v2171 = vld [vmem:[#allocation2 + $0x60] sm:$0xfc]
    %v2172 = vld [vmem:[#allocation2 + $0x68] sm:$0xfc]
    %v2173 = vld [vmem:[#allocation2 + $0x70] sm:$0xfc]
    %v2174 = vld [vmem:[#allocation2 + $0x78] sm:$0xfc]
    %v2179 = vrot.slane %v2167, 2
    %v2180 = vrot.slane %v2168, 2
    %v2181 = vrot.slane %v2169, 2
    %v2182 = vrot.slane %v2170, 2
    %v2191 = vrot.slane %v2171, 2
    %v2192 = vrot.slane %v2172, 2
    %v2193 = vrot.slane %v2173, 2
    %v2194 = vrot.slane %v2174, 2
    %v2199 = vpack.c.bf16 %v2159, %v2159
    %v2200 = vpack.c.bf16 %v2160, %v2160
    %v2201 = vpack.c.bf16 %v2161, %v2161
    %v2202 = vpack.c.bf16 %v2162, %v2162
    %v2203 = vpack.c.bf16 %v2163, %v2163
    %v2204 = vpack.c.bf16 %v2164, %v2164
    %v2205 = vpack.c.bf16 %v2165, %v2165
    %v2206 = vpack.c.bf16 %v2166, %v2166
    %v2207 = vpack.c.bf16 %v2179, %v2179
    %v2208 = vpack.c.bf16 %v2180, %v2180
    %v2209 = vpack.c.bf16 %v2181, %v2181
    %v2210 = vpack.c.bf16 %v2182, %v2182
    %v2211 = vpack.c.bf16 %v2191, %v2191
    %v2212 = vpack.c.bf16 %v2192, %v2192
    %v2213 = vpack.c.bf16 %v2193, %v2193
    %v2214 = vpack.c.bf16 %v2194, %v2194
    %2215 = vmatprep.subr.bf16.mxu0 0
    %2216 = vmatpush1.bf16.msra.mxu0 %v1210
    %2217 = vmatprep.subr.bf16.mxu0 0
    %2218 = vmatpush1.bf16.msra.mxu0 %v1209
    %2219 = vmatprep.subr.bf16.mxu0 0
    %2220 = vmatpush1.bf16.msra.mxu0 %v1208
    %2221 = vmatprep.subr.bf16.mxu0 0
    %2222 = vmatpush1.bf16.msra.mxu0 %v1207
    %2223 = vmatprep.subr.bf16.mxu0 0
    %2224 = vmatpush1.bf16.msra.mxu0 %v1206
    %2225 = vmatprep.subr.bf16.mxu0 0
    %2226 = vmatpush1.bf16.msra.mxu0 %v1205
    %2227 = vmatprep.subr.bf16.mxu0 0
    %2228 = vmatpush1.bf16.msra.mxu0 %v1204
    %2229 = vmatprep.subr.bf16.mxu0 0
    %2230 = vmatpush1.bf16.msra.mxu0 %v1203
    %2231 = vmatprep.subr.bf16.mxu0 0
    %2232 = vmatpush2.bf16.msra.mxu0 %v1218
    %2233 = vmatprep.subr.bf16.mxu0 0
    %2234 = vmatpush2.bf16.msra.mxu0 %v1217
    %2235 = vmatprep.subr.bf16.mxu0 0
    %2236 = vmatpush2.bf16.msra.mxu0 %v1216
    %2237 = vmatprep.subr.bf16.mxu0 0
    %2238 = vmatpush2.bf16.msra.mxu0 %v1215
    %2239 = vmatprep.subr.bf16.mxu0 0
    %2240 = vmatpush2.bf16.msra.mxu0 %v1214
    %2241 = vmatprep.subr.bf16.mxu0 0
    %2242 = vmatpush2.bf16.msra.mxu0 %v1213
    %2243 = vmatprep.subr.bf16.mxu0 0
    %2244 = vmatpush2.bf16.msra.mxu0 %v1212
    %2245 = vmatprep.subr.bf16.mxu0 0
    %2246 = vmatpush2.bf16.msra.mxu0 %v1211
    %2247 = vmatprep.mubr.bf16.mxu0 %v2200
    %2248 = vmatmul.mubr.bf16.gmra.mxu0 %v2199
    %v2249 = vpop.f32.mrf.mxu0
    %v2250 = vadd.f32 %v690, %v2249
    %v2251 = vpop.f32.mrf.mxu0
    %v2252 = vpop.f32.mrf.mxu0
    %v2253 = vpop.f32.mrf.mxu0
    %2254 = vdwg.mxu0
    %2255 = vmatprep.subr.bf16.mxu0 0
    %2256 = vmatpush1.bf16.msra.mxu0 %v1226
    %2257 = vmatprep.subr.bf16.mxu0 0
    %2258 = vmatpush1.bf16.msra.mxu0 %v1225
    %2259 = vmatprep.subr.bf16.mxu0 0
    %2260 = vmatpush1.bf16.msra.mxu0 %v1224
    %2261 = vmatprep.subr.bf16.mxu0 0
    %2262 = vmatpush1.bf16.msra.mxu0 %v1223
    %2263 = vmatprep.subr.bf16.mxu0 0
    %2264 = vmatpush1.bf16.msra.mxu0 %v1222
    %2265 = vmatprep.subr.bf16.mxu0 0
    %2266 = vmatpush1.bf16.msra.mxu0 %v1221
    %2267 = vmatprep.subr.bf16.mxu0 0
    %2268 = vmatpush1.bf16.msra.mxu0 %v1220
    %2269 = vmatprep.subr.bf16.mxu0 0
    %2270 = vmatpush1.bf16.msra.mxu0 %v1219
    %2271 = vmatprep.subr.bf16.mxu0 0
    %2272 = vmatpush2.bf16.msra.mxu0 %v1234
    %2273 = vmatprep.subr.bf16.mxu0 0
    %2274 = vmatpush2.bf16.msra.mxu0 %v1233
    %2275 = vmatprep.subr.bf16.mxu0 0
    %2276 = vmatpush2.bf16.msra.mxu0 %v1232
    %2277 = vmatprep.subr.bf16.mxu0 0
    %2278 = vmatpush2.bf16.msra.mxu0 %v1231
    %2279 = vmatprep.subr.bf16.mxu0 0
    %2280 = vmatpush2.bf16.msra.mxu0 %v1230
    %2281 = vmatprep.subr.bf16.mxu0 0
    %2282 = vmatpush2.bf16.msra.mxu0 %v1229
    %2283 = vmatprep.subr.bf16.mxu0 0
    %2284 = vmatpush2.bf16.msra.mxu0 %v1228
    %2285 = vmatprep.subr.bf16.mxu0 0
    %2286 = vmatpush2.bf16.msra.mxu0 %v1227
    %2287 = vmatprep.mubr.bf16.mxu0 %v2202
    %2288 = vmatmul.mubr.bf16.gmra.mxu0 %v2201
    %v2289 = vpop.f32.mrf.mxu0
    %v2290 = vadd.f32 %v2250, %v2289
    %v2291 = vpop.f32.mrf.mxu0
    %v2292 = vpop.f32.mrf.mxu0
    %v2293 = vpop.f32.mrf.mxu0
    %2294 = vdwg.mxu0
    %2295 = vmatprep.subr.bf16.mxu0 0
    %2296 = vmatpush1.bf16.msra.mxu0 %v1242
    %2297 = vmatprep.subr.bf16.mxu0 0
    %2298 = vmatpush1.bf16.msra.mxu0 %v1241
    %2299 = vmatprep.subr.bf16.mxu0 0
    %2300 = vmatpush1.bf16.msra.mxu0 %v1240
    %2301 = vmatprep.subr.bf16.mxu0 0
    %2302 = vmatpush1.bf16.msra.mxu0 %v1239
    %2303 = vmatprep.subr.bf16.mxu0 0
    %2304 = vmatpush1.bf16.msra.mxu0 %v1238
    %2305 = vmatprep.subr.bf16.mxu0 0
    %2306 = vmatpush1.bf16.msra.mxu0 %v1237
    %2307 = vmatprep.subr.bf16.mxu0 0
    %2308 = vmatpush1.bf16.msra.mxu0 %v1236
    %2309 = vmatprep.subr.bf16.mxu0 0
    %2310 = vmatpush1.bf16.msra.mxu0 %v1235
    %2311 = vmatprep.subr.bf16.mxu0 0
    %2312 = vmatpush2.bf16.msra.mxu0 %v1250
    %2313 = vmatprep.subr.bf16.mxu0 0
    %2314 = vmatpush2.bf16.msra.mxu0 %v1249
    %2315 = vmatprep.subr.bf16.mxu0 0
    %2316 = vmatpush2.bf16.msra.mxu0 %v1248
    %2317 = vmatprep.subr.bf16.mxu0 0
    %2318 = vmatpush2.bf16.msra.mxu0 %v1247
    %2319 = vmatprep.subr.bf16.mxu0 0
    %2320 = vmatpush2.bf16.msra.mxu0 %v1246
    %2321 = vmatprep.subr.bf16.mxu0 0
    %2322 = vmatpush2.bf16.msra.mxu0 %v1245
    %2323 = vmatprep.subr.bf16.mxu0 0
    %2324 = vmatpush2.bf16.msra.mxu0 %v1244
    %2325 = vmatprep.subr.bf16.mxu0 0
    %2326 = vmatpush2.bf16.msra.mxu0 %v1243
    %2327 = vmatprep.mubr.bf16.mxu0 %v2204
    %2328 = vmatmul.mubr.bf16.gmra.mxu0 %v2203
    %v2329 = vpop.f32.mrf.mxu0
    %v2330 = vadd.f32 %v2290, %v2329
    %v2331 = vpop.f32.mrf.mxu0
    %v2332 = vpop.f32.mrf.mxu0
    %v2333 = vpop.f32.mrf.mxu0
    %2334 = vdwg.mxu0
    %2335 = vmatprep.subr.bf16.mxu0 0
    %2336 = vmatpush1.bf16.msra.mxu0 %v1258
    %2337 = vmatprep.subr.bf16.mxu0 0
    %2338 = vmatpush1.bf16.msra.mxu0 %v1257
    %2339 = vmatprep.subr.bf16.mxu0 0
    %2340 = vmatpush1.bf16.msra.mxu0 %v1256
    %2341 = vmatprep.subr.bf16.mxu0 0
    %2342 = vmatpush1.bf16.msra.mxu0 %v1255
    %2343 = vmatprep.subr.bf16.mxu0 0
    %2344 = vmatpush1.bf16.msra.mxu0 %v1254
    %2345 = vmatprep.subr.bf16.mxu0 0
    %2346 = vmatpush1.bf16.msra.mxu0 %v1253
    %2347 = vmatprep.subr.bf16.mxu0 0
    %2348 = vmatpush1.bf16.msra.mxu0 %v1252
    %2349 = vmatprep.subr.bf16.mxu0 0
    %2350 = vmatpush1.bf16.msra.mxu0 %v1251
    %2351 = vmatprep.subr.bf16.mxu0 0
    %2352 = vmatpush2.bf16.msra.mxu0 %v1266
    %2353 = vmatprep.subr.bf16.mxu0 0
    %2354 = vmatpush2.bf16.msra.mxu0 %v1265
    %2355 = vmatprep.subr.bf16.mxu0 0
    %2356 = vmatpush2.bf16.msra.mxu0 %v1264
    %2357 = vmatprep.subr.bf16.mxu0 0
    %2358 = vmatpush2.bf16.msra.mxu0 %v1263
    %2359 = vmatprep.subr.bf16.mxu0 0
    %2360 = vmatpush2.bf16.msra.mxu0 %v1262
    %2361 = vmatprep.subr.bf16.mxu0 0
    %2362 = vmatpush2.bf16.msra.mxu0 %v1261
    %2363 = vmatprep.subr.bf16.mxu0 0
    %2364 = vmatpush2.bf16.msra.mxu0 %v1260
    %2365 = vmatprep.subr.bf16.mxu0 0
    %2366 = vmatpush2.bf16.msra.mxu0 %v1259
    %2367 = vmatprep.mubr.bf16.mxu0 %v2206
    %2368 = vmatmul.mubr.bf16.gmra.mxu0 %v2205
    %v2369 = vpop.f32.mrf.mxu0
    %v2370 = vadd.f32 %v2330, %v2369
    %v2371 = vpop.f32.mrf.mxu0
    %v2372 = vpop.f32.mrf.mxu0
    %v2373 = vpop.f32.mrf.mxu0
    %2374 = vdwg.mxu0
    %2375 = vmatprep.subr.bf16.mxu0 0
    %2376 = vmatpush1.bf16.msra.mxu0 %v1274
    %2377 = vmatprep.subr.bf16.mxu0 0
    %2378 = vmatpush1.bf16.msra.mxu0 %v1273
    %2379 = vmatprep.subr.bf16.mxu0 0
    %2380 = vmatpush1.bf16.msra.mxu0 %v1272
    %2381 = vmatprep.subr.bf16.mxu0 0
    %2382 = vmatpush1.bf16.msra.mxu0 %v1271
    %2383 = vmatprep.subr.bf16.mxu0 0
    %2384 = vmatpush1.bf16.msra.mxu0 %v1270
    %2385 = vmatprep.subr.bf16.mxu0 0
    %2386 = vmatpush1.bf16.msra.mxu0 %v1269
    %2387 = vmatprep.subr.bf16.mxu0 0
    %2388 = vmatpush1.bf16.msra.mxu0 %v1268
    %2389 = vmatprep.subr.bf16.mxu0 0
    %2390 = vmatpush1.bf16.msra.mxu0 %v1267
    %2391 = vmatprep.subr.bf16.mxu0 0
    %2392 = vmatpush2.bf16.msra.mxu0 %v1282
    %2393 = vmatprep.subr.bf16.mxu0 0
    %2394 = vmatpush2.bf16.msra.mxu0 %v1281
    %2395 = vmatprep.subr.bf16.mxu0 0
    %2396 = vmatpush2.bf16.msra.mxu0 %v1280
    %2397 = vmatprep.subr.bf16.mxu0 0
    %2398 = vmatpush2.bf16.msra.mxu0 %v1279
    %2399 = vmatprep.subr.bf16.mxu0 0
    %2400 = vmatpush2.bf16.msra.mxu0 %v1278
    %2401 = vmatprep.subr.bf16.mxu0 0
    %2402 = vmatpush2.bf16.msra.mxu0 %v1277
    %2403 = vmatprep.subr.bf16.mxu0 0
    %2404 = vmatpush2.bf16.msra.mxu0 %v1276
    %2405 = vmatprep.subr.bf16.mxu0 0
    %2406 = vmatpush2.bf16.msra.mxu0 %v1275
    %2407 = vmatprep.mubr.bf16.mxu0 %v2208
    %2408 = vmatmul.mubr.bf16.gmra.mxu0 %v2207
    %v2409 = vpop.f32.mrf.mxu0
    %v2410 = vadd.f32 %v2370, %v2409
    %v2411 = vpop.f32.mrf.mxu0
    %v2412 = vpop.f32.mrf.mxu0
    %v2413 = vpop.f32.mrf.mxu0
    %2414 = vdwg.mxu0
    %2415 = vmatprep.subr.bf16.mxu0 0
    %2416 = vmatpush1.bf16.msra.mxu0 %v1290
    %2417 = vmatprep.subr.bf16.mxu0 0
    %2418 = vmatpush1.bf16.msra.mxu0 %v1289
    %2419 = vmatprep.subr.bf16.mxu0 0
    %2420 = vmatpush1.bf16.msra.mxu0 %v1288
    %2421 = vmatprep.subr.bf16.mxu0 0
    %2422 = vmatpush1.bf16.msra.mxu0 %v1287
    %2423 = vmatprep.subr.bf16.mxu0 0
    %2424 = vmatpush1.bf16.msra.mxu0 %v1286
    %2425 = vmatprep.subr.bf16.mxu0 0
    %2426 = vmatpush1.bf16.msra.mxu0 %v1285
    %2427 = vmatprep.subr.bf16.mxu0 0
    %2428 = vmatpush1.bf16.msra.mxu0 %v1284
    %2429 = vmatprep.subr.bf16.mxu0 0
    %2430 = vmatpush1.bf16.msra.mxu0 %v1283
    %2431 = vmatprep.subr.bf16.mxu0 0
    %2432 = vmatpush2.bf16.msra.mxu0 %v1298
    %2433 = vmatprep.subr.bf16.mxu0 0
    %2434 = vmatpush2.bf16.msra.mxu0 %v1297
    %2435 = vmatprep.subr.bf16.mxu0 0
    %2436 = vmatpush2.bf16.msra.mxu0 %v1296
    %2437 = vmatprep.subr.bf16.mxu0 0
    %2438 = vmatpush2.bf16.msra.mxu0 %v1295
    %2439 = vmatprep.subr.bf16.mxu0 0
    %2440 = vmatpush2.bf16.msra.mxu0 %v1294
    %2441 = vmatprep.subr.bf16.mxu0 0
    %2442 = vmatpush2.bf16.msra.mxu0 %v1293
    %2443 = vmatprep.subr.bf16.mxu0 0
    %2444 = vmatpush2.bf16.msra.mxu0 %v1292
    %2445 = vmatprep.subr.bf16.mxu0 0
    %2446 = vmatpush2.bf16.msra.mxu0 %v1291
    %2447 = vmatprep.mubr.bf16.mxu0 %v2210
    %2448 = vmatmul.mubr.bf16.gmra.mxu0 %v2209
    %v2449 = vpop.f32.mrf.mxu0
    %v2450 = vadd.f32 %v2410, %v2449
    %v2451 = vpop.f32.mrf.mxu0
    %v2452 = vpop.f32.mrf.mxu0
    %v2453 = vpop.f32.mrf.mxu0
    %2454 = vdwg.mxu0
    %2455 = vmatprep.subr.bf16.mxu0 0
    %2456 = vmatpush1.bf16.msra.mxu0 %v1306
    %2457 = vmatprep.subr.bf16.mxu0 0
    %2458 = vmatpush1.bf16.msra.mxu0 %v1305
    %2459 = vmatprep.subr.bf16.mxu0 0
    %2460 = vmatpush1.bf16.msra.mxu0 %v1304
    %2461 = vmatprep.subr.bf16.mxu0 0
    %2462 = vmatpush1.bf16.msra.mxu0 %v1303
    %2463 = vmatprep.subr.bf16.mxu0 0
    %2464 = vmatpush1.bf16.msra.mxu0 %v1302
    %2465 = vmatprep.subr.bf16.mxu0 0
    %2466 = vmatpush1.bf16.msra.mxu0 %v1301
    %2467 = vmatprep.subr.bf16.mxu0 0
    %2468 = vmatpush1.bf16.msra.mxu0 %v1300
    %2469 = vmatprep.subr.bf16.mxu0 0
    %2470 = vmatpush1.bf16.msra.mxu0 %v1299
    %2471 = vmatprep.subr.bf16.mxu0 0
    %2472 = vmatpush2.bf16.msra.mxu0 %v1314
    %2473 = vmatprep.subr.bf16.mxu0 0
    %2474 = vmatpush2.bf16.msra.mxu0 %v1313
    %2475 = vmatprep.subr.bf16.mxu0 0
    %2476 = vmatpush2.bf16.msra.mxu0 %v1312
    %2477 = vmatprep.subr.bf16.mxu0 0
    %2478 = vmatpush2.bf16.msra.mxu0 %v1311
    %2479 = vmatprep.subr.bf16.mxu0 0
    %2480 = vmatpush2.bf16.msra.mxu0 %v1310
    %2481 = vmatprep.subr.bf16.mxu0 0
    %2482 = vmatpush2.bf16.msra.mxu0 %v1309
    %2483 = vmatprep.subr.bf16.mxu0 0
    %2484 = vmatpush2.bf16.msra.mxu0 %v1308
    %2485 = vmatprep.subr.bf16.mxu0 0
    %2486 = vmatpush2.bf16.msra.mxu0 %v1307
    %2487 = vmatprep.mubr.bf16.mxu0 %v2212
    %2488 = vmatmul.mubr.bf16.gmra.mxu0 %v2211
    %v2489 = vpop.f32.mrf.mxu0
    %v2490 = vadd.f32 %v2450, %v2489
    %v2491 = vpop.f32.mrf.mxu0
    %v2492 = vpop.f32.mrf.mxu0
    %v2493 = vpop.f32.mrf.mxu0
    %2494 = vdwg.mxu0
    %2495 = vmatprep.subr.bf16.mxu0 0
    %2496 = vmatpush1.bf16.msra.mxu0 %v1322
    %2497 = vmatprep.subr.bf16.mxu0 0
    %2498 = vmatpush1.bf16.msra.mxu0 %v1321
    %2499 = vmatprep.subr.bf16.mxu0 0
    %2500 = vmatpush1.bf16.msra.mxu0 %v1320
    %2501 = vmatprep.subr.bf16.mxu0 0
    %2502 = vmatpush1.bf16.msra.mxu0 %v1319
    %2503 = vmatprep.subr.bf16.mxu0 0
    %2504 = vmatpush1.bf16.msra.mxu0 %v1318
    %2505 = vmatprep.subr.bf16.mxu0 0
    %2506 = vmatpush1.bf16.msra.mxu0 %v1317
    %2507 = vmatprep.subr.bf16.mxu0 0
    %2508 = vmatpush1.bf16.msra.mxu0 %v1316
    %2509 = vmatprep.subr.bf16.mxu0 0
    %2510 = vmatpush1.bf16.msra.mxu0 %v1315
    %2511 = vmatprep.subr.bf16.mxu0 0
    %2512 = vmatpush2.bf16.msra.mxu0 %v1330
    %2513 = vmatprep.subr.bf16.mxu0 0
    %2514 = vmatpush2.bf16.msra.mxu0 %v1329
    %2515 = vmatprep.subr.bf16.mxu0 0
    %2516 = vmatpush2.bf16.msra.mxu0 %v1328
    %2517 = vmatprep.subr.bf16.mxu0 0
    %2518 = vmatpush2.bf16.msra.mxu0 %v1327
    %2519 = vmatprep.subr.bf16.mxu0 0
    %2520 = vmatpush2.bf16.msra.mxu0 %v1326
    %2521 = vmatprep.subr.bf16.mxu0 0
    %2522 = vmatpush2.bf16.msra.mxu0 %v1325
    %2523 = vmatprep.subr.bf16.mxu0 0
    %2524 = vmatpush2.bf16.msra.mxu0 %v1324
    %2525 = vmatprep.subr.bf16.mxu0 0
    %2526 = vmatpush2.bf16.msra.mxu0 %v1323
    %2527 = vmatprep.mubr.bf16.mxu0 %v2214
    %2528 = vmatmul.mubr.bf16.gmra.mxu0 %v2213
    %v2529 = vpop.f32.mrf.mxu0
    %v2530 = vadd.f32 %v2490, %v2529
    %v2531 = vpop.f32.mrf.mxu0
    %v2532 = vpop.f32.mrf.mxu0
    %v2533 = vpop.f32.mrf.mxu0
    %2534 = vdwg.mxu0
    %v2535 = vmax.f32 %v2530, 0.0
    %2536 = vst [vmem:[#allocation3 + $0x10] sm:$0x3f] %v2535
    %v2537 = vld [vmem:[#allocation3] sm:$0x3]
    %v2538 = vld [vmem:[#allocation3 + $0x8] sm:$0x3]
    %v2539 = vld [vmem:[#allocation3 + $0x10] sm:$0x3]
    %v2540 = vpack.c.bf16 %v2537, %v2537
    %v2541 = vpack.c.bf16 %v2538, %v2538
    %v2542 = vpack.c.bf16 %v2539, %v2539
    %v2543 = vld [vmem:[%s1 + $0x480] sm:$0xf]
    %v2544 = vld [vmem:[%s1 + $0x484] sm:$0xf]
    %v2545 = vld [vmem:[%s1 + $0x488] sm:$0xf]
    %v2546 = vld [vmem:[%s1 + $0x48c] sm:$0xf]
    %v2547 = vld [vmem:[%s1 + $0x490] sm:$0xf]
    %v2548 = vld [vmem:[%s1 + $0x494] sm:$0xf]
    %v2549 = vld [vmem:[%s1 + $0x498] sm:$0xf]
    %v2550 = vld [vmem:[%s1 + $0x49c] sm:$0xf]
    %v2551 = vld [vmem:[%s1 + $0x4a0] sm:$0xf]
    %v2552 = vld [vmem:[%s1 + $0x4a4] sm:$0xf]
    %v2553 = vld [vmem:[%s1 + $0x4a8] sm:$0xf]
    %v2554 = vld [vmem:[%s1 + $0x4ac] sm:$0xf]
    %v2555 = vld [vmem:[%s1 + $0x4b0] sm:$0xf]
    %v2556 = vld [vmem:[%s1 + $0x4b4] sm:$0xf]
    %v2557 = vld [vmem:[%s1 + $0x4b8] sm:$0xf]
    %v2558 = vld [vmem:[%s1 + $0x4bc] sm:$0xf]
    %v2559 = vld [vmem:[%s1 + $0x4c0] sm:$0xf]
    %v2560 = vld [vmem:[%s1 + $0x4c4] sm:$0xf]
    %v2561 = vld [vmem:[%s1 + $0x4c8] sm:$0xf]
    %v2562 = vld [vmem:[%s1 + $0x4cc] sm:$0xf]
    %v2563 = vld [vmem:[%s1 + $0x4d0] sm:$0xf]
    %v2564 = vld [vmem:[%s1 + $0x4d4] sm:$0xf]
    %v2565 = vld [vmem:[%s1 + $0x4d8] sm:$0xf]
    %v2566 = vld [vmem:[%s1 + $0x4dc] sm:$0xf]
    %v2567 = vld [vmem:[%s1 + $0x4e0] sm:$0xf]
    %v2568 = vld [vmem:[%s1 + $0x4e4] sm:$0xf]
    %v2569 = vld [vmem:[%s1 + $0x4e8] sm:$0xf]
    %v2570 = vld [vmem:[%s1 + $0x4ec] sm:$0xf]
    %v2571 = vld [vmem:[%s1 + $0x4f0] sm:$0xf]
    %v2572 = vld [vmem:[%s1 + $0x4f4] sm:$0xf]
    %v2573 = vld [vmem:[%s1 + $0x4f8] sm:$0xf]
    %v2574 = vld [vmem:[%s1 + $0x4fc] sm:$0xf]
    %v2575 = vld [vmem:[%s1 + $0x500] sm:$0xf]
    %v2576 = vld [vmem:[%s1 + $0x504] sm:$0xf]
    %v2577 = vld [vmem:[%s1 + $0x508] sm:$0xf]
    %v2578 = vld [vmem:[%s1 + $0x50c] sm:$0xf]
    %v2579 = vld [vmem:[%s1 + $0x510] sm:$0xf]
    %v2580 = vld [vmem:[%s1 + $0x514] sm:$0xf]
    %v2581 = vld [vmem:[%s1 + $0x518] sm:$0xf]
    %v2582 = vld [vmem:[%s1 + $0x51c] sm:$0xf]
    %v2583 = vld [vmem:[%s1 + $0x520] sm:$0xf]
    %v2584 = vld [vmem:[%s1 + $0x524] sm:$0xf]
    %v2585 = vld [vmem:[%s1 + $0x528] sm:$0xf]
    %v2586 = vld [vmem:[%s1 + $0x52c] sm:$0xf]
    %v2587 = vld [vmem:[%s1 + $0x530] sm:$0xf]
    %v2588 = vld [vmem:[%s1 + $0x534] sm:$0xf]
    %v2589 = vld [vmem:[%s1 + $0x538] sm:$0xf]
    %v2590 = vld [vmem:[%s1 + $0x53c] sm:$0xf]
    %v2591 = vld [vmem:[#allocation3] sm:$0xc]
    %v2592 = vld [vmem:[#allocation3 + $0x8] sm:$0xc]
    %v2593 = vld [vmem:[#allocation3 + $0x10] sm:$0xc]
    %v2594 = vpack.c.bf16 %v2591, %v2591
    %v2595 = vpack.c.bf16 %v2592, %v2592
    %v2596 = vpack.c.bf16 %v2593, %v2593
    %v2597 = vld [vmem:[%s1 + $0x540] sm:$0xf]
    %v2598 = vld [vmem:[%s1 + $0x544] sm:$0xf]
    %v2599 = vld [vmem:[%s1 + $0x548] sm:$0xf]
    %v2600 = vld [vmem:[%s1 + $0x54c] sm:$0xf]
    %v2601 = vld [vmem:[%s1 + $0x550] sm:$0xf]
    %v2602 = vld [vmem:[%s1 + $0x554] sm:$0xf]
    %v2603 = vld [vmem:[%s1 + $0x558] sm:$0xf]
    %v2604 = vld [vmem:[%s1 + $0x55c] sm:$0xf]
    %v2605 = vld [vmem:[%s1 + $0x560] sm:$0xf]
    %v2606 = vld [vmem:[%s1 + $0x564] sm:$0xf]
    %v2607 = vld [vmem:[%s1 + $0x568] sm:$0xf]
    %v2608 = vld [vmem:[%s1 + $0x56c] sm:$0xf]
    %v2609 = vld [vmem:[%s1 + $0x570] sm:$0xf]
    %v2610 = vld [vmem:[%s1 + $0x574] sm:$0xf]
    %v2611 = vld [vmem:[%s1 + $0x578] sm:$0xf]
    %v2612 = vld [vmem:[%s1 + $0x57c] sm:$0xf]
    %v2613 = vld [vmem:[%s1 + $0x580] sm:$0xf]
    %v2614 = vld [vmem:[%s1 + $0x584] sm:$0xf]
    %v2615 = vld [vmem:[%s1 + $0x588] sm:$0xf]
    %v2616 = vld [vmem:[%s1 + $0x58c] sm:$0xf]
    %v2617 = vld [vmem:[%s1 + $0x590] sm:$0xf]
    %v2618 = vld [vmem:[%s1 + $0x594] sm:$0xf]
    %v2619 = vld [vmem:[%s1 + $0x598] sm:$0xf]
    %v2620 = vld [vmem:[%s1 + $0x59c] sm:$0xf]
    %v2621 = vld [vmem:[%s1 + $0x5a0] sm:$0xf]
    %v2622 = vld [vmem:[%s1 + $0x5a4] sm:$0xf]
    %v2623 = vld [vmem:[%s1 + $0x5a8] sm:$0xf]
    %v2624 = vld [vmem:[%s1 + $0x5ac] sm:$0xf]
    %v2625 = vld [vmem:[%s1 + $0x5b0] sm:$0xf]
    %v2626 = vld [vmem:[%s1 + $0x5b4] sm:$0xf]
    %v2627 = vld [vmem:[%s1 + $0x5b8] sm:$0xf]
    %v2628 = vld [vmem:[%s1 + $0x5bc] sm:$0xf]
    %v2629 = vld [vmem:[%s1 + $0x5c0] sm:$0xf]
    %v2630 = vld [vmem:[%s1 + $0x5c4] sm:$0xf]
    %v2631 = vld [vmem:[%s1 + $0x5c8] sm:$0xf]
    %v2632 = vld [vmem:[%s1 + $0x5cc] sm:$0xf]
    %v2633 = vld [vmem:[%s1 + $0x5d0] sm:$0xf]
    %v2634 = vld [vmem:[%s1 + $0x5d4] sm:$0xf]
    %v2635 = vld [vmem:[%s1 + $0x5d8] sm:$0xf]
    %v2636 = vld [vmem:[%s1 + $0x5dc] sm:$0xf]
    %v2637 = vld [vmem:[%s1 + $0x5e0] sm:$0xf]
    %v2638 = vld [vmem:[%s1 + $0x5e4] sm:$0xf]
    %v2639 = vld [vmem:[%s1 + $0x5e8] sm:$0xf]
    %v2640 = vld [vmem:[%s1 + $0x5ec] sm:$0xf]
    %v2641 = vld [vmem:[%s1 + $0x5f0] sm:$0xf]
    %v2642 = vld [vmem:[%s1 + $0x5f4] sm:$0xf]
    %v2643 = vld [vmem:[%s1 + $0x5f8] sm:$0xf]
    %v2644 = vld [vmem:[%s1 + $0x5fc] sm:$0xf]
    %v2648 = vrot.slane %v2594, 1
    %v2649 = vrot.slane %v2595, 1
    %v2650 = vrot.slane %v2596, 1
    %v2702 = vunpack.c.l.b16 %v2597
    %v2703 = vunpack.c.l.b16 %v2598
    %v2704 = vunpack.c.l.b16 %v2599
    %v2705 = vunpack.c.l.b16 %v2600
    %v2706 = vunpack.c.l.b16 %v2601
    %v2707 = vunpack.c.l.b16 %v2602
    %v2708 = vunpack.c.l.b16 %v2603
    %v2709 = vunpack.c.l.b16 %v2604
    %v2710 = vunpack.c.l.b16 %v2605
    %v2711 = vunpack.c.l.b16 %v2606
    %v2712 = vunpack.c.l.b16 %v2607
    %v2713 = vunpack.c.l.b16 %v2608
    %v2714 = vunpack.c.l.b16 %v2609
    %v2715 = vunpack.c.l.b16 %v2610
    %v2716 = vunpack.c.l.b16 %v2611
    %v2717 = vunpack.c.l.b16 %v2612
    %v2718 = vunpack.c.l.b16 %v2613
    %v2719 = vunpack.c.l.b16 %v2614
    %v2720 = vunpack.c.l.b16 %v2615
    %v2721 = vunpack.c.l.b16 %v2616
    %v2722 = vunpack.c.l.b16 %v2617
    %v2723 = vunpack.c.l.b16 %v2618
    %v2724 = vunpack.c.l.b16 %v2619
    %v2725 = vunpack.c.l.b16 %v2620
    %v2726 = vunpack.c.l.b16 %v2621
    %v2727 = vunpack.c.l.b16 %v2622
    %v2728 = vunpack.c.l.b16 %v2623
    %v2729 = vunpack.c.l.b16 %v2624
    %v2730 = vunpack.c.l.b16 %v2625
    %v2731 = vunpack.c.l.b16 %v2626
    %v2732 = vunpack.c.l.b16 %v2627
    %v2733 = vunpack.c.l.b16 %v2628
    %v2734 = vunpack.c.l.b16 %v2629
    %v2735 = vunpack.c.l.b16 %v2630
    %v2736 = vunpack.c.l.b16 %v2631
    %v2737 = vunpack.c.l.b16 %v2632
    %v2738 = vunpack.c.l.b16 %v2633
    %v2739 = vunpack.c.l.b16 %v2634
    %v2740 = vunpack.c.l.b16 %v2635
    %v2741 = vunpack.c.l.b16 %v2636
    %v2742 = vunpack.c.l.b16 %v2637
    %v2743 = vunpack.c.l.b16 %v2638
    %v2744 = vunpack.c.l.b16 %v2639
    %v2745 = vunpack.c.l.b16 %v2640
    %v2746 = vunpack.c.l.b16 %v2641
    %v2747 = vunpack.c.l.b16 %v2642
    %v2748 = vunpack.c.l.b16 %v2643
    %v2749 = vunpack.c.l.b16 %v2644
    %v2750 = vpack.c.b16 %v2703, %v2702
    %v2751 = vpack.c.b16 %v2705, %v2704
    %v2752 = vpack.c.b16 %v2707, %v2706
    %v2753 = vpack.c.b16 %v2709, %v2708
    %v2754 = vpack.c.b16 %v2711, %v2710
    %v2755 = vpack.c.b16 %v2713, %v2712
    %v2756 = vpack.c.b16 %v2715, %v2714
    %v2757 = vpack.c.b16 %v2717, %v2716
    %v2758 = vpack.c.b16 %v2719, %v2718
    %v2759 = vpack.c.b16 %v2721, %v2720
    %v2760 = vpack.c.b16 %v2723, %v2722
    %v2761 = vpack.c.b16 %v2725, %v2724
    %v2762 = vpack.c.b16 %v2727, %v2726
    %v2763 = vpack.c.b16 %v2729, %v2728
    %v2764 = vpack.c.b16 %v2731, %v2730
    %v2765 = vpack.c.b16 %v2733, %v2732
    %v2766 = vpack.c.b16 %v2735, %v2734
    %v2767 = vpack.c.b16 %v2737, %v2736
    %v2768 = vpack.c.b16 %v2739, %v2738
    %v2769 = vpack.c.b16 %v2741, %v2740
    %v2770 = vpack.c.b16 %v2743, %v2742
    %v2771 = vpack.c.b16 %v2745, %v2744
    %v2772 = vpack.c.b16 %v2747, %v2746
    %v2773 = vpack.c.b16 %v2749, %v2748
    %2798 = vmatprep.subr.bf16.mxu0 0
    %2799 = vmatpush1.bf16.msra.mxu0 %v2757
    %2800 = vmatprep.subr.bf16.mxu0 0
    %2801 = vmatpush1.bf16.msra.mxu0 %v2756
    %2802 = vmatprep.subr.bf16.mxu0 0
    %2803 = vmatpush1.bf16.msra.mxu0 %v2755
    %2804 = vmatprep.subr.bf16.mxu0 0
    %2805 = vmatpush1.bf16.msra.mxu0 %v2754
    %2806 = vmatprep.subr.bf16.mxu0 0
    %2807 = vmatpush1.bf16.msra.mxu0 %v2753
    %2808 = vmatprep.subr.bf16.mxu0 0
    %2809 = vmatpush1.bf16.msra.mxu0 %v2752
    %2810 = vmatprep.subr.bf16.mxu0 0
    %2811 = vmatpush1.bf16.msra.mxu0 %v2751
    %2812 = vmatprep.subr.bf16.mxu0 0
    %2813 = vmatpush1.bf16.msra.mxu0 %v2750
    %2814 = vmatprep.subr.bf16.mxu0 0
    %2815 = vmatpush2.bf16.msra.mxu0 %v2765
    %2816 = vmatprep.subr.bf16.mxu0 0
    %2817 = vmatpush2.bf16.msra.mxu0 %v2764
    %2818 = vmatprep.subr.bf16.mxu0 0
    %2819 = vmatpush2.bf16.msra.mxu0 %v2763
    %2820 = vmatprep.subr.bf16.mxu0 0
    %2821 = vmatpush2.bf16.msra.mxu0 %v2762
    %2822 = vmatprep.subr.bf16.mxu0 0
    %2823 = vmatpush2.bf16.msra.mxu0 %v2761
    %2824 = vmatprep.subr.bf16.mxu0 0
    %2825 = vmatpush2.bf16.msra.mxu0 %v2760
    %2826 = vmatprep.subr.bf16.mxu0 0
    %2827 = vmatpush2.bf16.msra.mxu0 %v2759
    %2828 = vmatprep.subr.bf16.mxu0 0
    %2829 = vmatpush2.bf16.msra.mxu0 %v2758
    %2830 = vmatprep.mubr.bf16.mxu0 %v2649
    %2831 = vmatmul.mubr.bf16.gmra.mxu0 %v2648
    %v2832 = vpop.f32.mrf.mxu0
    %v2833 = vadd.f32 0.0, %v2832
    %v2834 = vpop.f32.mrf.mxu0
    %v2835 = vpop.f32.mrf.mxu0
    %v2836 = vpop.f32.mrf.mxu0
    %2837 = vdwg.mxu0
    %2838 = vmatprep.subr.bf16.mxu0 0
    %2839 = vmatpush1.bf16.msra.mxu0 %v2773
    %2840 = vmatprep.subr.bf16.mxu0 0
    %2841 = vmatpush1.bf16.msra.mxu0 %v2772
    %2842 = vmatprep.subr.bf16.mxu0 0
    %2843 = vmatpush1.bf16.msra.mxu0 %v2771
    %2844 = vmatprep.subr.bf16.mxu0 0
    %2845 = vmatpush1.bf16.msra.mxu0 %v2770
    %2846 = vmatprep.subr.bf16.mxu0 0
    %2847 = vmatpush1.bf16.msra.mxu0 %v2769
    %2848 = vmatprep.subr.bf16.mxu0 0
    %2849 = vmatpush1.bf16.msra.mxu0 %v2768
    %2850 = vmatprep.subr.bf16.mxu0 0
    %2851 = vmatpush1.bf16.msra.mxu0 %v2767
    %2852 = vmatprep.subr.bf16.mxu0 0
    %2853 = vmatpush1.bf16.msra.mxu0 %v2766
    %2854 = vmatprep.subr.bf16.mxu0 0
    %2855 = vmatpush2.bf16.msra.mxu0 0
    %2856 = vmatprep.subr.bf16.mxu0 0
    %2857 = vmatpush2.bf16.msra.mxu0 0
    %2858 = vmatprep.subr.bf16.mxu0 0
    %2859 = vmatpush2.bf16.msra.mxu0 0
    %2860 = vmatprep.subr.bf16.mxu0 0
    %2861 = vmatpush2.bf16.msra.mxu0 0
    %2862 = vmatprep.subr.bf16.mxu0 0
    %2863 = vmatpush2.bf16.msra.mxu0 0
    %2864 = vmatprep.subr.bf16.mxu0 0
    %2865 = vmatpush2.bf16.msra.mxu0 0
    %2866 = vmatprep.subr.bf16.mxu0 0
    %2867 = vmatpush2.bf16.msra.mxu0 0
    %2868 = vmatprep.subr.bf16.mxu0 0
    %2869 = vmatpush2.bf16.msra.mxu0 0
    %2870 = vmatprep.mubr.bf16.mxu0 0
    %2871 = vmatmul.mubr.bf16.gmra.mxu0 %v2650
    %v2872 = vpop.f32.mrf.mxu0
    %v2873 = vadd.f32 %v2833, %v2872
    %v2874 = vpop.f32.mrf.mxu0
    %v2875 = vpop.f32.mrf.mxu0
    %v2876 = vpop.f32.mrf.mxu0
    %2877 = vdwg.mxu0
    %v2926 = vunpack.c.l.b16 %v2543
    %v2927 = vunpack.c.l.b16 %v2544
    %v2928 = vunpack.c.l.b16 %v2545
    %v2929 = vunpack.c.l.b16 %v2546
    %v2930 = vunpack.c.l.b16 %v2547
    %v2931 = vunpack.c.l.b16 %v2548
    %v2932 = vunpack.c.l.b16 %v2549
    %v2933 = vunpack.c.l.b16 %v2550
    %v2934 = vunpack.c.l.b16 %v2551
    %v2935 = vunpack.c.l.b16 %v2552
    %v2936 = vunpack.c.l.b16 %v2553
    %v2937 = vunpack.c.l.b16 %v2554
    %v2938 = vunpack.c.l.b16 %v2555
    %v2939 = vunpack.c.l.b16 %v2556
    %v2940 = vunpack.c.l.b16 %v2557
    %v2941 = vunpack.c.l.b16 %v2558
    %v2942 = vunpack.c.l.b16 %v2559
    %v2943 = vunpack.c.l.b16 %v2560
    %v2944 = vunpack.c.l.b16 %v2561
    %v2945 = vunpack.c.l.b16 %v2562
    %v2946 = vunpack.c.l.b16 %v2563
    %v2947 = vunpack.c.l.b16 %v2564
    %v2948 = vunpack.c.l.b16 %v2565
    %v2949 = vunpack.c.l.b16 %v2566
    %v2950 = vunpack.c.l.b16 %v2567
    %v2951 = vunpack.c.l.b16 %v2568
    %v2952 = vunpack.c.l.b16 %v2569
    %v2953 = vunpack.c.l.b16 %v2570
    %v2954 = vunpack.c.l.b16 %v2571
    %v2955 = vunpack.c.l.b16 %v2572
    %v2956 = vunpack.c.l.b16 %v2573
    %v2957 = vunpack.c.l.b16 %v2574
    %v2958 = vunpack.c.l.b16 %v2575
    %v2959 = vunpack.c.l.b16 %v2576
    %v2960 = vunpack.c.l.b16 %v2577
    %v2961 = vunpack.c.l.b16 %v2578
    %v2962 = vunpack.c.l.b16 %v2579
    %v2963 = vunpack.c.l.b16 %v2580
    %v2964 = vunpack.c.l.b16 %v2581
    %v2965 = vunpack.c.l.b16 %v2582
    %v2966 = vunpack.c.l.b16 %v2583
    %v2967 = vunpack.c.l.b16 %v2584
    %v2968 = vunpack.c.l.b16 %v2585
    %v2969 = vunpack.c.l.b16 %v2586
    %v2970 = vunpack.c.l.b16 %v2587
    %v2971 = vunpack.c.l.b16 %v2588
    %v2972 = vunpack.c.l.b16 %v2589
    %v2973 = vunpack.c.l.b16 %v2590
    %v2974 = vpack.c.b16 %v2927, %v2926
    %v2975 = vpack.c.b16 %v2929, %v2928
    %v2976 = vpack.c.b16 %v2931, %v2930
    %v2977 = vpack.c.b16 %v2933, %v2932
    %v2978 = vpack.c.b16 %v2935, %v2934
    %v2979 = vpack.c.b16 %v2937, %v2936
    %v2980 = vpack.c.b16 %v2939, %v2938
    %v2981 = vpack.c.b16 %v2941, %v2940
    %v2982 = vpack.c.b16 %v2943, %v2942
    %v2983 = vpack.c.b16 %v2945, %v2944
    %v2984 = vpack.c.b16 %v2947, %v2946
    %v2985 = vpack.c.b16 %v2949, %v2948
    %v2986 = vpack.c.b16 %v2951, %v2950
    %v2987 = vpack.c.b16 %v2953, %v2952
    %v2988 = vpack.c.b16 %v2955, %v2954
    %v2989 = vpack.c.b16 %v2957, %v2956
    %v2990 = vpack.c.b16 %v2959, %v2958
    %v2991 = vpack.c.b16 %v2961, %v2960
    %v2992 = vpack.c.b16 %v2963, %v2962
    %v2993 = vpack.c.b16 %v2965, %v2964
    %v2994 = vpack.c.b16 %v2967, %v2966
    %v2995 = vpack.c.b16 %v2969, %v2968
    %v2996 = vpack.c.b16 %v2971, %v2970
    %v2997 = vpack.c.b16 %v2973, %v2972
    %3022 = vmatprep.subr.bf16.mxu0 0
    %3023 = vmatpush1.bf16.msra.mxu0 %v2981
    %3024 = vmatprep.subr.bf16.mxu0 0
    %3025 = vmatpush1.bf16.msra.mxu0 %v2980
    %3026 = vmatprep.subr.bf16.mxu0 0
    %3027 = vmatpush1.bf16.msra.mxu0 %v2979
    %3028 = vmatprep.subr.bf16.mxu0 0
    %3029 = vmatpush1.bf16.msra.mxu0 %v2978
    %3030 = vmatprep.subr.bf16.mxu0 0
    %3031 = vmatpush1.bf16.msra.mxu0 %v2977
    %3032 = vmatprep.subr.bf16.mxu0 0
    %3033 = vmatpush1.bf16.msra.mxu0 %v2976
    %3034 = vmatprep.subr.bf16.mxu0 0
    %3035 = vmatpush1.bf16.msra.mxu0 %v2975
    %3036 = vmatprep.subr.bf16.mxu0 0
    %3037 = vmatpush1.bf16.msra.mxu0 %v2974
    %3038 = vmatprep.subr.bf16.mxu0 0
    %3039 = vmatpush2.bf16.msra.mxu0 %v2989
    %3040 = vmatprep.subr.bf16.mxu0 0
    %3041 = vmatpush2.bf16.msra.mxu0 %v2988
    %3042 = vmatprep.subr.bf16.mxu0 0
    %3043 = vmatpush2.bf16.msra.mxu0 %v2987
    %3044 = vmatprep.subr.bf16.mxu0 0
    %3045 = vmatpush2.bf16.msra.mxu0 %v2986
    %3046 = vmatprep.subr.bf16.mxu0 0
    %3047 = vmatpush2.bf16.msra.mxu0 %v2985
    %3048 = vmatprep.subr.bf16.mxu0 0
    %3049 = vmatpush2.bf16.msra.mxu0 %v2984
    %3050 = vmatprep.subr.bf16.mxu0 0
    %3051 = vmatpush2.bf16.msra.mxu0 %v2983
    %3052 = vmatprep.subr.bf16.mxu0 0
    %3053 = vmatpush2.bf16.msra.mxu0 %v2982
    %3054 = vmatprep.mubr.bf16.mxu0 %v2541
    %3055 = vmatmul.mubr.bf16.gmra.mxu0 %v2540
    %v3056 = vpop.f32.mrf.mxu0
    %v3057 = vadd.f32 %v2873, %v3056
    %v3058 = vpop.f32.mrf.mxu0
    %v3059 = vpop.f32.mrf.mxu0
    %v3060 = vpop.f32.mrf.mxu0
    %3061 = vdwg.mxu0
    %3062 = vmatprep.subr.bf16.mxu0 0
    %3063 = vmatpush1.bf16.msra.mxu0 %v2997
    %3064 = vmatprep.subr.bf16.mxu0 0
    %3065 = vmatpush1.bf16.msra.mxu0 %v2996
    %3066 = vmatprep.subr.bf16.mxu0 0
    %3067 = vmatpush1.bf16.msra.mxu0 %v2995
    %3068 = vmatprep.subr.bf16.mxu0 0
    %3069 = vmatpush1.bf16.msra.mxu0 %v2994
    %3070 = vmatprep.subr.bf16.mxu0 0
    %3071 = vmatpush1.bf16.msra.mxu0 %v2993
    %3072 = vmatprep.subr.bf16.mxu0 0
    %3073 = vmatpush1.bf16.msra.mxu0 %v2992
    %3074 = vmatprep.subr.bf16.mxu0 0
    %3075 = vmatpush1.bf16.msra.mxu0 %v2991
    %3076 = vmatprep.subr.bf16.mxu0 0
    %3077 = vmatpush1.bf16.msra.mxu0 %v2990
    %3078 = vmatprep.subr.bf16.mxu0 0
    %3079 = vmatpush2.bf16.msra.mxu0 0
    %3080 = vmatprep.subr.bf16.mxu0 0
    %3081 = vmatpush2.bf16.msra.mxu0 0
    %3082 = vmatprep.subr.bf16.mxu0 0
    %3083 = vmatpush2.bf16.msra.mxu0 0
    %3084 = vmatprep.subr.bf16.mxu0 0
    %3085 = vmatpush2.bf16.msra.mxu0 0
    %3086 = vmatprep.subr.bf16.mxu0 0
    %3087 = vmatpush2.bf16.msra.mxu0 0
    %3088 = vmatprep.subr.bf16.mxu0 0
    %3089 = vmatpush2.bf16.msra.mxu0 0
    %3090 = vmatprep.subr.bf16.mxu0 0
    %3091 = vmatpush2.bf16.msra.mxu0 0
    %3092 = vmatprep.subr.bf16.mxu0 0
    %3093 = vmatpush2.bf16.msra.mxu0 0
    %3094 = vmatprep.mubr.bf16.mxu0 0
    %3095 = vmatmul.mubr.bf16.gmra.mxu0 %v2542
    %v3096 = vpop.f32.mrf.mxu0
    %v3097 = vadd.f32 %v3057, %v3096
    %v3098 = vpop.f32.mrf.mxu0
    %v3099 = vpop.f32.mrf.mxu0
    %v3100 = vpop.f32.mrf.mxu0
    %3101 = vdwg.mxu0
    %v3102 = vld [vmem:[#allocation3] sm:$0x30]
    %v3103 = vld [vmem:[#allocation3 + $0x8] sm:$0x30]
    %v3104 = vld [vmem:[#allocation3 + $0x10] sm:$0x30]
    %v3105 = vpack.c.bf16 %v3102, %v3102
    %v3106 = vpack.c.bf16 %v3103, %v3103
    %v3107 = vpack.c.bf16 %v3104, %v3104
    %v3108 = vld [vmem:[%s1 + $0x600] sm:$0xf]
    %v3109 = vld [vmem:[%s1 + $0x604] sm:$0xf]
    %v3110 = vld [vmem:[%s1 + $0x608] sm:$0xf]
    %v3111 = vld [vmem:[%s1 + $0x60c] sm:$0xf]
    %v3112 = vld [vmem:[%s1 + $0x610] sm:$0xf]
    %v3113 = vld [vmem:[%s1 + $0x614] sm:$0xf]
    %v3114 = vld [vmem:[%s1 + $0x618] sm:$0xf]
    %v3115 = vld [vmem:[%s1 + $0x61c] sm:$0xf]
    %v3116 = vld [vmem:[%s1 + $0x620] sm:$0xf]
    %v3117 = vld [vmem:[%s1 + $0x624] sm:$0xf]
    %v3118 = vld [vmem:[%s1 + $0x628] sm:$0xf]
    %v3119 = vld [vmem:[%s1 + $0x62c] sm:$0xf]
    %v3120 = vld [vmem:[%s1 + $0x630] sm:$0xf]
    %v3121 = vld [vmem:[%s1 + $0x634] sm:$0xf]
    %v3122 = vld [vmem:[%s1 + $0x638] sm:$0xf]
    %v3123 = vld [vmem:[%s1 + $0x63c] sm:$0xf]
    %v3124 = vld [vmem:[%s1 + $0x640] sm:$0xf]
    %v3125 = vld [vmem:[%s1 + $0x644] sm:$0xf]
    %v3126 = vld [vmem:[%s1 + $0x648] sm:$0xf]
    %v3127 = vld [vmem:[%s1 + $0x64c] sm:$0xf]
    %v3128 = vld [vmem:[%s1 + $0x650] sm:$0xf]
    %v3129 = vld [vmem:[%s1 + $0x654] sm:$0xf]
    %v3130 = vld [vmem:[%s1 + $0x658] sm:$0xf]
    %v3131 = vld [vmem:[%s1 + $0x65c] sm:$0xf]
    %v3132 = vld [vmem:[%s1 + $0x660] sm:$0xf]
    %v3133 = vld [vmem:[%s1 + $0x664] sm:$0xf]
    %v3134 = vld [vmem:[%s1 + $0x668] sm:$0xf]
    %v3135 = vld [vmem:[%s1 + $0x66c] sm:$0xf]
    %v3136 = vld [vmem:[%s1 + $0x670] sm:$0xf]
    %v3137 = vld [vmem:[%s1 + $0x674] sm:$0xf]
    %v3138 = vld [vmem:[%s1 + $0x678] sm:$0xf]
    %v3139 = vld [vmem:[%s1 + $0x67c] sm:$0xf]
    %v3140 = vld [vmem:[%s1 + $0x680] sm:$0xf]
    %v3141 = vld [vmem:[%s1 + $0x684] sm:$0xf]
    %v3142 = vld [vmem:[%s1 + $0x688] sm:$0xf]
    %v3143 = vld [vmem:[%s1 + $0x68c] sm:$0xf]
    %v3144 = vld [vmem:[%s1 + $0x690] sm:$0xf]
    %v3145 = vld [vmem:[%s1 + $0x694] sm:$0xf]
    %v3146 = vld [vmem:[%s1 + $0x698] sm:$0xf]
    %v3147 = vld [vmem:[%s1 + $0x69c] sm:$0xf]
    %v3148 = vld [vmem:[%s1 + $0x6a0] sm:$0xf]
    %v3149 = vld [vmem:[%s1 + $0x6a4] sm:$0xf]
    %v3150 = vld [vmem:[%s1 + $0x6a8] sm:$0xf]
    %v3151 = vld [vmem:[%s1 + $0x6ac] sm:$0xf]
    %v3152 = vld [vmem:[%s1 + $0x6b0] sm:$0xf]
    %v3153 = vld [vmem:[%s1 + $0x6b4] sm:$0xf]
    %v3154 = vld [vmem:[%s1 + $0x6b8] sm:$0xf]
    %v3155 = vld [vmem:[%s1 + $0x6bc] sm:$0xf]
    %v3159 = vrot.slane %v3105, 2
    %v3160 = vrot.slane %v3106, 2
    %v3161 = vrot.slane %v3107, 2
    %v3213 = vunpack.c.l.b16 %v3108
    %v3214 = vunpack.c.l.b16 %v3109
    %v3215 = vunpack.c.l.b16 %v3110
    %v3216 = vunpack.c.l.b16 %v3111
    %v3217 = vunpack.c.l.b16 %v3112
    %v3218 = vunpack.c.l.b16 %v3113
    %v3219 = vunpack.c.l.b16 %v3114
    %v3220 = vunpack.c.l.b16 %v3115
    %v3221 = vunpack.c.l.b16 %v3116
    %v3222 = vunpack.c.l.b16 %v3117
    %v3223 = vunpack.c.l.b16 %v3118
    %v3224 = vunpack.c.l.b16 %v3119
    %v3225 = vunpack.c.l.b16 %v3120
    %v3226 = vunpack.c.l.b16 %v3121
    %v3227 = vunpack.c.l.b16 %v3122
    %v3228 = vunpack.c.l.b16 %v3123
    %v3229 = vunpack.c.l.b16 %v3124
    %v3230 = vunpack.c.l.b16 %v3125
    %v3231 = vunpack.c.l.b16 %v3126
    %v3232 = vunpack.c.l.b16 %v3127
    %v3233 = vunpack.c.l.b16 %v3128
    %v3234 = vunpack.c.l.b16 %v3129
    %v3235 = vunpack.c.l.b16 %v3130
    %v3236 = vunpack.c.l.b16 %v3131
    %v3237 = vunpack.c.l.b16 %v3132
    %v3238 = vunpack.c.l.b16 %v3133
    %v3239 = vunpack.c.l.b16 %v3134
    %v3240 = vunpack.c.l.b16 %v3135
    %v3241 = vunpack.c.l.b16 %v3136
    %v3242 = vunpack.c.l.b16 %v3137
    %v3243 = vunpack.c.l.b16 %v3138
    %v3244 = vunpack.c.l.b16 %v3139
    %v3245 = vunpack.c.l.b16 %v3140
    %v3246 = vunpack.c.l.b16 %v3141
    %v3247 = vunpack.c.l.b16 %v3142
    %v3248 = vunpack.c.l.b16 %v3143
    %v3249 = vunpack.c.l.b16 %v3144
    %v3250 = vunpack.c.l.b16 %v3145
    %v3251 = vunpack.c.l.b16 %v3146
    %v3252 = vunpack.c.l.b16 %v3147
    %v3253 = vunpack.c.l.b16 %v3148
    %v3254 = vunpack.c.l.b16 %v3149
    %v3255 = vunpack.c.l.b16 %v3150
    %v3256 = vunpack.c.l.b16 %v3151
    %v3257 = vunpack.c.l.b16 %v3152
    %v3258 = vunpack.c.l.b16 %v3153
    %v3259 = vunpack.c.l.b16 %v3154
    %v3260 = vunpack.c.l.b16 %v3155
    %v3261 = vpack.c.b16 %v3214, %v3213
    %v3262 = vpack.c.b16 %v3216, %v3215
    %v3263 = vpack.c.b16 %v3218, %v3217
    %v3264 = vpack.c.b16 %v3220, %v3219
    %v3265 = vpack.c.b16 %v3222, %v3221
    %v3266 = vpack.c.b16 %v3224, %v3223
    %v3267 = vpack.c.b16 %v3226, %v3225
    %v3268 = vpack.c.b16 %v3228, %v3227
    %v3269 = vpack.c.b16 %v3230, %v3229
    %v3270 = vpack.c.b16 %v3232, %v3231
    %v3271 = vpack.c.b16 %v3234, %v3233
    %v3272 = vpack.c.b16 %v3236, %v3235
    %v3273 = vpack.c.b16 %v3238, %v3237
    %v3274 = vpack.c.b16 %v3240, %v3239
    %v3275 = vpack.c.b16 %v3242, %v3241
    %v3276 = vpack.c.b16 %v3244, %v3243
    %v3277 = vpack.c.b16 %v3246, %v3245
    %v3278 = vpack.c.b16 %v3248, %v3247
    %v3279 = vpack.c.b16 %v3250, %v3249
    %v3280 = vpack.c.b16 %v3252, %v3251
    %v3281 = vpack.c.b16 %v3254, %v3253
    %v3282 = vpack.c.b16 %v3256, %v3255
    %v3283 = vpack.c.b16 %v3258, %v3257
    %v3284 = vpack.c.b16 %v3260, %v3259
    %3309 = vmatprep.subr.bf16.mxu0 0
    %3310 = vmatpush1.bf16.msra.mxu0 %v3268
    %3311 = vmatprep.subr.bf16.mxu0 0
    %3312 = vmatpush1.bf16.msra.mxu0 %v3267
    %3313 = vmatprep.subr.bf16.mxu0 0
    %3314 = vmatpush1.bf16.msra.mxu0 %v3266
    %3315 = vmatprep.subr.bf16.mxu0 0
    %3316 = vmatpush1.bf16.msra.mxu0 %v3265
    %3317 = vmatprep.subr.bf16.mxu0 0
    %3318 = vmatpush1.bf16.msra.mxu0 %v3264
    %3319 = vmatprep.subr.bf16.mxu0 0
    %3320 = vmatpush1.bf16.msra.mxu0 %v3263
    %3321 = vmatprep.subr.bf16.mxu0 0
    %3322 = vmatpush1.bf16.msra.mxu0 %v3262
    %3323 = vmatprep.subr.bf16.mxu0 0
    %3324 = vmatpush1.bf16.msra.mxu0 %v3261
    %3325 = vmatprep.subr.bf16.mxu0 0
    %3326 = vmatpush2.bf16.msra.mxu0 %v3276
    %3327 = vmatprep.subr.bf16.mxu0 0
    %3328 = vmatpush2.bf16.msra.mxu0 %v3275
    %3329 = vmatprep.subr.bf16.mxu0 0
    %3330 = vmatpush2.bf16.msra.mxu0 %v3274
    %3331 = vmatprep.subr.bf16.mxu0 0
    %3332 = vmatpush2.bf16.msra.mxu0 %v3273
    %3333 = vmatprep.subr.bf16.mxu0 0
    %3334 = vmatpush2.bf16.msra.mxu0 %v3272
    %3335 = vmatprep.subr.bf16.mxu0 0
    %3336 = vmatpush2.bf16.msra.mxu0 %v3271
    %3337 = vmatprep.subr.bf16.mxu0 0
    %3338 = vmatpush2.bf16.msra.mxu0 %v3270
    %3339 = vmatprep.subr.bf16.mxu0 0
    %3340 = vmatpush2.bf16.msra.mxu0 %v3269
    %3341 = vmatprep.mubr.bf16.mxu0 %v3160
    %3342 = vmatmul.mubr.bf16.gmra.mxu0 %v3159
    %v3343 = vpop.f32.mrf.mxu0
    %v3344 = vadd.f32 0.0, %v3343
    %v3345 = vpop.f32.mrf.mxu0
    %v3346 = vpop.f32.mrf.mxu0
    %v3347 = vpop.f32.mrf.mxu0
    %3348 = vdwg.mxu0
    %3349 = vmatprep.subr.bf16.mxu0 0
    %3350 = vmatpush1.bf16.msra.mxu0 %v3284
    %3351 = vmatprep.subr.bf16.mxu0 0
    %3352 = vmatpush1.bf16.msra.mxu0 %v3283
    %3353 = vmatprep.subr.bf16.mxu0 0
    %3354 = vmatpush1.bf16.msra.mxu0 %v3282
    %3355 = vmatprep.subr.bf16.mxu0 0
    %3356 = vmatpush1.bf16.msra.mxu0 %v3281
    %3357 = vmatprep.subr.bf16.mxu0 0
    %3358 = vmatpush1.bf16.msra.mxu0 %v3280
    %3359 = vmatprep.subr.bf16.mxu0 0
    %3360 = vmatpush1.bf16.msra.mxu0 %v3279
    %3361 = vmatprep.subr.bf16.mxu0 0
    %3362 = vmatpush1.bf16.msra.mxu0 %v3278
    %3363 = vmatprep.subr.bf16.mxu0 0
    %3364 = vmatpush1.bf16.msra.mxu0 %v3277
    %3365 = vmatprep.subr.bf16.mxu0 0
    %3366 = vmatpush2.bf16.msra.mxu0 0
    %3367 = vmatprep.subr.bf16.mxu0 0
    %3368 = vmatpush2.bf16.msra.mxu0 0
    %3369 = vmatprep.subr.bf16.mxu0 0
    %3370 = vmatpush2.bf16.msra.mxu0 0
    %3371 = vmatprep.subr.bf16.mxu0 0
    %3372 = vmatpush2.bf16.msra.mxu0 0
    %3373 = vmatprep.subr.bf16.mxu0 0
    %3374 = vmatpush2.bf16.msra.mxu0 0
    %3375 = vmatprep.subr.bf16.mxu0 0
    %3376 = vmatpush2.bf16.msra.mxu0 0
    %3377 = vmatprep.subr.bf16.mxu0 0
    %3378 = vmatpush2.bf16.msra.mxu0 0
    %3379 = vmatprep.subr.bf16.mxu0 0
    %3380 = vmatpush2.bf16.msra.mxu0 0
    %3381 = vmatprep.mubr.bf16.mxu0 0
    %3382 = vmatmul.mubr.bf16.gmra.mxu0 %v3161
    %v3383 = vpop.f32.mrf.mxu0
    %v3384 = vadd.f32 %v3344, %v3383
    %v3385 = vpop.f32.mrf.mxu0
    %v3386 = vpop.f32.mrf.mxu0
    %v3387 = vpop.f32.mrf.mxu0
    %3388 = vdwg.mxu0
    %v3389 = vadd.f32 %v3097, %v3384
    %v3390 = vld [vmem:[%s2 + $0x2] sm:$0x1]
    %v3391 = vlaneseq
    %v3392 = vshrl.u32 %v3391, 7
    %v3393 = vsub.s32 0, %v3392
    %v3394 = vrot.slane %v3390, %v3393
    %v3395 = vadd.f32 %v3389, %v3394
    %v3396 = vmax.f32 %v3395, 0.0
    %v3397 = vpack.c.bf16 %v3396, %v3396
    %v3398 = vld [vmem:[%s1 + $0x6c0] sm:$0xf]
    %v3399 = vld [vmem:[%s1 + $0x6c4] sm:$0xf]
    %v3400 = vld [vmem:[%s1 + $0x6c8] sm:$0xf]
    %v3401 = vld [vmem:[%s1 + $0x6cc] sm:$0xf]
    %v3402 = vld [vmem:[%s1 + $0x6d0] sm:$0xf]
    %v3403 = vld [vmem:[%s1 + $0x6d4] sm:$0xf]
    %v3404 = vld [vmem:[%s1 + $0x6d8] sm:$0xf]
    %v3405 = vld [vmem:[%s1 + $0x6dc] sm:$0xf]
    %v3406 = vld [vmem:[%s1 + $0x6e0] sm:$0xf]
    %v3407 = vld [vmem:[%s1 + $0x6e4] sm:$0xf]
    %v3408 = vld [vmem:[%s1 + $0x6e8] sm:$0xf]
    %v3409 = vld [vmem:[%s1 + $0x6ec] sm:$0xf]
    %v3410 = vld [vmem:[%s1 + $0x6f0] sm:$0xf]
    %v3411 = vld [vmem:[%s1 + $0x6f4] sm:$0xf]
    %v3412 = vld [vmem:[%s1 + $0x6f8] sm:$0xf]
    %v3413 = vld [vmem:[%s1 + $0x6fc] sm:$0xf]
    %v3414 = vld [vmem:[%s2 + $0x3] sm:$0x1]
    %v3415 = vlaneseq
    %v3416 = vshrl.u32 %v3415, 7
    %v3417 = vsub.s32 0, %v3416
    %v3418 = vrot.slane %v3414, %v3417
    %v3435 = vunpack.c.l.b16 %v3398
    %v3436 = vunpack.c.l.b16 %v3399
    %v3437 = vunpack.c.l.b16 %v3400
    %v3438 = vunpack.c.l.b16 %v3401
    %v3439 = vunpack.c.l.b16 %v3402
    %v3440 = vunpack.c.l.b16 %v3403
    %v3441 = vunpack.c.l.b16 %v3404
    %v3442 = vunpack.c.l.b16 %v3405
    %v3443 = vunpack.c.l.b16 %v3406
    %v3444 = vunpack.c.l.b16 %v3407
    %v3445 = vunpack.c.l.b16 %v3408
    %v3446 = vunpack.c.l.b16 %v3409
    %v3447 = vunpack.c.l.b16 %v3410
    %v3448 = vunpack.c.l.b16 %v3411
    %v3449 = vunpack.c.l.b16 %v3412
    %v3450 = vunpack.c.l.b16 %v3413
    %v3451 = vpack.c.b16 %v3436, %v3435
    %v3452 = vpack.c.b16 %v3438, %v3437
    %v3453 = vpack.c.b16 %v3440, %v3439
    %v3454 = vpack.c.b16 %v3442, %v3441
    %v3455 = vpack.c.b16 %v3444, %v3443
    %v3456 = vpack.c.b16 %v3446, %v3445
    %v3457 = vpack.c.b16 %v3448, %v3447
    %v3458 = vpack.c.b16 %v3450, %v3449
    %3467 = vmatprep.subr.bf16.mxu0 0
    %3468 = vmatpush1.bf16.msra.mxu0 %v3458
    %3469 = vmatprep.subr.bf16.mxu0 0
    %3470 = vmatpush1.bf16.msra.mxu0 %v3457
    %3471 = vmatprep.subr.bf16.mxu0 0
    %3472 = vmatpush1.bf16.msra.mxu0 %v3456
    %3473 = vmatprep.subr.bf16.mxu0 0
    %3474 = vmatpush1.bf16.msra.mxu0 %v3455
    %3475 = vmatprep.subr.bf16.mxu0 0
    %3476 = vmatpush1.bf16.msra.mxu0 %v3454
    %3477 = vmatprep.subr.bf16.mxu0 0
    %3478 = vmatpush1.bf16.msra.mxu0 %v3453
    %3479 = vmatprep.subr.bf16.mxu0 0
    %3480 = vmatpush1.bf16.msra.mxu0 %v3452
    %3481 = vmatprep.subr.bf16.mxu0 0
    %3482 = vmatpush1.bf16.msra.mxu0 %v3451
    %3483 = vmatprep.subr.bf16.mxu0 0
    %3484 = vmatpush2.bf16.msra.mxu0 0
    %3485 = vmatprep.subr.bf16.mxu0 0
    %3486 = vmatpush2.bf16.msra.mxu0 0
    %3487 = vmatprep.subr.bf16.mxu0 0
    %3488 = vmatpush2.bf16.msra.mxu0 0
    %3489 = vmatprep.subr.bf16.mxu0 0
    %3490 = vmatpush2.bf16.msra.mxu0 0
    %3491 = vmatprep.subr.bf16.mxu0 0
    %3492 = vmatpush2.bf16.msra.mxu0 0
    %3493 = vmatprep.subr.bf16.mxu0 0
    %3494 = vmatpush2.bf16.msra.mxu0 0
    %3495 = vmatprep.subr.bf16.mxu0 0
    %3496 = vmatpush2.bf16.msra.mxu0 0
    %3497 = vmatprep.subr.bf16.mxu0 0
    %3498 = vmatpush2.bf16.msra.mxu0 0
    %3499 = vmatprep.mubr.bf16.mxu0 0
    %3500 = vmatmul.mubr.bf16.gmra.mxu0 %v3397
    %v3501 = vpop.f32.mrf.mxu0
    %v3502 = vadd.f32 %v3418, %v3501
    %v3503 = vpop.f32.mrf.mxu0
    %v3504 = vpop.f32.mrf.mxu0
    %v3505 = vpop.f32.mrf.mxu0
    %3506 = vdwg.mxu0
    %3507 = vst [vmem:[#allocation4] sm:$0x3] %v3502
    // Predicated region
    $region14: #{forward.1} parent=1 // pred_check
      _
    $region15: #{forward.1} parent=1 // pred_check_branch
      %3509 = sbr.rel (0) target = $region17
    $region16: #{forward.1} parent=1 // pred_region
      %s3511 = ssub.s32 32, 32
      %3512 = vsyncadd [#allocation5], %s3511
      %s3514 = sshll.u32 [#allocation4], 4
      %s3515 = int_to_ptr.vmem [resolvable:$true] %s3514
      %3517 = dma.vmem_to_hbm [thread:$0]  %s3515, 32, %s3, [#allocation5]
    $region17: #{forward.1} parent=1 // pred_fallthru
      _
    // Predicated region
    $region18: #{forward.1} parent=1 // pred_check
      _
    $region19: #{forward.1} parent=1 // pred_check_branch
      %3519 = sbr.rel (0) target = $region21
    $region20: #{forward.1} parent=1 // pred_region
      %3520 = dma.done [#allocation5], 32
    $region21: #{forward.1} parent=1 // pred_fallthru
      _
    %3521 = vsyncpa [#allocation5], 1

</llo_original>
